<compile_context>
chip_gen: v6e
topology: v6e:2x2x1
jax: 0.10.0
libtpu: 0.0.40
codegen_flags: <defaults>
</compile_context>

<pallas_src>
import functools

import jax
import jax.numpy as jnp
from jax import lax
from jax.experimental import pallas as pl
from jax.experimental.pallas import tpu as pltpu


_BLK = 256   # output tile edge (multiple of 128 lanes; 256x256 f32 = 256 KiB)
_D = 128     # proxy feature dim (fixed by the module)

# Abramowitz & Stegun 4.4.46 coefficients, a7 .. a0 (|error| <= 2e-8 on [0, 1]).
_ACOS_COEFFS = (
    -0.0012624911, 0.0066700901, -0.0170881256, 0.0308918810,
    -0.0501743046, 0.0889789874, -0.2145988016, 1.5707963050,
)


def _acos(x):
    """acos for x in [-1, 1]: sqrt(1-|x|)*P(|x|), reflected for x < 0.

    Polynomial runs on the VPU, the sqrt on the EUP; both slots are idle under
    the MXU so the fused arccos is essentially free.
    """
    ax = jnp.abs(x)
    p = jnp.float32(_ACOS_COEFFS[0])
    for c in _ACOS_COEFFS[1:]:
        p = p * ax + jnp.float32(c)
    r = jnp.sqrt(jnp.maximum(1.0 - ax, 0.0)) * p
    return jnp.where(x >= 0.0, r, jnp.float32(jnp.pi) - r)


def _make_dist_kernel(distance):
    """Fused normalize + Gram + distance epilogue, specialized on `distance`."""

    def kernel(w_row_ref, w_col_ref, out_ref):
        w_row = w_row_ref[...].astype(jnp.float32)   # (TM, 128)
        w_col = w_col_ref[...].astype(jnp.float32)   # (TN, 128)

        # Row L2 normalization (fused; zero-padded rows map to zero).
        row_n = jnp.sqrt(jnp.sum(w_row * w_row, axis=1, keepdims=True))
        col_n = jnp.sqrt(jnp.sum(w_col * w_col, axis=1, keepdims=True))
        wn_row = w_row / (row_n + 1e-6)
        wn_col = w_col / (col_n + 1e-6)

        # (TM,128) x (TN,128) contracted on dim 1 -> (TM, TN) on the MXU.
        cos = lax.dot_general(wn_row, wn_col, (((1,), (1,)), ((), ())),
                              preferred_element_type=jnp.float32)

        if distance == "euc":
            out_ref[...] = jnp.sqrt(jnp.clip(2.0 - 2.0 * cos, 0.0, 4.0) + 1e-12)
        else:  # 'arccos'
            x = jnp.clip(cos, -1.0, 1.0) * (1.0 - 1e-6)
            out_ref[...] = _acos(x)

    return kernel


def _round_up(x, m):
    return (x + m - 1) // m * m


@functools.partial(jax.jit, static_argnames="distance")
def net_forward(W, distance="arccos"):
    """Pallas-backed equivalent of Net.forward()."""
    if distance not in ("arccos", "euc"):
        raise ValueError(f"unknown distance: {distance}")

    N, D = W.shape
    n_pad = _round_up(N, _BLK)
    w_pad = W.astype(jnp.float32)
    if n_pad != N:
        w_pad = jnp.pad(w_pad, ((0, n_pad - N), (0, 0)))

    dist_pad = pl.pallas_call(
        _make_dist_kernel(distance),
        out_shape=jax.ShapeDtypeStruct((n_pad, n_pad), jnp.float32),
        grid=(n_pad // _BLK, n_pad // _BLK),
        in_specs=[
            pl.BlockSpec((_BLK, D), lambda i, j: (i, 0)),   # W row block
            pl.BlockSpec((_BLK, D), lambda i, j: (j, 0)),   # W col block
        ],
        out_specs=pl.BlockSpec((_BLK, _BLK), lambda i, j: (i, j)),
        compiler_params=pltpu.CompilerParams(
            dimension_semantics=("parallel", "parallel")),
    )(w_pad, w_pad)

    return dist_pad[:N, :N]


def _reference_forward(W, distance="arccos"):
    """Pure-JAX reference mirroring the PyTorch forward."""
    norm = jnp.sqrt(jnp.sum(W * W, axis=1, keepdims=True))
    WN = W / (norm + 1e-6)
    cos = WN @ WN.T
    euc = jnp.sqrt(jnp.clip(2.0 - 2.0 * cos, 0.0, 4.0) + 1e-12)
    arc = jnp.arccos(jnp.clip(cos, -1.0, 1.0) * (1.0 - 1e-6))
    return arc if distance == "arccos" else euc


if __name__ == "__main__":
    # Deterministic synthetic parameter init (mirrors
    #   self.W = nn.Parameter(F.normalize(torch.randn([n_classes, 128]))) ).
    n_classes = 300   # synthetic stand-in (exercises tiling + padding path)
    feat_dim = _D
    key = jax.random.PRNGKey(0)
    W0 = jax.random.normal(key, (n_classes, feat_dim), dtype=jnp.float32)
    W = W0 / jnp.linalg.norm(W0, axis=1, keepdims=True)   # F.normalize

    out_arccos = jax.block_until_ready(net_forward(W, distance="arccos"))
    out_euc = jax.block_until_ready(net_forward(W, distance="euc"))

    ref_arccos = _reference_forward(W, "arccos")
    ref_euc = _reference_forward(W, "euc")

    assert out_arccos.shape == (n_classes, n_classes)
    assert out_euc.shape == (n_classes, n_classes)
    # Near the diagonal cos ~= 1 - 2e-6, so d(acos)/dcos is ~500x: ulp-level
    # cos differences between the tiled kernel and the XLA reference
    # legitimately amplify to a few 1e-5 .. 1e-4, hence atol=5e-4.
    assert jnp.allclose(out_arccos, ref_arccos, atol=5e-4, rtol=1e-4), (
        float(jnp.max(jnp.abs(out_arccos - ref_arccos))))
    assert jnp.allclose(out_euc, ref_euc, atol=5e-4, rtol=1e-4), (
        float(jnp.max(jnp.abs(out_euc - ref_euc))))

    print("KERNEL_OK")
</pallas_src>

<mosaic_0001>
module attributes {stable_mosaic.version = 11 : i64} {
  func.func @kernel(%arg0: i32, %arg1: i32, %arg2: memref<256x128xf32, #tpu.memory_space<vmem>>, %arg3: memref<256x128xf32, #tpu.memory_space<vmem>>, %arg4: memref<256x256xf32, #tpu.memory_space<vmem>>) attributes {dimension_semantics = [#tpu.dimension_semantics<parallel>, #tpu.dimension_semantics<parallel>], iteration_bounds = array<i64: 2, 2>, scalar_prefetch = 0 : i64, scratch_operands = 0 : i64, tpu.core_type = #tpu.core_type<tc>, window_params = [{transform_indices = @transform_0, window_bounds = array<i64: 256, 128>}, {transform_indices = @transform_1, window_bounds = array<i64: 256, 128>}, {transform_indices = @transform_2, window_bounds = array<i64: 256, 256>}]} {
    %c0 = arith.constant 0 : index
    %c0_0 = arith.constant 0 : index
    %0 = vector.load %arg2[%c0, %c0_0] : memref<256x128xf32, #tpu.memory_space<vmem>>, vector<256x128xf32>
    %c0_1 = arith.constant 0 : index
    %c0_2 = arith.constant 0 : index
    %1 = vector.load %arg3[%c0_1, %c0_2] : memref<256x128xf32, #tpu.memory_space<vmem>>, vector<256x128xf32>
    %2 = arith.mulf %0, %0 : vector<256x128xf32>
    %cst = arith.constant dense<0.000000e+00> : vector<256xf32>
    %3 = vector.multi_reduction <add>, %2, %cst [1] : vector<256x128xf32> to vector<256xf32>
    %4 = vector.shape_cast %3 : vector<256xf32> to vector<256x1xf32>
    %5 = math.sqrt %4 : vector<256x1xf32>
    %6 = arith.mulf %1, %1 : vector<256x128xf32>
    %cst_3 = arith.constant dense<0.000000e+00> : vector<256xf32>
    %7 = vector.multi_reduction <add>, %6, %cst_3 [1] : vector<256x128xf32> to vector<256xf32>
    %8 = vector.shape_cast %7 : vector<256xf32> to vector<256x1xf32>
    %9 = math.sqrt %8 : vector<256x1xf32>
    %cst_4 = arith.constant 9.99999997E-7 : f32
    %10 = vector.broadcast %cst_4 : f32 to vector<256x1xf32>
    %11 = arith.addf %5, %10 : vector<256x1xf32>
    %12 = vector.broadcast %11 : vector<256x1xf32> to vector<256x128xf32>
    %13 = arith.divf %0, %12 : vector<256x128xf32>
    %cst_5 = arith.constant 9.99999997E-7 : f32
    %14 = vector.broadcast %cst_5 : f32 to vector<256x1xf32>
    %15 = arith.addf %9, %14 : vector<256x1xf32>
    %16 = vector.broadcast %15 : vector<256x1xf32> to vector<256x128xf32>
    %17 = arith.divf %1, %16 : vector<256x128xf32>
    %cst_6 = arith.constant dense<0.000000e+00> : vector<256x256xf32>
    %18 = tpu.matmul %13, %17, %cst_6 {dimension_numbers = #tpu.dot_dimension_numbers<[1], [1], [0], [0], [0, 0, 1, 0], [], []>} : vector<256x128xf32>, vector<256x128xf32>, vector<256x256xf32> -> vector<256x256xf32>
    %cst_7 = arith.constant -1.000000e+00 : f32
    %cst_8 = arith.constant 1.000000e+00 : f32
    %19 = vector.broadcast %cst_7 : f32 to vector<256x256xf32>
    %20 = arith.maximumf %19, %18 : vector<256x256xf32>
    %21 = vector.broadcast %cst_8 : f32 to vector<256x256xf32>
    %22 = arith.minimumf %21, %20 : vector<256x256xf32>
    %cst_9 = arith.constant 0.999998986 : f32
    %23 = vector.broadcast %cst_9 : f32 to vector<256x256xf32>
    %24 = arith.mulf %22, %23 : vector<256x256xf32>
    %25 = math.absf %24 : vector<256x256xf32>
    %cst_10 = arith.constant -0.0012624911 : f32
    %26 = vector.broadcast %cst_10 : f32 to vector<256x256xf32>
    %27 = arith.mulf %26, %25 : vector<256x256xf32>
    %cst_11 = arith.constant 6.670090e-03 : f32
    %28 = vector.broadcast %cst_11 : f32 to vector<256x256xf32>
    %29 = arith.addf %27, %28 : vector<256x256xf32>
    %30 = arith.mulf %29, %25 : vector<256x256xf32>
    %cst_12 = arith.constant -0.0170881264 : f32
    %31 = vector.broadcast %cst_12 : f32 to vector<256x256xf32>
    %32 = arith.addf %30, %31 : vector<256x256xf32>
    %33 = arith.mulf %32, %25 : vector<256x256xf32>
    %cst_13 = arith.constant 0.0308918804 : f32
    %34 = vector.broadcast %cst_13 : f32 to vector<256x256xf32>
    %35 = arith.addf %33, %34 : vector<256x256xf32>
    %36 = arith.mulf %35, %25 : vector<256x256xf32>
    %cst_14 = arith.constant -0.0501743034 : f32
    %37 = vector.broadcast %cst_14 : f32 to vector<256x256xf32>
    %38 = arith.addf %36, %37 : vector<256x256xf32>
    %39 = arith.mulf %38, %25 : vector<256x256xf32>
    %cst_15 = arith.constant 0.0889789909 : f32
    %40 = vector.broadcast %cst_15 : f32 to vector<256x256xf32>
    %41 = arith.addf %39, %40 : vector<256x256xf32>
    %42 = arith.mulf %41, %25 : vector<256x256xf32>
    %cst_16 = arith.constant -0.214598805 : f32
    %43 = vector.broadcast %cst_16 : f32 to vector<256x256xf32>
    %44 = arith.addf %42, %43 : vector<256x256xf32>
    %45 = arith.mulf %44, %25 : vector<256x256xf32>
    %cst_17 = arith.constant 1.57079625 : f32
    %46 = vector.broadcast %cst_17 : f32 to vector<256x256xf32>
    %47 = arith.addf %45, %46 : vector<256x256xf32>
    %cst_18 = arith.constant 1.000000e+00 : f32
    %48 = vector.broadcast %cst_18 : f32 to vector<256x256xf32>
    %49 = arith.subf %48, %25 : vector<256x256xf32>
    %cst_19 = arith.constant 0.000000e+00 : f32
    %50 = vector.broadcast %cst_19 : f32 to vector<256x256xf32>
    %51 = arith.maximumf %49, %50 : vector<256x256xf32>
    %52 = math.sqrt %51 : vector<256x256xf32>
    %53 = arith.mulf %52, %47 : vector<256x256xf32>
    %cst_20 = arith.constant 0.000000e+00 : f32
    %54 = vector.broadcast %cst_20 : f32 to vector<256x256xf32>
    %55 = arith.cmpf oge, %24, %54 : vector<256x256xf32>
    %cst_21 = arith.constant 3.14159274 : f32
    %56 = vector.broadcast %cst_21 : f32 to vector<256x256xf32>
    %57 = arith.subf %56, %53 : vector<256x256xf32>
    %58 = arith.select %55, %53, %57 : vector<256x256xi1>, vector<256x256xf32>
    %c0_22 = arith.constant 0 : index
    %c0_23 = arith.constant 0 : index
    %59 = vector.load %arg4[%c0_22, %c0_23] : memref<256x256xf32, #tpu.memory_space<vmem>>, vector<256x256xf32>
    tpu.vector_store %arg4[%c0_22, %c0_23], %58 {strides = array<i32>} : memref<256x256xf32, #tpu.memory_space<vmem>>, vector<256x256xf32>,
    return
  }
  func.func @transform_0(%arg0: i32, %arg1: i32) -> (i32, i32) {
    %c0_i32 = arith.constant 0 : i32
    %c0_i32_0 = arith.constant 0 : i32
    return %arg0, %c0_i32 : i32, i32
  }
  func.func @transform_1(%arg0: i32, %arg1: i32) -> (i32, i32) {
    %c0_i32 = arith.constant 0 : i32
    %c0_i32_0 = arith.constant 0 : i32
    return %arg1, %c0_i32 : i32, i32
  }
  func.func @transform_2(%arg0: i32, %arg1: i32) -> (i32, i32) {
    %c0_i32 = arith.constant 0 : i32
    return %arg0, %arg1 : i32, i32
  }
}

</mosaic_0001>

<llo_original>
// kernel: net_forward.1
$region0: #{net_forward.1}
  #allocation0 [shape = 'u32[]', space=smem, size = 0x4, offset = 0x4, fixed_abs, tag = 'smem constant byte address 0x4 - core index']
  #allocation1 [shape = 'u32[144,128]{1,0:T(1,128)}', space=vmem, size = 0x12000, scoped, tag = 'internal scratch']
  %s0 = inlined_call_operand.vmem [shape: f32[512,128], index: 0, kind: input, shape index: {}, may-alias: {0,1}]
  %s1 = inlined_call_operand.vmem [shape: f32[512,128], index: 1, kind: input, shape index: {}, may-alias: {0,1}]
  %s2 = inlined_call_operand.vmem [shape: f32[512,512], index: 2, kind: output, shape index: {}]
  %s3 = sld [smem:[#allocation0]]
  $region60: #{net_forward.1} parent=0
    _
  %s5 = ssub.s32 1, %s3
  %s6 = scalar_select 0, %s5, %s3
  $region1: #{net_forward.1} parent=0
    #allocation2 [shape = 'u8[524288]{0}', space=vmem, size = 0x80000, scoped, tag = 'output window, operand 0']
    loop: start=0, step=1, limit=6
    $region2: #{net_forward.1} parent=1 // loop_pre_header
      _
    $region3: #{net_forward.1} parent=1 // loop_header
      %s8 = sphi 0, %s12
      %p9 = scmp.ge.s32.totalorder %s8, 6
      %s15 = sphi 0, %s27
      %s16 = sphi 0, %s23
      %s17 = sphi 0, %s15
      %s18 = sphi 0, %s16
      %s19 = sphi 0, %s17
      %s20 = sphi 0, %s18
      %s30 = sphi 0, %s32
      %s33 = sphi 0, %s30
      %s34 = sphi 0, %s33
      %s50 = sphi 0, %s34
      %s56 = sphi 0, %s58
      %s59 = sphi 0, %s56
      %s60 = sphi 0, %s59
      %s76 = sphi 0, %s60
      %s84 = sphi 0, %s86
      %s87 = sphi 0, %s84
      %s88 = sphi 0, %s87
      %s104 = sphi 0, %s88
    $region4: #{net_forward.1} parent=1 // loop_header_branch
      %11 = sbr.rel (%p9) target = $region8
    $region5: #{net_forward.1} parent=1 // loop_body
      %s13 = ssub.s32 %s8, 1
      %s14 = ssub.s32 %s8, 2
      %s21 = sadd.s32 1, %s16
      %p22 = scmp.ge.s32.totalorder %s21, 2
      %s23 = scalar_select %p22, 0, %s21
      %s24 = sadd.s32 1, %s15
      %s25 = scalar_select %p22, %s24, %s15
      %p26 = scmp.ge.s32.totalorder %s25, 2
      %s27 = scalar_select %p26, 0, %s25
      %s28 = ssub.s32 %s15, %s27
      %p29 = scmp.eq.s32.totalorder %s28, 0
      %s31 = sadd.s32 %s30, 1
      %s32 = scalar_select %p29, %s30, %s31
      %p35 = pneg %p29
      %p36 = scmp.eq.s32.totalorder %s8, 3
      %p37 = por %p35, %p36
      %p38 = scmp.ne.s32.totalorder %s30, %s33
      %p39 = scmp.eq.s32.totalorder %s8, 0
      %p40 = por %p38, %p39
      %p41 = scmp.ne.s32.totalorder %s30, %s33
      %p42 = scmp.eq.s32.totalorder %s13, 3
      %p43 = por %p41, %p42
      %p44 = scmp.ne.s32.totalorder %s33, %s34
      %p45 = scmp.eq.s32.totalorder %s13, 0
      %p46 = por %p44, %p45
      %p47 = scmp.ne.s32.totalorder %s33, %s34
      %p48 = scmp.eq.s32.totalorder %s14, 3
      %p49 = por %p47, %p48
      %p51 = scmp.ne.s32.totalorder %s34, %s50
      %p52 = scmp.eq.s32.totalorder %s14, 0
      %p53 = por %p51, %p52
      %s54 = ssub.s32 %s16, %s23
      %p55 = scmp.eq.s32.totalorder %s54, 0
      %s57 = sadd.s32 %s56, 1
      %s58 = scalar_select %p55, %s56, %s57
      %p61 = pneg %p55
      %p62 = scmp.eq.s32.totalorder %s8, 3
      %p63 = por %p61, %p62
      %p64 = scmp.ne.s32.totalorder %s56, %s59
      %p65 = scmp.eq.s32.totalorder %s8, 0
      %p66 = por %p64, %p65
      %p67 = scmp.ne.s32.totalorder %s56, %s59
      %p68 = scmp.eq.s32.totalorder %s13, 3
      %p69 = por %p67, %p68
      %p70 = scmp.ne.s32.totalorder %s59, %s60
      %p71 = scmp.eq.s32.totalorder %s13, 0
      %p72 = por %p70, %p71
      %p73 = scmp.ne.s32.totalorder %s59, %s60
      %p74 = scmp.eq.s32.totalorder %s14, 3
      %p75 = por %p73, %p74
      %p77 = scmp.ne.s32.totalorder %s60, %s76
      %p78 = scmp.eq.s32.totalorder %s14, 0
      %p79 = por %p77, %p78
      %s80 = ssub.s32 %s15, %s27
      %s81 = ssub.s32 %s16, %s23
      %s82 = sor.u32 %s80, %s81
      %p83 = scmp.eq.s32.totalorder %s82, 0
      %s85 = sadd.s32 %s84, 1
      %s86 = scalar_select %p83, %s84, %s85
      %p89 = pneg %p83
      %p90 = scmp.eq.s32.totalorder %s8, 3
      %p91 = por %p89, %p90
      %p92 = scmp.ne.s32.totalorder %s84, %s87
      %p93 = scmp.eq.s32.totalorder %s8, 0
      %p94 = por %p92, %p93
      %p95 = scmp.ne.s32.totalorder %s84, %s87
      %p96 = scmp.eq.s32.totalorder %s13, 3
      %p97 = por %p95, %p96
      %p98 = scmp.ne.s32.totalorder %s87, %s88
      %p99 = scmp.eq.s32.totalorder %s13, 0
      %p100 = por %p98, %p99
      %p101 = scmp.ne.s32.totalorder %s87, %s88
      %p102 = scmp.eq.s32.totalorder %s14, 3
      %p103 = por %p101, %p102
      %p105 = scmp.ne.s32.totalorder %s88, %s104
      %p106 = scmp.eq.s32.totalorder %s14, 0
      %p107 = por %p105, %p106
      %p108 = scmp.le.s32.totalorder 1, %s8
      %p109 = scmp.lt.s32.totalorder %s8, 5
      %p110 = pnand %p108, %p109
      %p111 = pneg %p110
      // Predicated region
      $region9: #{net_forward.1} parent=5 // pred_check
        _
      $region10: #{net_forward.1} parent=5 // pred_check_branch
        %113 = sbr.rel (%p110) target = $region12
      $region11: #{net_forward.1} parent=5 // pred_region
        %s114 = ssub.s32 %s8, 1
      $region12: #{net_forward.1} parent=5 // pred_fallthru
        _
      %p115 = scmp.lt.s32.totalorder %s8, 4
      // Predicated region
      $region13: #{net_forward.1} parent=5 // pred_check
        %p116 = pneg %p115
      $region14: #{net_forward.1} parent=5 // pred_check_branch
        %118 = sbr.rel (%p116) target = $region16
      $region15: #{net_forward.1} parent=5 // pred_region
        // Predicated region
        $region17: #{net_forward.1} parent=15 // pred_check
          %p119 = pneg %p40
        $region18: #{net_forward.1} parent=15 // pred_check_branch
          %121 = sbr.rel (%p119) target = $region20
        $region19: #{net_forward.1} parent=15 // pred_region
          %s122 = smul.u32 32, %s15
          %p123 = scmp.lt.s32.totalorder %s122, 63
          %s124 = scalar_select %p123, %s122, 63
          %s125 = smul.addr %s124, 8
          %s126 = scalar_lea.vmem %s0, %s125
          %s127 = smul.u32 32, %s15
        $region20: #{net_forward.1} parent=15 // pred_fallthru
          _
        // Predicated region
        $region21: #{net_forward.1} parent=15 // pred_check
          %p128 = pneg %p66
        $region22: #{net_forward.1} parent=15 // pred_check_branch
          %130 = sbr.rel (%p128) target = $region24
        $region23: #{net_forward.1} parent=15 // pred_region
          %s131 = smul.u32 32, %s16
          %p132 = scmp.lt.s32.totalorder %s131, 63
          %s133 = scalar_select %p132, %s131, 63
          %s134 = smul.addr %s133, 8
          %s135 = scalar_lea.vmem %s1, %s134
          %s136 = smul.u32 32, %s16
        $region24: #{net_forward.1} parent=15 // pred_fallthru
          _
      $region16: #{net_forward.1} parent=5 // pred_fallthru
        _
      %p137 = scmp.le.s32.totalorder 1, %s8
      %p138 = scmp.lt.s32.totalorder %s8, 5
      %p139 = pnand %p137, %p138
      %p140 = pneg %p139
      // Predicated region
      $region25: #{net_forward.1} parent=5 // pred_check
        _
      $region26: #{net_forward.1} parent=5 // pred_check_branch
        %142 = sbr.rel (%p139) target = $region28
      $region27: #{net_forward.1} parent=5 // pred_region
        %s143 = ssub.s32 %s8, 1
        %s144 = smul.u32 32, %s17
        %p145 = scmp.lt.s32.totalorder %s144, 63
        %s146 = scalar_select %p145, %s144, 63
        %s147 = smul.addr %s146, 8
        %s148 = scalar_lea.vmem %s0, %s147
        %p149 = pneg %p46
        %p150 = pneg %p43
        %s151 = smul.u32 32, %s18
        %p152 = scmp.lt.s32.totalorder %s151, 63
        %s153 = scalar_select %p152, %s151, 63
        %s154 = smul.addr %s153, 8
        %s155 = scalar_lea.vmem %s1, %s154
        %p156 = pneg %p72
        %p157 = pneg %p69
        %p158 = pneg %p100
        %p159 = pneg %p97
        %s160 = sand.u32 %s87, 1
        %s161 = sand.u32 %s87, 1
        %s162 = smul.addr %s161, 512
        %s163 = scalar_lea.vmem [#allocation2], %s162
        %s164 = smul.u32 32, %s17
        %p165 = scmp.lt.s32.totalorder %s164, 63
        %s166 = scalar_select %p165, %s164, 63
        %s167 = smul.addr %s166, 8
        %s168 = scalar_lea.vmem %s0, %s167
        %s169 = smul.u32 32, %s17
        %s170 = smul.u32 32, %s18
        %p171 = scmp.lt.s32.totalorder %s170, 63
        %s172 = scalar_select %p171, %s170, 63
        %s173 = smul.addr %s172, 8
        %s174 = scalar_lea.vmem %s1, %s173
        %s175 = smul.u32 32, %s18
        %s176 = smul.u32 32, %s17
        %s177 = smul.u32 2, %s18
        %v178 = vld [vmem:[%s168] sm:$0xff]
        %v179 = vld [vmem:[%s168 + $0x8] sm:$0xff]
        %v180 = vld [vmem:[%s168 + $0x10] sm:$0xff]
        %v181 = vld [vmem:[%s168 + $0x18] sm:$0xff]
        %v182 = vld [vmem:[%s168 + $0x20] sm:$0xff]
        %v183 = vld [vmem:[%s168 + $0x28] sm:$0xff]
        %v184 = vld [vmem:[%s168 + $0x30] sm:$0xff]
        %v185 = vld [vmem:[%s168 + $0x38] sm:$0xff]
        %v186 = vld [vmem:[%s168 + $0x40] sm:$0xff]
        %v187 = vld [vmem:[%s168 + $0x48] sm:$0xff]
        %v188 = vld [vmem:[%s168 + $0x50] sm:$0xff]
        %v189 = vld [vmem:[%s168 + $0x58] sm:$0xff]
        %v190 = vld [vmem:[%s168 + $0x60] sm:$0xff]
        %v191 = vld [vmem:[%s168 + $0x68] sm:$0xff]
        %v192 = vld [vmem:[%s168 + $0x70] sm:$0xff]
        %v193 = vld [vmem:[%s168 + $0x78] sm:$0xff]
        %v194 = vld [vmem:[%s168 + $0x80] sm:$0xff]
        %v195 = vld [vmem:[%s168 + $0x88] sm:$0xff]
        %v196 = vld [vmem:[%s168 + $0x90] sm:$0xff]
        %v197 = vld [vmem:[%s168 + $0x98] sm:$0xff]
        %v198 = vld [vmem:[%s168 + $0xa0] sm:$0xff]
        %v199 = vld [vmem:[%s168 + $0xa8] sm:$0xff]
        %v200 = vld [vmem:[%s168 + $0xb0] sm:$0xff]
        %v201 = vld [vmem:[%s168 + $0xb8] sm:$0xff]
        %v202 = vld [vmem:[%s168 + $0xc0] sm:$0xff]
        %v203 = vld [vmem:[%s168 + $0xc8] sm:$0xff]
        %v204 = vld [vmem:[%s168 + $0xd0] sm:$0xff]
        %v205 = vld [vmem:[%s168 + $0xd8] sm:$0xff]
        %v206 = vld [vmem:[%s168 + $0xe0] sm:$0xff]
        %v207 = vld [vmem:[%s168 + $0xe8] sm:$0xff]
        %v208 = vld [vmem:[%s168 + $0xf0] sm:$0xff]
        %v209 = vld [vmem:[%s168 + $0xf8] sm:$0xff]
        %v210 = vld [vmem:[%s174] sm:$0xff]
        %v211 = vld [vmem:[%s174 + $0x8] sm:$0xff]
        %v212 = vld [vmem:[%s174 + $0x10] sm:$0xff]
        %v213 = vld [vmem:[%s174 + $0x18] sm:$0xff]
        %v214 = vld [vmem:[%s174 + $0x20] sm:$0xff]
        %v215 = vld [vmem:[%s174 + $0x28] sm:$0xff]
        %v216 = vld [vmem:[%s174 + $0x30] sm:$0xff]
        %v217 = vld [vmem:[%s174 + $0x38] sm:$0xff]
        %v218 = vld [vmem:[%s174 + $0x40] sm:$0xff]
        %v219 = vld [vmem:[%s174 + $0x48] sm:$0xff]
        %v220 = vld [vmem:[%s174 + $0x50] sm:$0xff]
        %v221 = vld [vmem:[%s174 + $0x58] sm:$0xff]
        %v222 = vld [vmem:[%s174 + $0x60] sm:$0xff]
        %v223 = vld [vmem:[%s174 + $0x68] sm:$0xff]
        %v224 = vld [vmem:[%s174 + $0x70] sm:$0xff]
        %v225 = vld [vmem:[%s174 + $0x78] sm:$0xff]
        %v226 = vld [vmem:[%s174 + $0x80] sm:$0xff]
        %v227 = vld [vmem:[%s174 + $0x88] sm:$0xff]
        %v228 = vld [vmem:[%s174 + $0x90] sm:$0xff]
        %v229 = vld [vmem:[%s174 + $0x98] sm:$0xff]
        %v230 = vld [vmem:[%s174 + $0xa0] sm:$0xff]
        %v231 = vld [vmem:[%s174 + $0xa8] sm:$0xff]
        %v232 = vld [vmem:[%s174 + $0xb0] sm:$0xff]
        %v233 = vld [vmem:[%s174 + $0xb8] sm:$0xff]
        %v234 = vld [vmem:[%s174 + $0xc0] sm:$0xff]
        %v235 = vld [vmem:[%s174 + $0xc8] sm:$0xff]
        %v236 = vld [vmem:[%s174 + $0xd0] sm:$0xff]
        %v237 = vld [vmem:[%s174 + $0xd8] sm:$0xff]
        %v238 = vld [vmem:[%s174 + $0xe0] sm:$0xff]
        %v239 = vld [vmem:[%s174 + $0xe8] sm:$0xff]
        %v240 = vld [vmem:[%s174 + $0xf0] sm:$0xff]
        %v241 = vld [vmem:[%s174 + $0xf8] sm:$0xff]
        %v242 = vmul.f32 %v178, %v178
        %v243 = vmul.f32 %v179, %v179
        %v244 = vmul.f32 %v180, %v180
        %v245 = vmul.f32 %v181, %v181
        %v246 = vmul.f32 %v182, %v182
        %v247 = vmul.f32 %v183, %v183
        %v248 = vmul.f32 %v184, %v184
        %v249 = vmul.f32 %v185, %v185
        %v250 = vmul.f32 %v186, %v186
        %v251 = vmul.f32 %v187, %v187
        %v252 = vmul.f32 %v188, %v188
        %v253 = vmul.f32 %v189, %v189
        %v254 = vmul.f32 %v190, %v190
        %v255 = vmul.f32 %v191, %v191
        %v256 = vmul.f32 %v192, %v192
        %v257 = vmul.f32 %v193, %v193
        %v258 = vmul.f32 %v194, %v194
        %v259 = vmul.f32 %v195, %v195
        %v260 = vmul.f32 %v196, %v196
        %v261 = vmul.f32 %v197, %v197
        %v262 = vmul.f32 %v198, %v198
        %v263 = vmul.f32 %v199, %v199
        %v264 = vmul.f32 %v200, %v200
        %v265 = vmul.f32 %v201, %v201
        %v266 = vmul.f32 %v202, %v202
        %v267 = vmul.f32 %v203, %v203
        %v268 = vmul.f32 %v204, %v204
        %v269 = vmul.f32 %v205, %v205
        %v270 = vmul.f32 %v206, %v206
        %v271 = vmul.f32 %v207, %v207
        %v272 = vmul.f32 %v208, %v208
        %v273 = vmul.f32 %v209, %v209
        %274 = vadd.xlane.f32.xlu0 %v242
        %v275 = vpop.xlane.xlu0 %274
        %276 = vadd.xlane.f32.xlu0 %v243
        %v277 = vpop.xlane.xlu0 %276
        %278 = vadd.xlane.f32.xlu0 %v244
        %v279 = vpop.xlane.xlu0 %278
        %280 = vadd.xlane.f32.xlu0 %v245
        %v281 = vpop.xlane.xlu0 %280
        %282 = vadd.xlane.f32.xlu0 %v246
        %v283 = vpop.xlane.xlu0 %282
        %284 = vadd.xlane.f32.xlu0 %v247
        %v285 = vpop.xlane.xlu0 %284
        %286 = vadd.xlane.f32.xlu0 %v248
        %v287 = vpop.xlane.xlu0 %286
        %288 = vadd.xlane.f32.xlu0 %v249
        %v289 = vpop.xlane.xlu0 %288
        %290 = vadd.xlane.f32.xlu0 %v250
        %v291 = vpop.xlane.xlu0 %290
        %292 = vadd.xlane.f32.xlu0 %v251
        %v293 = vpop.xlane.xlu0 %292
        %294 = vadd.xlane.f32.xlu0 %v252
        %v295 = vpop.xlane.xlu0 %294
        %296 = vadd.xlane.f32.xlu0 %v253
        %v297 = vpop.xlane.xlu0 %296
        %298 = vadd.xlane.f32.xlu0 %v254
        %v299 = vpop.xlane.xlu0 %298
        %300 = vadd.xlane.f32.xlu0 %v255
        %v301 = vpop.xlane.xlu0 %300
        %302 = vadd.xlane.f32.xlu0 %v256
        %v303 = vpop.xlane.xlu0 %302
        %304 = vadd.xlane.f32.xlu0 %v257
        %v305 = vpop.xlane.xlu0 %304
        %306 = vadd.xlane.f32.xlu0 %v258
        %v307 = vpop.xlane.xlu0 %306
        %308 = vadd.xlane.f32.xlu0 %v259
        %v309 = vpop.xlane.xlu0 %308
        %310 = vadd.xlane.f32.xlu0 %v260
        %v311 = vpop.xlane.xlu0 %310
        %312 = vadd.xlane.f32.xlu0 %v261
        %v313 = vpop.xlane.xlu0 %312
        %314 = vadd.xlane.f32.xlu0 %v262
        %v315 = vpop.xlane.xlu0 %314
        %316 = vadd.xlane.f32.xlu0 %v263
        %v317 = vpop.xlane.xlu0 %316
        %318 = vadd.xlane.f32.xlu0 %v264
        %v319 = vpop.xlane.xlu0 %318
        %320 = vadd.xlane.f32.xlu0 %v265
        %v321 = vpop.xlane.xlu0 %320
        %322 = vadd.xlane.f32.xlu0 %v266
        %v323 = vpop.xlane.xlu0 %322
        %324 = vadd.xlane.f32.xlu0 %v267
        %v325 = vpop.xlane.xlu0 %324
        %326 = vadd.xlane.f32.xlu0 %v268
        %v327 = vpop.xlane.xlu0 %326
        %328 = vadd.xlane.f32.xlu0 %v269
        %v329 = vpop.xlane.xlu0 %328
        %330 = vadd.xlane.f32.xlu0 %v270
        %v331 = vpop.xlane.xlu0 %330
        %332 = vadd.xlane.f32.xlu0 %v271
        %v333 = vpop.xlane.xlu0 %332
        %334 = vadd.xlane.f32.xlu0 %v272
        %v335 = vpop.xlane.xlu0 %334
        %336 = vadd.xlane.f32.xlu0 %v273
        %v337 = vpop.xlane.xlu0 %336
        %v338 = vrsqrt.pop %v275
        %v339 = vmul.f32 %v275, %v338
        %vm340 = vcmp.eq.f32.partialorder %v275, inf
        %v341 = vsel %vm340, %v275, %v339
        %vm342 = vcmp.eq.f32.partialorder %v275, 0.0
        %v343 = vand.u32 %v275, 2147483648
        %v344 = vsel %vm342, %v343, %v341
        %v345 = vrsqrt.pop %v277
        %v346 = vmul.f32 %v277, %v345
        %vm347 = vcmp.eq.f32.partialorder %v277, inf
        %v348 = vsel %vm347, %v277, %v346
        %vm349 = vcmp.eq.f32.partialorder %v277, 0.0
        %v350 = vand.u32 %v277, 2147483648
        %v351 = vsel %vm349, %v350, %v348
        %v352 = vrsqrt.pop %v279
        %v353 = vmul.f32 %v279, %v352
        %vm354 = vcmp.eq.f32.partialorder %v279, inf
        %v355 = vsel %vm354, %v279, %v353
        %vm356 = vcmp.eq.f32.partialorder %v279, 0.0
        %v357 = vand.u32 %v279, 2147483648
        %v358 = vsel %vm356, %v357, %v355
        %v359 = vrsqrt.pop %v281
        %v360 = vmul.f32 %v281, %v359
        %vm361 = vcmp.eq.f32.partialorder %v281, inf
        %v362 = vsel %vm361, %v281, %v360
        %vm363 = vcmp.eq.f32.partialorder %v281, 0.0
        %v364 = vand.u32 %v281, 2147483648
        %v365 = vsel %vm363, %v364, %v362
        %v366 = vrsqrt.pop %v283
        %v367 = vmul.f32 %v283, %v366
        %vm368 = vcmp.eq.f32.partialorder %v283, inf
        %v369 = vsel %vm368, %v283, %v367
        %vm370 = vcmp.eq.f32.partialorder %v283, 0.0
        %v371 = vand.u32 %v283, 2147483648
        %v372 = vsel %vm370, %v371, %v369
        %v373 = vrsqrt.pop %v285
        %v374 = vmul.f32 %v285, %v373
        %vm375 = vcmp.eq.f32.partialorder %v285, inf
        %v376 = vsel %vm375, %v285, %v374
        %vm377 = vcmp.eq.f32.partialorder %v285, 0.0
        %v378 = vand.u32 %v285, 2147483648
        %v379 = vsel %vm377, %v378, %v376
        %v380 = vrsqrt.pop %v287
        %v381 = vmul.f32 %v287, %v380
        %vm382 = vcmp.eq.f32.partialorder %v287, inf
        %v383 = vsel %vm382, %v287, %v381
        %vm384 = vcmp.eq.f32.partialorder %v287, 0.0
        %v385 = vand.u32 %v287, 2147483648
        %v386 = vsel %vm384, %v385, %v383
        %v387 = vrsqrt.pop %v289
        %v388 = vmul.f32 %v289, %v387
        %vm389 = vcmp.eq.f32.partialorder %v289, inf
        %v390 = vsel %vm389, %v289, %v388
        %vm391 = vcmp.eq.f32.partialorder %v289, 0.0
        %v392 = vand.u32 %v289, 2147483648
        %v393 = vsel %vm391, %v392, %v390
        %v394 = vrsqrt.pop %v291
        %v395 = vmul.f32 %v291, %v394
        %vm396 = vcmp.eq.f32.partialorder %v291, inf
        %v397 = vsel %vm396, %v291, %v395
        %vm398 = vcmp.eq.f32.partialorder %v291, 0.0
        %v399 = vand.u32 %v291, 2147483648
        %v400 = vsel %vm398, %v399, %v397
        %v401 = vrsqrt.pop %v293
        %v402 = vmul.f32 %v293, %v401
        %vm403 = vcmp.eq.f32.partialorder %v293, inf
        %v404 = vsel %vm403, %v293, %v402
        %vm405 = vcmp.eq.f32.partialorder %v293, 0.0
        %v406 = vand.u32 %v293, 2147483648
        %v407 = vsel %vm405, %v406, %v404
        %v408 = vrsqrt.pop %v295
        %v409 = vmul.f32 %v295, %v408
        %vm410 = vcmp.eq.f32.partialorder %v295, inf
        %v411 = vsel %vm410, %v295, %v409
        %vm412 = vcmp.eq.f32.partialorder %v295, 0.0
        %v413 = vand.u32 %v295, 2147483648
        %v414 = vsel %vm412, %v413, %v411
        %v415 = vrsqrt.pop %v297
        %v416 = vmul.f32 %v297, %v415
        %vm417 = vcmp.eq.f32.partialorder %v297, inf
        %v418 = vsel %vm417, %v297, %v416
        %vm419 = vcmp.eq.f32.partialorder %v297, 0.0
        %v420 = vand.u32 %v297, 2147483648
        %v421 = vsel %vm419, %v420, %v418
        %v422 = vrsqrt.pop %v299
        %v423 = vmul.f32 %v299, %v422
        %vm424 = vcmp.eq.f32.partialorder %v299, inf
        %v425 = vsel %vm424, %v299, %v423
        %vm426 = vcmp.eq.f32.partialorder %v299, 0.0
        %v427 = vand.u32 %v299, 2147483648
        %v428 = vsel %vm426, %v427, %v425
        %v429 = vrsqrt.pop %v301
        %v430 = vmul.f32 %v301, %v429
        %vm431 = vcmp.eq.f32.partialorder %v301, inf
        %v432 = vsel %vm431, %v301, %v430
        %vm433 = vcmp.eq.f32.partialorder %v301, 0.0
        %v434 = vand.u32 %v301, 2147483648
        %v435 = vsel %vm433, %v434, %v432
        %v436 = vrsqrt.pop %v303
        %v437 = vmul.f32 %v303, %v436
        %vm438 = vcmp.eq.f32.partialorder %v303, inf
        %v439 = vsel %vm438, %v303, %v437
        %vm440 = vcmp.eq.f32.partialorder %v303, 0.0
        %v441 = vand.u32 %v303, 2147483648
        %v442 = vsel %vm440, %v441, %v439
        %v443 = vrsqrt.pop %v305
        %v444 = vmul.f32 %v305, %v443
        %vm445 = vcmp.eq.f32.partialorder %v305, inf
        %v446 = vsel %vm445, %v305, %v444
        %vm447 = vcmp.eq.f32.partialorder %v305, 0.0
        %v448 = vand.u32 %v305, 2147483648
        %v449 = vsel %vm447, %v448, %v446
        %v450 = vrsqrt.pop %v307
        %v451 = vmul.f32 %v307, %v450
        %vm452 = vcmp.eq.f32.partialorder %v307, inf
        %v453 = vsel %vm452, %v307, %v451
        %vm454 = vcmp.eq.f32.partialorder %v307, 0.0
        %v455 = vand.u32 %v307, 2147483648
        %v456 = vsel %vm454, %v455, %v453
        %v457 = vrsqrt.pop %v309
        %v458 = vmul.f32 %v309, %v457
        %vm459 = vcmp.eq.f32.partialorder %v309, inf
        %v460 = vsel %vm459, %v309, %v458
        %vm461 = vcmp.eq.f32.partialorder %v309, 0.0
        %v462 = vand.u32 %v309, 2147483648
        %v463 = vsel %vm461, %v462, %v460
        %v464 = vrsqrt.pop %v311
        %v465 = vmul.f32 %v311, %v464
        %vm466 = vcmp.eq.f32.partialorder %v311, inf
        %v467 = vsel %vm466, %v311, %v465
        %vm468 = vcmp.eq.f32.partialorder %v311, 0.0
        %v469 = vand.u32 %v311, 2147483648
        %v470 = vsel %vm468, %v469, %v467
        %v471 = vrsqrt.pop %v313
        %v472 = vmul.f32 %v313, %v471
        %vm473 = vcmp.eq.f32.partialorder %v313, inf
        %v474 = vsel %vm473, %v313, %v472
        %vm475 = vcmp.eq.f32.partialorder %v313, 0.0
        %v476 = vand.u32 %v313, 2147483648
        %v477 = vsel %vm475, %v476, %v474
        %v478 = vrsqrt.pop %v315
        %v479 = vmul.f32 %v315, %v478
        %vm480 = vcmp.eq.f32.partialorder %v315, inf
        %v481 = vsel %vm480, %v315, %v479
        %vm482 = vcmp.eq.f32.partialorder %v315, 0.0
        %v483 = vand.u32 %v315, 2147483648
        %v484 = vsel %vm482, %v483, %v481
        %v485 = vrsqrt.pop %v317
        %v486 = vmul.f32 %v317, %v485
        %vm487 = vcmp.eq.f32.partialorder %v317, inf
        %v488 = vsel %vm487, %v317, %v486
        %vm489 = vcmp.eq.f32.partialorder %v317, 0.0
        %v490 = vand.u32 %v317, 2147483648
        %v491 = vsel %vm489, %v490, %v488
        %v492 = vrsqrt.pop %v319
        %v493 = vmul.f32 %v319, %v492
        %vm494 = vcmp.eq.f32.partialorder %v319, inf
        %v495 = vsel %vm494, %v319, %v493
        %vm496 = vcmp.eq.f32.partialorder %v319, 0.0
        %v497 = vand.u32 %v319, 2147483648
        %v498 = vsel %vm496, %v497, %v495
        %v499 = vrsqrt.pop %v321
        %v500 = vmul.f32 %v321, %v499
        %vm501 = vcmp.eq.f32.partialorder %v321, inf
        %v502 = vsel %vm501, %v321, %v500
        %vm503 = vcmp.eq.f32.partialorder %v321, 0.0
        %v504 = vand.u32 %v321, 2147483648
        %v505 = vsel %vm503, %v504, %v502
        %v506 = vrsqrt.pop %v323
        %v507 = vmul.f32 %v323, %v506
        %vm508 = vcmp.eq.f32.partialorder %v323, inf
        %v509 = vsel %vm508, %v323, %v507
        %vm510 = vcmp.eq.f32.partialorder %v323, 0.0
        %v511 = vand.u32 %v323, 2147483648
        %v512 = vsel %vm510, %v511, %v509
        %v513 = vrsqrt.pop %v325
        %v514 = vmul.f32 %v325, %v513
        %vm515 = vcmp.eq.f32.partialorder %v325, inf
        %v516 = vsel %vm515, %v325, %v514
        %vm517 = vcmp.eq.f32.partialorder %v325, 0.0
        %v518 = vand.u32 %v325, 2147483648
        %v519 = vsel %vm517, %v518, %v516
        %v520 = vrsqrt.pop %v327
        %v521 = vmul.f32 %v327, %v520
        %vm522 = vcmp.eq.f32.partialorder %v327, inf
        %v523 = vsel %vm522, %v327, %v521
        %vm524 = vcmp.eq.f32.partialorder %v327, 0.0
        %v525 = vand.u32 %v327, 2147483648
        %v526 = vsel %vm524, %v525, %v523
        %v527 = vrsqrt.pop %v329
        %v528 = vmul.f32 %v329, %v527
        %vm529 = vcmp.eq.f32.partialorder %v329, inf
        %v530 = vsel %vm529, %v329, %v528
        %vm531 = vcmp.eq.f32.partialorder %v329, 0.0
        %v532 = vand.u32 %v329, 2147483648
        %v533 = vsel %vm531, %v532, %v530
        %v534 = vrsqrt.pop %v331
        %v535 = vmul.f32 %v331, %v534
        %vm536 = vcmp.eq.f32.partialorder %v331, inf
        %v537 = vsel %vm536, %v331, %v535
        %vm538 = vcmp.eq.f32.partialorder %v331, 0.0
        %v539 = vand.u32 %v331, 2147483648
        %v540 = vsel %vm538, %v539, %v537
        %v541 = vrsqrt.pop %v333
        %v542 = vmul.f32 %v333, %v541
        %vm543 = vcmp.eq.f32.partialorder %v333, inf
        %v544 = vsel %vm543, %v333, %v542
        %vm545 = vcmp.eq.f32.partialorder %v333, 0.0
        %v546 = vand.u32 %v333, 2147483648
        %v547 = vsel %vm545, %v546, %v544
        %v548 = vrsqrt.pop %v335
        %v549 = vmul.f32 %v335, %v548
        %vm550 = vcmp.eq.f32.partialorder %v335, inf
        %v551 = vsel %vm550, %v335, %v549
        %vm552 = vcmp.eq.f32.partialorder %v335, 0.0
        %v553 = vand.u32 %v335, 2147483648
        %v554 = vsel %vm552, %v553, %v551
        %v555 = vrsqrt.pop %v337
        %v556 = vmul.f32 %v337, %v555
        %vm557 = vcmp.eq.f32.partialorder %v337, inf
        %v558 = vsel %vm557, %v337, %v556
        %vm559 = vcmp.eq.f32.partialorder %v337, 0.0
        %v560 = vand.u32 %v337, 2147483648
        %v561 = vsel %vm559, %v560, %v558
        %v562 = vmul.f32 %v210, %v210
        %v563 = vmul.f32 %v211, %v211
        %v564 = vmul.f32 %v212, %v212
        %v565 = vmul.f32 %v213, %v213
        %v566 = vmul.f32 %v214, %v214
        %v567 = vmul.f32 %v215, %v215
        %v568 = vmul.f32 %v216, %v216
        %v569 = vmul.f32 %v217, %v217
        %v570 = vmul.f32 %v218, %v218
        %v571 = vmul.f32 %v219, %v219
        %v572 = vmul.f32 %v220, %v220
        %v573 = vmul.f32 %v221, %v221
        %v574 = vmul.f32 %v222, %v222
        %v575 = vmul.f32 %v223, %v223
        %v576 = vmul.f32 %v224, %v224
        %v577 = vmul.f32 %v225, %v225
        %v578 = vmul.f32 %v226, %v226
        %v579 = vmul.f32 %v227, %v227
        %v580 = vmul.f32 %v228, %v228
        %v581 = vmul.f32 %v229, %v229
        %v582 = vmul.f32 %v230, %v230
        %v583 = vmul.f32 %v231, %v231
        %v584 = vmul.f32 %v232, %v232
        %v585 = vmul.f32 %v233, %v233
        %v586 = vmul.f32 %v234, %v234
        %v587 = vmul.f32 %v235, %v235
        %v588 = vmul.f32 %v236, %v236
        %v589 = vmul.f32 %v237, %v237
        %v590 = vmul.f32 %v238, %v238
        %v591 = vmul.f32 %v239, %v239
        %v592 = vmul.f32 %v240, %v240
        %v593 = vmul.f32 %v241, %v241
        %594 = vadd.xlane.f32.xlu0 %v562
        %v595 = vpop.xlane.xlu0 %594
        %596 = vadd.xlane.f32.xlu0 %v563
        %v597 = vpop.xlane.xlu0 %596
        %598 = vadd.xlane.f32.xlu0 %v564
        %v599 = vpop.xlane.xlu0 %598
        %600 = vadd.xlane.f32.xlu0 %v565
        %v601 = vpop.xlane.xlu0 %600
        %602 = vadd.xlane.f32.xlu0 %v566
        %v603 = vpop.xlane.xlu0 %602
        %604 = vadd.xlane.f32.xlu0 %v567
        %v605 = vpop.xlane.xlu0 %604
        %606 = vadd.xlane.f32.xlu0 %v568
        %v607 = vpop.xlane.xlu0 %606
        %608 = vadd.xlane.f32.xlu0 %v569
        %v609 = vpop.xlane.xlu0 %608
        %610 = vadd.xlane.f32.xlu0 %v570
        %v611 = vpop.xlane.xlu0 %610
        %612 = vadd.xlane.f32.xlu0 %v571
        %v613 = vpop.xlane.xlu0 %612
        %614 = vadd.xlane.f32.xlu0 %v572
        %v615 = vpop.xlane.xlu0 %614
        %616 = vadd.xlane.f32.xlu0 %v573
        %v617 = vpop.xlane.xlu0 %616
        %618 = vadd.xlane.f32.xlu0 %v574
        %v619 = vpop.xlane.xlu0 %618
        %620 = vadd.xlane.f32.xlu0 %v575
        %v621 = vpop.xlane.xlu0 %620
        %622 = vadd.xlane.f32.xlu0 %v576
        %v623 = vpop.xlane.xlu0 %622
        %624 = vadd.xlane.f32.xlu0 %v577
        %v625 = vpop.xlane.xlu0 %624
        %626 = vadd.xlane.f32.xlu0 %v578
        %v627 = vpop.xlane.xlu0 %626
        %628 = vadd.xlane.f32.xlu0 %v579
        %v629 = vpop.xlane.xlu0 %628
        %630 = vadd.xlane.f32.xlu0 %v580
        %v631 = vpop.xlane.xlu0 %630
        %632 = vadd.xlane.f32.xlu0 %v581
        %v633 = vpop.xlane.xlu0 %632
        %634 = vadd.xlane.f32.xlu0 %v582
        %v635 = vpop.xlane.xlu0 %634
        %636 = vadd.xlane.f32.xlu0 %v583
        %v637 = vpop.xlane.xlu0 %636
        %638 = vadd.xlane.f32.xlu0 %v584
        %v639 = vpop.xlane.xlu0 %638
        %640 = vadd.xlane.f32.xlu0 %v585
        %v641 = vpop.xlane.xlu0 %640
        %642 = vadd.xlane.f32.xlu0 %v586
        %v643 = vpop.xlane.xlu0 %642
        %644 = vadd.xlane.f32.xlu0 %v587
        %v645 = vpop.xlane.xlu0 %644
        %646 = vadd.xlane.f32.xlu0 %v588
        %v647 = vpop.xlane.xlu0 %646
        %648 = vadd.xlane.f32.xlu0 %v589
        %v649 = vpop.xlane.xlu0 %648
        %650 = vadd.xlane.f32.xlu0 %v590
        %v651 = vpop.xlane.xlu0 %650
        %652 = vadd.xlane.f32.xlu0 %v591
        %v653 = vpop.xlane.xlu0 %652
        %654 = vadd.xlane.f32.xlu0 %v592
        %v655 = vpop.xlane.xlu0 %654
        %656 = vadd.xlane.f32.xlu0 %v593
        %v657 = vpop.xlane.xlu0 %656
        %v658 = vrsqrt.pop %v595
        %v659 = vmul.f32 %v595, %v658
        %vm660 = vcmp.eq.f32.partialorder %v595, inf
        %v661 = vsel %vm660, %v595, %v659
        %vm662 = vcmp.eq.f32.partialorder %v595, 0.0
        %v663 = vand.u32 %v595, 2147483648
        %v664 = vsel %vm662, %v663, %v661
        %v665 = vrsqrt.pop %v597
        %v666 = vmul.f32 %v597, %v665
        %vm667 = vcmp.eq.f32.partialorder %v597, inf
        %v668 = vsel %vm667, %v597, %v666
        %vm669 = vcmp.eq.f32.partialorder %v597, 0.0
        %v670 = vand.u32 %v597, 2147483648
        %v671 = vsel %vm669, %v670, %v668
        %v672 = vrsqrt.pop %v599
        %v673 = vmul.f32 %v599, %v672
        %vm674 = vcmp.eq.f32.partialorder %v599, inf
        %v675 = vsel %vm674, %v599, %v673
        %vm676 = vcmp.eq.f32.partialorder %v599, 0.0
        %v677 = vand.u32 %v599, 2147483648
        %v678 = vsel %vm676, %v677, %v675
        %v679 = vrsqrt.pop %v601
        %v680 = vmul.f32 %v601, %v679
        %vm681 = vcmp.eq.f32.partialorder %v601, inf
        %v682 = vsel %vm681, %v601, %v680
        %vm683 = vcmp.eq.f32.partialorder %v601, 0.0
        %v684 = vand.u32 %v601, 2147483648
        %v685 = vsel %vm683, %v684, %v682
        %v686 = vrsqrt.pop %v603
        %v687 = vmul.f32 %v603, %v686
        %vm688 = vcmp.eq.f32.partialorder %v603, inf
        %v689 = vsel %vm688, %v603, %v687
        %vm690 = vcmp.eq.f32.partialorder %v603, 0.0
        %v691 = vand.u32 %v603, 2147483648
        %v692 = vsel %vm690, %v691, %v689
        %v693 = vrsqrt.pop %v605
        %v694 = vmul.f32 %v605, %v693
        %vm695 = vcmp.eq.f32.partialorder %v605, inf
        %v696 = vsel %vm695, %v605, %v694
        %vm697 = vcmp.eq.f32.partialorder %v605, 0.0
        %v698 = vand.u32 %v605, 2147483648
        %v699 = vsel %vm697, %v698, %v696
        %v700 = vrsqrt.pop %v607
        %v701 = vmul.f32 %v607, %v700
        %vm702 = vcmp.eq.f32.partialorder %v607, inf
        %v703 = vsel %vm702, %v607, %v701
        %vm704 = vcmp.eq.f32.partialorder %v607, 0.0
        %v705 = vand.u32 %v607, 2147483648
        %v706 = vsel %vm704, %v705, %v703
        %v707 = vrsqrt.pop %v609
        %v708 = vmul.f32 %v609, %v707
        %vm709 = vcmp.eq.f32.partialorder %v609, inf
        %v710 = vsel %vm709, %v609, %v708
        %vm711 = vcmp.eq.f32.partialorder %v609, 0.0
        %v712 = vand.u32 %v609, 2147483648
        %v713 = vsel %vm711, %v712, %v710
        %v714 = vrsqrt.pop %v611
        %v715 = vmul.f32 %v611, %v714
        %vm716 = vcmp.eq.f32.partialorder %v611, inf
        %v717 = vsel %vm716, %v611, %v715
        %vm718 = vcmp.eq.f32.partialorder %v611, 0.0
        %v719 = vand.u32 %v611, 2147483648
        %v720 = vsel %vm718, %v719, %v717
        %v721 = vrsqrt.pop %v613
        %v722 = vmul.f32 %v613, %v721
        %vm723 = vcmp.eq.f32.partialorder %v613, inf
        %v724 = vsel %vm723, %v613, %v722
        %vm725 = vcmp.eq.f32.partialorder %v613, 0.0
        %v726 = vand.u32 %v613, 2147483648
        %v727 = vsel %vm725, %v726, %v724
        %v728 = vrsqrt.pop %v615
        %v729 = vmul.f32 %v615, %v728
        %vm730 = vcmp.eq.f32.partialorder %v615, inf
        %v731 = vsel %vm730, %v615, %v729
        %vm732 = vcmp.eq.f32.partialorder %v615, 0.0
        %v733 = vand.u32 %v615, 2147483648
        %v734 = vsel %vm732, %v733, %v731
        %v735 = vrsqrt.pop %v617
        %v736 = vmul.f32 %v617, %v735
        %vm737 = vcmp.eq.f32.partialorder %v617, inf
        %v738 = vsel %vm737, %v617, %v736
        %vm739 = vcmp.eq.f32.partialorder %v617, 0.0
        %v740 = vand.u32 %v617, 2147483648
        %v741 = vsel %vm739, %v740, %v738
        %v742 = vrsqrt.pop %v619
        %v743 = vmul.f32 %v619, %v742
        %vm744 = vcmp.eq.f32.partialorder %v619, inf
        %v745 = vsel %vm744, %v619, %v743
        %vm746 = vcmp.eq.f32.partialorder %v619, 0.0
        %v747 = vand.u32 %v619, 2147483648
        %v748 = vsel %vm746, %v747, %v745
        %v749 = vrsqrt.pop %v621
        %v750 = vmul.f32 %v621, %v749
        %vm751 = vcmp.eq.f32.partialorder %v621, inf
        %v752 = vsel %vm751, %v621, %v750
        %vm753 = vcmp.eq.f32.partialorder %v621, 0.0
        %v754 = vand.u32 %v621, 2147483648
        %v755 = vsel %vm753, %v754, %v752
        %v756 = vrsqrt.pop %v623
        %v757 = vmul.f32 %v623, %v756
        %vm758 = vcmp.eq.f32.partialorder %v623, inf
        %v759 = vsel %vm758, %v623, %v757
        %vm760 = vcmp.eq.f32.partialorder %v623, 0.0
        %v761 = vand.u32 %v623, 2147483648
        %v762 = vsel %vm760, %v761, %v759
        %v763 = vrsqrt.pop %v625
        %v764 = vmul.f32 %v625, %v763
        %vm765 = vcmp.eq.f32.partialorder %v625, inf
        %v766 = vsel %vm765, %v625, %v764
        %vm767 = vcmp.eq.f32.partialorder %v625, 0.0
        %v768 = vand.u32 %v625, 2147483648
        %v769 = vsel %vm767, %v768, %v766
        %v770 = vrsqrt.pop %v627
        %v771 = vmul.f32 %v627, %v770
        %vm772 = vcmp.eq.f32.partialorder %v627, inf
        %v773 = vsel %vm772, %v627, %v771
        %vm774 = vcmp.eq.f32.partialorder %v627, 0.0
        %v775 = vand.u32 %v627, 2147483648
        %v776 = vsel %vm774, %v775, %v773
        %v777 = vrsqrt.pop %v629
        %v778 = vmul.f32 %v629, %v777
        %vm779 = vcmp.eq.f32.partialorder %v629, inf
        %v780 = vsel %vm779, %v629, %v778
        %vm781 = vcmp.eq.f32.partialorder %v629, 0.0
        %v782 = vand.u32 %v629, 2147483648
        %v783 = vsel %vm781, %v782, %v780
        %v784 = vrsqrt.pop %v631
        %v785 = vmul.f32 %v631, %v784
        %vm786 = vcmp.eq.f32.partialorder %v631, inf
        %v787 = vsel %vm786, %v631, %v785
        %vm788 = vcmp.eq.f32.partialorder %v631, 0.0
        %v789 = vand.u32 %v631, 2147483648
        %v790 = vsel %vm788, %v789, %v787
        %v791 = vrsqrt.pop %v633
        %v792 = vmul.f32 %v633, %v791
        %vm793 = vcmp.eq.f32.partialorder %v633, inf
        %v794 = vsel %vm793, %v633, %v792
        %vm795 = vcmp.eq.f32.partialorder %v633, 0.0
        %v796 = vand.u32 %v633, 2147483648
        %v797 = vsel %vm795, %v796, %v794
        %v798 = vrsqrt.pop %v635
        %v799 = vmul.f32 %v635, %v798
        %vm800 = vcmp.eq.f32.partialorder %v635, inf
        %v801 = vsel %vm800, %v635, %v799
        %vm802 = vcmp.eq.f32.partialorder %v635, 0.0
        %v803 = vand.u32 %v635, 2147483648
        %v804 = vsel %vm802, %v803, %v801
        %v805 = vrsqrt.pop %v637
        %v806 = vmul.f32 %v637, %v805
        %vm807 = vcmp.eq.f32.partialorder %v637, inf
        %v808 = vsel %vm807, %v637, %v806
        %vm809 = vcmp.eq.f32.partialorder %v637, 0.0
        %v810 = vand.u32 %v637, 2147483648
        %v811 = vsel %vm809, %v810, %v808
        %v812 = vrsqrt.pop %v639
        %v813 = vmul.f32 %v639, %v812
        %vm814 = vcmp.eq.f32.partialorder %v639, inf
        %v815 = vsel %vm814, %v639, %v813
        %vm816 = vcmp.eq.f32.partialorder %v639, 0.0
        %v817 = vand.u32 %v639, 2147483648
        %v818 = vsel %vm816, %v817, %v815
        %v819 = vrsqrt.pop %v641
        %v820 = vmul.f32 %v641, %v819
        %vm821 = vcmp.eq.f32.partialorder %v641, inf
        %v822 = vsel %vm821, %v641, %v820
        %vm823 = vcmp.eq.f32.partialorder %v641, 0.0
        %v824 = vand.u32 %v641, 2147483648
        %v825 = vsel %vm823, %v824, %v822
        %v826 = vrsqrt.pop %v643
        %v827 = vmul.f32 %v643, %v826
        %vm828 = vcmp.eq.f32.partialorder %v643, inf
        %v829 = vsel %vm828, %v643, %v827
        %vm830 = vcmp.eq.f32.partialorder %v643, 0.0
        %v831 = vand.u32 %v643, 2147483648
        %v832 = vsel %vm830, %v831, %v829
        %v833 = vrsqrt.pop %v645
        %v834 = vmul.f32 %v645, %v833
        %vm835 = vcmp.eq.f32.partialorder %v645, inf
        %v836 = vsel %vm835, %v645, %v834
        %vm837 = vcmp.eq.f32.partialorder %v645, 0.0
        %v838 = vand.u32 %v645, 2147483648
        %v839 = vsel %vm837, %v838, %v836
        %v840 = vrsqrt.pop %v647
        %v841 = vmul.f32 %v647, %v840
        %vm842 = vcmp.eq.f32.partialorder %v647, inf
        %v843 = vsel %vm842, %v647, %v841
        %vm844 = vcmp.eq.f32.partialorder %v647, 0.0
        %v845 = vand.u32 %v647, 2147483648
        %v846 = vsel %vm844, %v845, %v843
        %v847 = vrsqrt.pop %v649
        %v848 = vmul.f32 %v649, %v847
        %vm849 = vcmp.eq.f32.partialorder %v649, inf
        %v850 = vsel %vm849, %v649, %v848
        %vm851 = vcmp.eq.f32.partialorder %v649, 0.0
        %v852 = vand.u32 %v649, 2147483648
        %v853 = vsel %vm851, %v852, %v850
        %v854 = vrsqrt.pop %v651
        %v855 = vmul.f32 %v651, %v854
        %vm856 = vcmp.eq.f32.partialorder %v651, inf
        %v857 = vsel %vm856, %v651, %v855
        %vm858 = vcmp.eq.f32.partialorder %v651, 0.0
        %v859 = vand.u32 %v651, 2147483648
        %v860 = vsel %vm858, %v859, %v857
        %v861 = vrsqrt.pop %v653
        %v862 = vmul.f32 %v653, %v861
        %vm863 = vcmp.eq.f32.partialorder %v653, inf
        %v864 = vsel %vm863, %v653, %v862
        %vm865 = vcmp.eq.f32.partialorder %v653, 0.0
        %v866 = vand.u32 %v653, 2147483648
        %v867 = vsel %vm865, %v866, %v864
        %v868 = vrsqrt.pop %v655
        %v869 = vmul.f32 %v655, %v868
        %vm870 = vcmp.eq.f32.partialorder %v655, inf
        %v871 = vsel %vm870, %v655, %v869
        %vm872 = vcmp.eq.f32.partialorder %v655, 0.0
        %v873 = vand.u32 %v655, 2147483648
        %v874 = vsel %vm872, %v873, %v871
        %v875 = vrsqrt.pop %v657
        %v876 = vmul.f32 %v657, %v875
        %vm877 = vcmp.eq.f32.partialorder %v657, inf
        %v878 = vsel %vm877, %v657, %v876
        %vm879 = vcmp.eq.f32.partialorder %v657, 0.0
        %v880 = vand.u32 %v657, 2147483648
        %v881 = vsel %vm879, %v880, %v878
        %v882 = vadd.f32 %v344, 1e-06
        %v883 = vadd.f32 %v351, 1e-06
        %v884 = vadd.f32 %v358, 1e-06
        %v885 = vadd.f32 %v365, 1e-06
        %v886 = vadd.f32 %v372, 1e-06
        %v887 = vadd.f32 %v379, 1e-06
        %v888 = vadd.f32 %v386, 1e-06
        %v889 = vadd.f32 %v393, 1e-06
        %v890 = vadd.f32 %v400, 1e-06
        %v891 = vadd.f32 %v407, 1e-06
        %v892 = vadd.f32 %v414, 1e-06
        %v893 = vadd.f32 %v421, 1e-06
        %v894 = vadd.f32 %v428, 1e-06
        %v895 = vadd.f32 %v435, 1e-06
        %v896 = vadd.f32 %v442, 1e-06
        %v897 = vadd.f32 %v449, 1e-06
        %v898 = vadd.f32 %v456, 1e-06
        %v899 = vadd.f32 %v463, 1e-06
        %v900 = vadd.f32 %v470, 1e-06
        %v901 = vadd.f32 %v477, 1e-06
        %v902 = vadd.f32 %v484, 1e-06
        %v903 = vadd.f32 %v491, 1e-06
        %v904 = vadd.f32 %v498, 1e-06
        %v905 = vadd.f32 %v505, 1e-06
        %v906 = vadd.f32 %v512, 1e-06
        %v907 = vadd.f32 %v519, 1e-06
        %v908 = vadd.f32 %v526, 1e-06
        %v909 = vadd.f32 %v533, 1e-06
        %v910 = vadd.f32 %v540, 1e-06
        %v911 = vadd.f32 %v547, 1e-06
        %v912 = vadd.f32 %v554, 1e-06
        %v913 = vadd.f32 %v561, 1e-06
        %v914 = vrcp.pop %v882
        %v915 = vmul.f32 %v178, %v914
        %v916 = vrcp.pop %v883
        %v917 = vmul.f32 %v179, %v916
        %v918 = vrcp.pop %v884
        %v919 = vmul.f32 %v180, %v918
        %v920 = vrcp.pop %v885
        %v921 = vmul.f32 %v181, %v920
        %v922 = vrcp.pop %v886
        %v923 = vmul.f32 %v182, %v922
        %v924 = vrcp.pop %v887
        %v925 = vmul.f32 %v183, %v924
        %v926 = vrcp.pop %v888
        %v927 = vmul.f32 %v184, %v926
        %v928 = vrcp.pop %v889
        %v929 = vmul.f32 %v185, %v928
        %v930 = vrcp.pop %v890
        %v931 = vmul.f32 %v186, %v930
        %v932 = vrcp.pop %v891
        %v933 = vmul.f32 %v187, %v932
        %v934 = vrcp.pop %v892
        %v935 = vmul.f32 %v188, %v934
        %v936 = vrcp.pop %v893
        %v937 = vmul.f32 %v189, %v936
        %v938 = vrcp.pop %v894
        %v939 = vmul.f32 %v190, %v938
        %v940 = vrcp.pop %v895
        %v941 = vmul.f32 %v191, %v940
        %v942 = vrcp.pop %v896
        %v943 = vmul.f32 %v192, %v942
        %v944 = vrcp.pop %v897
        %v945 = vmul.f32 %v193, %v944
        %v946 = vrcp.pop %v898
        %v947 = vmul.f32 %v194, %v946
        %v948 = vrcp.pop %v899
        %v949 = vmul.f32 %v195, %v948
        %v950 = vrcp.pop %v900
        %v951 = vmul.f32 %v196, %v950
        %v952 = vrcp.pop %v901
        %v953 = vmul.f32 %v197, %v952
        %v954 = vrcp.pop %v902
        %v955 = vmul.f32 %v198, %v954
        %v956 = vrcp.pop %v903
        %v957 = vmul.f32 %v199, %v956
        %v958 = vrcp.pop %v904
        %v959 = vmul.f32 %v200, %v958
        %v960 = vrcp.pop %v905
        %v961 = vmul.f32 %v201, %v960
        %v962 = vrcp.pop %v906
        %v963 = vmul.f32 %v202, %v962
        %v964 = vrcp.pop %v907
        %v965 = vmul.f32 %v203, %v964
        %v966 = vrcp.pop %v908
        %v967 = vmul.f32 %v204, %v966
        %v968 = vrcp.pop %v909
        %v969 = vmul.f32 %v205, %v968
        %v970 = vrcp.pop %v910
        %v971 = vmul.f32 %v206, %v970
        %v972 = vrcp.pop %v911
        %v973 = vmul.f32 %v207, %v972
        %v974 = vrcp.pop %v912
        %v975 = vmul.f32 %v208, %v974
        %v976 = vrcp.pop %v913
        %v977 = vmul.f32 %v209, %v976
        %v978 = vadd.f32 %v664, 1e-06
        %v979 = vadd.f32 %v671, 1e-06
        %v980 = vadd.f32 %v678, 1e-06
        %v981 = vadd.f32 %v685, 1e-06
        %v982 = vadd.f32 %v692, 1e-06
        %v983 = vadd.f32 %v699, 1e-06
        %v984 = vadd.f32 %v706, 1e-06
        %v985 = vadd.f32 %v713, 1e-06
        %v986 = vadd.f32 %v720, 1e-06
        %v987 = vadd.f32 %v727, 1e-06
        %v988 = vadd.f32 %v734, 1e-06
        %v989 = vadd.f32 %v741, 1e-06
        %v990 = vadd.f32 %v748, 1e-06
        %v991 = vadd.f32 %v755, 1e-06
        %v992 = vadd.f32 %v762, 1e-06
        %v993 = vadd.f32 %v769, 1e-06
        %v994 = vadd.f32 %v776, 1e-06
        %v995 = vadd.f32 %v783, 1e-06
        %v996 = vadd.f32 %v790, 1e-06
        %v997 = vadd.f32 %v797, 1e-06
        %v998 = vadd.f32 %v804, 1e-06
        %v999 = vadd.f32 %v811, 1e-06
        %v1000 = vadd.f32 %v818, 1e-06
        %v1001 = vadd.f32 %v825, 1e-06
        %v1002 = vadd.f32 %v832, 1e-06
        %v1003 = vadd.f32 %v839, 1e-06
        %v1004 = vadd.f32 %v846, 1e-06
        %v1005 = vadd.f32 %v853, 1e-06
        %v1006 = vadd.f32 %v860, 1e-06
        %v1007 = vadd.f32 %v867, 1e-06
        %v1008 = vadd.f32 %v874, 1e-06
        %v1009 = vadd.f32 %v881, 1e-06
        %v1010 = vrcp.pop %v978
        %v1011 = vmul.f32 %v210, %v1010
        %v1012 = vrcp.pop %v979
        %v1013 = vmul.f32 %v211, %v1012
        %v1014 = vrcp.pop %v980
        %v1015 = vmul.f32 %v212, %v1014
        %v1016 = vrcp.pop %v981
        %v1017 = vmul.f32 %v213, %v1016
        %v1018 = vrcp.pop %v982
        %v1019 = vmul.f32 %v214, %v1018
        %v1020 = vrcp.pop %v983
        %v1021 = vmul.f32 %v215, %v1020
        %v1022 = vrcp.pop %v984
        %v1023 = vmul.f32 %v216, %v1022
        %v1024 = vrcp.pop %v985
        %v1025 = vmul.f32 %v217, %v1024
        %v1026 = vrcp.pop %v986
        %v1027 = vmul.f32 %v218, %v1026
        %v1028 = vrcp.pop %v987
        %v1029 = vmul.f32 %v219, %v1028
        %v1030 = vrcp.pop %v988
        %v1031 = vmul.f32 %v220, %v1030
        %v1032 = vrcp.pop %v989
        %v1033 = vmul.f32 %v221, %v1032
        %v1034 = vrcp.pop %v990
        %v1035 = vmul.f32 %v222, %v1034
        %v1036 = vrcp.pop %v991
        %v1037 = vmul.f32 %v223, %v1036
        %v1038 = vrcp.pop %v992
        %v1039 = vmul.f32 %v224, %v1038
        %v1040 = vrcp.pop %v993
        %v1041 = vmul.f32 %v225, %v1040
        %v1042 = vrcp.pop %v994
        %v1043 = vmul.f32 %v226, %v1042
        %v1044 = vrcp.pop %v995
        %v1045 = vmul.f32 %v227, %v1044
        %v1046 = vrcp.pop %v996
        %v1047 = vmul.f32 %v228, %v1046
        %v1048 = vrcp.pop %v997
        %v1049 = vmul.f32 %v229, %v1048
        %v1050 = vrcp.pop %v998
        %v1051 = vmul.f32 %v230, %v1050
        %v1052 = vrcp.pop %v999
        %v1053 = vmul.f32 %v231, %v1052
        %v1054 = vrcp.pop %v1000
        %v1055 = vmul.f32 %v232, %v1054
        %v1056 = vrcp.pop %v1001
        %v1057 = vmul.f32 %v233, %v1056
        %v1058 = vrcp.pop %v1002
        %v1059 = vmul.f32 %v234, %v1058
        %v1060 = vrcp.pop %v1003
        %v1061 = vmul.f32 %v235, %v1060
        %v1062 = vrcp.pop %v1004
        %v1063 = vmul.f32 %v236, %v1062
        %v1064 = vrcp.pop %v1005
        %v1065 = vmul.f32 %v237, %v1064
        %v1066 = vrcp.pop %v1006
        %v1067 = vmul.f32 %v238, %v1066
        %v1068 = vrcp.pop %v1007
        %v1069 = vmul.f32 %v239, %v1068
        %v1070 = vrcp.pop %v1008
        %v1071 = vmul.f32 %v240, %v1070
        %v1072 = vrcp.pop %v1009
        %v1073 = vmul.f32 %v241, %v1072
        %1074 = vmatprep.subr.mxu0 0.0
        %1075 = vmatpush1.xpose.msra.mxu0 %v1041
        %1076 = vmatprep.subr.mxu0 0.0
        %1077 = vmatpush1.xpose.msra.mxu0 %v1039
        %1078 = vmatprep.subr.mxu0 0.0
        %1079 = vmatpush1.xpose.msra.mxu0 %v1037
        %1080 = vmatprep.subr.mxu0 0.0
        %1081 = vmatpush1.xpose.msra.mxu0 %v1035
        %1082 = vmatprep.subr.mxu0 0.0
        %1083 = vmatpush1.xpose.msra.mxu0 %v1033
        %1084 = vmatprep.subr.mxu0 0.0
        %1085 = vmatpush1.xpose.msra.mxu0 %v1031
        %1086 = vmatprep.subr.mxu0 0.0
        %1087 = vmatpush1.xpose.msra.mxu0 %v1029
        %1088 = vmatprep.subr.mxu0 0.0
        %1089 = vmatpush1.xpose.msra.mxu0 %v1027
        %1090 = vmatprep.subr.mxu0 0.0
        %1091 = vmatpush1.xpose.msra.mxu0 %v1025
        %1092 = vmatprep.subr.mxu0 0.0
        %1093 = vmatpush1.xpose.msra.mxu0 %v1023
        %1094 = vmatprep.subr.mxu0 0.0
        %1095 = vmatpush1.xpose.msra.mxu0 %v1021
        %1096 = vmatprep.subr.mxu0 0.0
        %1097 = vmatpush1.xpose.msra.mxu0 %v1019
        %1098 = vmatprep.subr.mxu0 0.0
        %1099 = vmatpush1.xpose.msra.mxu0 %v1017
        %1100 = vmatprep.subr.mxu0 0.0
        %1101 = vmatpush1.xpose.msra.mxu0 %v1015
        %1102 = vmatprep.subr.mxu0 0.0
        %1103 = vmatpush1.xpose.msra.mxu0 %v1013
        %1104 = vmatprep.subr.mxu0 0.0
        %1105 = vmatpush1.xpose.msra.mxu0 %v1011
        %1106 = vmatprep.subr.mxu0 0.0
        %1107 = vmatpush2.xpose.msra.mxu0 %v1073
        %1108 = vmatprep.subr.mxu0 0.0
        %1109 = vmatpush2.xpose.msra.mxu0 %v1071
        %1110 = vmatprep.subr.mxu0 0.0
        %1111 = vmatpush2.xpose.msra.mxu0 %v1069
        %1112 = vmatprep.subr.mxu0 0.0
        %1113 = vmatpush2.xpose.msra.mxu0 %v1067
        %1114 = vmatprep.subr.mxu0 0.0
        %1115 = vmatpush2.xpose.msra.mxu0 %v1065
        %1116 = vmatprep.subr.mxu0 0.0
        %1117 = vmatpush2.xpose.msra.mxu0 %v1063
        %1118 = vmatprep.subr.mxu0 0.0
        %1119 = vmatpush2.xpose.msra.mxu0 %v1061
        %1120 = vmatprep.subr.mxu0 0.0
        %1121 = vmatpush2.xpose.msra.mxu0 %v1059
        %1122 = vmatprep.subr.mxu0 0.0
        %1123 = vmatpush2.xpose.msra.mxu0 %v1057
        %1124 = vmatprep.subr.mxu0 0.0
        %1125 = vmatpush2.xpose.msra.mxu0 %v1055
        %1126 = vmatprep.subr.mxu0 0.0
        %1127 = vmatpush2.xpose.msra.mxu0 %v1053
        %1128 = vmatprep.subr.mxu0 0.0
        %1129 = vmatpush2.xpose.msra.mxu0 %v1051
        %1130 = vmatprep.subr.mxu0 0.0
        %1131 = vmatpush2.xpose.msra.mxu0 %v1049
        %1132 = vmatprep.subr.mxu0 0.0
        %1133 = vmatpush2.xpose.msra.mxu0 %v1047
        %1134 = vmatprep.subr.mxu0 0.0
        %1135 = vmatpush2.xpose.msra.mxu0 %v1045
        %1136 = vmatprep.subr.mxu0 0.0
        %1137 = vmatpush2.xpose.msra.mxu0 %v1043
        %1138 = vmatprep.mubr.f32.mxu0 0.0
        %1139 = vmatmul.mubr.f32.gmra.mxu0 %v915
        %v1140 = vpop.f32.mrf.mxu0
        %v1141 = vadd.f32 0.0, %v1140
        %v1142 = vpop.f32.mrf.mxu0
        %v1143 = vadd.f32 0.0, %v1142
        %1144 = vmatprep.mubr.f32.mxu0 0.0
        %1145 = vmatmul.mubr.f32.gmra.mxu0 %v917
        %v1146 = vpop.f32.mrf.mxu0
        %v1147 = vadd.f32 0.0, %v1146
        %v1148 = vpop.f32.mrf.mxu0
        %v1149 = vadd.f32 0.0, %v1148
        %1150 = vmatprep.mubr.f32.mxu0 0.0
        %1151 = vmatmul.mubr.f32.gmra.mxu0 %v919
        %v1152 = vpop.f32.mrf.mxu0
        %v1153 = vadd.f32 0.0, %v1152
        %v1154 = vpop.f32.mrf.mxu0
        %v1155 = vadd.f32 0.0, %v1154
        %1156 = vmatprep.mubr.f32.mxu0 0.0
        %1157 = vmatmul.mubr.f32.gmra.mxu0 %v921
        %v1158 = vpop.f32.mrf.mxu0
        %v1159 = vadd.f32 0.0, %v1158
        %v1160 = vpop.f32.mrf.mxu0
        %v1161 = vadd.f32 0.0, %v1160
        %1162 = vmatprep.mubr.f32.mxu0 0.0
        %1163 = vmatmul.mubr.f32.gmra.mxu0 %v923
        %v1164 = vpop.f32.mrf.mxu0
        %v1165 = vadd.f32 0.0, %v1164
        %v1166 = vpop.f32.mrf.mxu0
        %v1167 = vadd.f32 0.0, %v1166
        %1168 = vmatprep.mubr.f32.mxu0 0.0
        %1169 = vmatmul.mubr.f32.gmra.mxu0 %v925
        %v1170 = vpop.f32.mrf.mxu0
        %v1171 = vadd.f32 0.0, %v1170
        %v1172 = vpop.f32.mrf.mxu0
        %v1173 = vadd.f32 0.0, %v1172
        %1174 = vmatprep.mubr.f32.mxu0 0.0
        %1175 = vmatmul.mubr.f32.gmra.mxu0 %v927
        %v1176 = vpop.f32.mrf.mxu0
        %v1177 = vadd.f32 0.0, %v1176
        %v1178 = vpop.f32.mrf.mxu0
        %v1179 = vadd.f32 0.0, %v1178
        %1180 = vmatprep.mubr.f32.mxu0 0.0
        %1181 = vmatmul.mubr.f32.gmra.mxu0 %v929
        %v1182 = vpop.f32.mrf.mxu0
        %v1183 = vadd.f32 0.0, %v1182
        %v1184 = vpop.f32.mrf.mxu0
        %v1185 = vadd.f32 0.0, %v1184
        %1186 = vmatprep.mubr.f32.mxu0 0.0
        %1187 = vmatmul.mubr.f32.gmra.mxu0 %v931
        %v1188 = vpop.f32.mrf.mxu0
        %v1189 = vadd.f32 0.0, %v1188
        %v1190 = vpop.f32.mrf.mxu0
        %v1191 = vadd.f32 0.0, %v1190
        %1192 = vmatprep.mubr.f32.mxu0 0.0
        %1193 = vmatmul.mubr.f32.gmra.mxu0 %v933
        %v1194 = vpop.f32.mrf.mxu0
        %v1195 = vadd.f32 0.0, %v1194
        %v1196 = vpop.f32.mrf.mxu0
        %v1197 = vadd.f32 0.0, %v1196
        %1198 = vmatprep.mubr.f32.mxu0 0.0
        %1199 = vmatmul.mubr.f32.gmra.mxu0 %v935
        %v1200 = vpop.f32.mrf.mxu0
        %v1201 = vadd.f32 0.0, %v1200
        %v1202 = vpop.f32.mrf.mxu0
        %v1203 = vadd.f32 0.0, %v1202
        %1204 = vmatprep.mubr.f32.mxu0 0.0
        %1205 = vmatmul.mubr.f32.gmra.mxu0 %v937
        %v1206 = vpop.f32.mrf.mxu0
        %v1207 = vadd.f32 0.0, %v1206
        %v1208 = vpop.f32.mrf.mxu0
        %v1209 = vadd.f32 0.0, %v1208
        %1210 = vmatprep.mubr.f32.mxu0 0.0
        %1211 = vmatmul.mubr.f32.gmra.mxu0 %v939
        %v1212 = vpop.f32.mrf.mxu0
        %v1213 = vadd.f32 0.0, %v1212
        %v1214 = vpop.f32.mrf.mxu0
        %v1215 = vadd.f32 0.0, %v1214
        %1216 = vmatprep.mubr.f32.mxu0 0.0
        %1217 = vmatmul.mubr.f32.gmra.mxu0 %v941
        %v1218 = vpop.f32.mrf.mxu0
        %v1219 = vadd.f32 0.0, %v1218
        %v1220 = vpop.f32.mrf.mxu0
        %v1221 = vadd.f32 0.0, %v1220
        %1222 = vmatprep.mubr.f32.mxu0 0.0
        %1223 = vmatmul.mubr.f32.gmra.mxu0 %v943
        %v1224 = vpop.f32.mrf.mxu0
        %v1225 = vadd.f32 0.0, %v1224
        %v1226 = vpop.f32.mrf.mxu0
        %v1227 = vadd.f32 0.0, %v1226
        %1228 = vmatprep.mubr.f32.mxu0 0.0
        %1229 = vmatmul.mubr.f32.gmra.mxu0 %v945
        %v1230 = vpop.f32.mrf.mxu0
        %v1231 = vadd.f32 0.0, %v1230
        %v1232 = vpop.f32.mrf.mxu0
        %v1233 = vadd.f32 0.0, %v1232
        %1234 = vmatprep.mubr.f32.mxu0 0.0
        %1235 = vmatmul.mubr.f32.gmra.mxu0 %v947
        %v1236 = vpop.f32.mrf.mxu0
        %v1237 = vadd.f32 0.0, %v1236
        %v1238 = vpop.f32.mrf.mxu0
        %v1239 = vadd.f32 0.0, %v1238
        %1240 = vmatprep.mubr.f32.mxu0 0.0
        %1241 = vmatmul.mubr.f32.gmra.mxu0 %v949
        %v1242 = vpop.f32.mrf.mxu0
        %v1243 = vadd.f32 0.0, %v1242
        %v1244 = vpop.f32.mrf.mxu0
        %v1245 = vadd.f32 0.0, %v1244
        %1246 = vmatprep.mubr.f32.mxu0 0.0
        %1247 = vmatmul.mubr.f32.gmra.mxu0 %v951
        %v1248 = vpop.f32.mrf.mxu0
        %v1249 = vadd.f32 0.0, %v1248
        %v1250 = vpop.f32.mrf.mxu0
        %v1251 = vadd.f32 0.0, %v1250
        %1252 = vmatprep.mubr.f32.mxu0 0.0
        %1253 = vmatmul.mubr.f32.gmra.mxu0 %v953
        %v1254 = vpop.f32.mrf.mxu0
        %v1255 = vadd.f32 0.0, %v1254
        %v1256 = vpop.f32.mrf.mxu0
        %v1257 = vadd.f32 0.0, %v1256
        %1258 = vmatprep.mubr.f32.mxu0 0.0
        %1259 = vmatmul.mubr.f32.gmra.mxu0 %v955
        %v1260 = vpop.f32.mrf.mxu0
        %v1261 = vadd.f32 0.0, %v1260
        %v1262 = vpop.f32.mrf.mxu0
        %v1263 = vadd.f32 0.0, %v1262
        %1264 = vmatprep.mubr.f32.mxu0 0.0
        %1265 = vmatmul.mubr.f32.gmra.mxu0 %v957
        %v1266 = vpop.f32.mrf.mxu0
        %v1267 = vadd.f32 0.0, %v1266
        %v1268 = vpop.f32.mrf.mxu0
        %v1269 = vadd.f32 0.0, %v1268
        %1270 = vmatprep.mubr.f32.mxu0 0.0
        %1271 = vmatmul.mubr.f32.gmra.mxu0 %v959
        %v1272 = vpop.f32.mrf.mxu0
        %v1273 = vadd.f32 0.0, %v1272
        %v1274 = vpop.f32.mrf.mxu0
        %v1275 = vadd.f32 0.0, %v1274
        %1276 = vmatprep.mubr.f32.mxu0 0.0
        %1277 = vmatmul.mubr.f32.gmra.mxu0 %v961
        %v1278 = vpop.f32.mrf.mxu0
        %v1279 = vadd.f32 0.0, %v1278
        %v1280 = vpop.f32.mrf.mxu0
        %v1281 = vadd.f32 0.0, %v1280
        %1282 = vmatprep.mubr.f32.mxu0 0.0
        %1283 = vmatmul.mubr.f32.gmra.mxu0 %v963
        %v1284 = vpop.f32.mrf.mxu0
        %v1285 = vadd.f32 0.0, %v1284
        %v1286 = vpop.f32.mrf.mxu0
        %v1287 = vadd.f32 0.0, %v1286
        %1288 = vmatprep.mubr.f32.mxu0 0.0
        %1289 = vmatmul.mubr.f32.gmra.mxu0 %v965
        %v1290 = vpop.f32.mrf.mxu0
        %v1291 = vadd.f32 0.0, %v1290
        %v1292 = vpop.f32.mrf.mxu0
        %v1293 = vadd.f32 0.0, %v1292
        %1294 = vmatprep.mubr.f32.mxu0 0.0
        %1295 = vmatmul.mubr.f32.gmra.mxu0 %v967
        %v1296 = vpop.f32.mrf.mxu0
        %v1297 = vadd.f32 0.0, %v1296
        %v1298 = vpop.f32.mrf.mxu0
        %v1299 = vadd.f32 0.0, %v1298
        %1300 = vmatprep.mubr.f32.mxu0 0.0
        %1301 = vmatmul.mubr.f32.gmra.mxu0 %v969
        %v1302 = vpop.f32.mrf.mxu0
        %v1303 = vadd.f32 0.0, %v1302
        %v1304 = vpop.f32.mrf.mxu0
        %v1305 = vadd.f32 0.0, %v1304
        %1306 = vmatprep.mubr.f32.mxu0 0.0
        %1307 = vmatmul.mubr.f32.gmra.mxu0 %v971
        %v1308 = vpop.f32.mrf.mxu0
        %v1309 = vadd.f32 0.0, %v1308
        %v1310 = vpop.f32.mrf.mxu0
        %v1311 = vadd.f32 0.0, %v1310
        %1312 = vmatprep.mubr.f32.mxu0 0.0
        %1313 = vmatmul.mubr.f32.gmra.mxu0 %v973
        %v1314 = vpop.f32.mrf.mxu0
        %v1315 = vadd.f32 0.0, %v1314
        %v1316 = vpop.f32.mrf.mxu0
        %v1317 = vadd.f32 0.0, %v1316
        %1318 = vmatprep.mubr.f32.mxu0 0.0
        %1319 = vmatmul.mubr.f32.gmra.mxu0 %v975
        %v1320 = vpop.f32.mrf.mxu0
        %v1321 = vadd.f32 0.0, %v1320
        %v1322 = vpop.f32.mrf.mxu0
        %v1323 = vadd.f32 0.0, %v1322
        %1324 = vmatprep.mubr.f32.mxu0 0.0
        %1325 = vmatmul.mubr.f32.gmra.mxu0 %v977
        %v1326 = vpop.f32.mrf.mxu0
        %v1327 = vadd.f32 0.0, %v1326
        %v1328 = vpop.f32.mrf.mxu0
        %v1329 = vadd.f32 0.0, %v1328
        %1330 = vdwg.mxu0
        %v1331 = vmax.f32 %v1141, -1.0
        %v1332 = vmax.f32 %v1143, -1.0
        %v1333 = vmax.f32 %v1147, -1.0
        %v1334 = vmax.f32 %v1149, -1.0
        %v1335 = vmax.f32 %v1153, -1.0
        %v1336 = vmax.f32 %v1155, -1.0
        %v1337 = vmax.f32 %v1159, -1.0
        %v1338 = vmax.f32 %v1161, -1.0
        %v1339 = vmax.f32 %v1165, -1.0
        %v1340 = vmax.f32 %v1167, -1.0
        %v1341 = vmax.f32 %v1171, -1.0
        %v1342 = vmax.f32 %v1173, -1.0
        %v1343 = vmax.f32 %v1177, -1.0
        %v1344 = vmax.f32 %v1179, -1.0
        %v1345 = vmax.f32 %v1183, -1.0
        %v1346 = vmax.f32 %v1185, -1.0
        %v1347 = vmax.f32 %v1189, -1.0
        %v1348 = vmax.f32 %v1191, -1.0
        %v1349 = vmax.f32 %v1195, -1.0
        %v1350 = vmax.f32 %v1197, -1.0
        %v1351 = vmax.f32 %v1201, -1.0
        %v1352 = vmax.f32 %v1203, -1.0
        %v1353 = vmax.f32 %v1207, -1.0
        %v1354 = vmax.f32 %v1209, -1.0
        %v1355 = vmax.f32 %v1213, -1.0
        %v1356 = vmax.f32 %v1215, -1.0
        %v1357 = vmax.f32 %v1219, -1.0
        %v1358 = vmax.f32 %v1221, -1.0
        %v1359 = vmax.f32 %v1225, -1.0
        %v1360 = vmax.f32 %v1227, -1.0
        %v1361 = vmax.f32 %v1231, -1.0
        %v1362 = vmax.f32 %v1233, -1.0
        %v1363 = vmax.f32 %v1237, -1.0
        %v1364 = vmax.f32 %v1239, -1.0
        %v1365 = vmax.f32 %v1243, -1.0
        %v1366 = vmax.f32 %v1245, -1.0
        %v1367 = vmax.f32 %v1249, -1.0
        %v1368 = vmax.f32 %v1251, -1.0
        %v1369 = vmax.f32 %v1255, -1.0
        %v1370 = vmax.f32 %v1257, -1.0
        %v1371 = vmax.f32 %v1261, -1.0
        %v1372 = vmax.f32 %v1263, -1.0
        %v1373 = vmax.f32 %v1267, -1.0
        %v1374 = vmax.f32 %v1269, -1.0
        %v1375 = vmax.f32 %v1273, -1.0
        %v1376 = vmax.f32 %v1275, -1.0
        %v1377 = vmax.f32 %v1279, -1.0
        %v1378 = vmax.f32 %v1281, -1.0
        %v1379 = vmax.f32 %v1285, -1.0
        %v1380 = vmax.f32 %v1287, -1.0
        %v1381 = vmax.f32 %v1291, -1.0
        %v1382 = vmax.f32 %v1293, -1.0
        %v1383 = vmax.f32 %v1297, -1.0
        %v1384 = vmax.f32 %v1299, -1.0
        %v1385 = vmax.f32 %v1303, -1.0
        %v1386 = vmax.f32 %v1305, -1.0
        %v1387 = vmax.f32 %v1309, -1.0
        %v1388 = vmax.f32 %v1311, -1.0
        %v1389 = vmax.f32 %v1315, -1.0
        %v1390 = vmax.f32 %v1317, -1.0
        %v1391 = vmax.f32 %v1321, -1.0
        %v1392 = vmax.f32 %v1323, -1.0
        %v1393 = vmax.f32 %v1327, -1.0
        %v1394 = vmax.f32 %v1329, -1.0
        %v1395 = vmin.f32 %v1331, 1.0
        %v1396 = vmin.f32 %v1332, 1.0
        %v1397 = vmin.f32 %v1333, 1.0
        %v1398 = vmin.f32 %v1334, 1.0
        %v1399 = vmin.f32 %v1335, 1.0
        %v1400 = vmin.f32 %v1336, 1.0
        %v1401 = vmin.f32 %v1337, 1.0
        %v1402 = vmin.f32 %v1338, 1.0
        %v1403 = vmin.f32 %v1339, 1.0
        %v1404 = vmin.f32 %v1340, 1.0
        %v1405 = vmin.f32 %v1341, 1.0
        %v1406 = vmin.f32 %v1342, 1.0
        %v1407 = vmin.f32 %v1343, 1.0
        %v1408 = vmin.f32 %v1344, 1.0
        %v1409 = vmin.f32 %v1345, 1.0
        %v1410 = vmin.f32 %v1346, 1.0
        %v1411 = vmin.f32 %v1347, 1.0
        %v1412 = vmin.f32 %v1348, 1.0
        %v1413 = vmin.f32 %v1349, 1.0
        %v1414 = vmin.f32 %v1350, 1.0
        %v1415 = vmin.f32 %v1351, 1.0
        %v1416 = vmin.f32 %v1352, 1.0
        %v1417 = vmin.f32 %v1353, 1.0
        %v1418 = vmin.f32 %v1354, 1.0
        %v1419 = vmin.f32 %v1355, 1.0
        %v1420 = vmin.f32 %v1356, 1.0
        %v1421 = vmin.f32 %v1357, 1.0
        %v1422 = vmin.f32 %v1358, 1.0
        %v1423 = vmin.f32 %v1359, 1.0
        %v1424 = vmin.f32 %v1360, 1.0
        %v1425 = vmin.f32 %v1361, 1.0
        %v1426 = vmin.f32 %v1362, 1.0
        %v1427 = vmin.f32 %v1363, 1.0
        %v1428 = vmin.f32 %v1364, 1.0
        %v1429 = vmin.f32 %v1365, 1.0
        %v1430 = vmin.f32 %v1366, 1.0
        %v1431 = vmin.f32 %v1367, 1.0
        %v1432 = vmin.f32 %v1368, 1.0
        %v1433 = vmin.f32 %v1369, 1.0
        %v1434 = vmin.f32 %v1370, 1.0
        %v1435 = vmin.f32 %v1371, 1.0
        %v1436 = vmin.f32 %v1372, 1.0
        %v1437 = vmin.f32 %v1373, 1.0
        %v1438 = vmin.f32 %v1374, 1.0
        %v1439 = vmin.f32 %v1375, 1.0
        %v1440 = vmin.f32 %v1376, 1.0
        %v1441 = vmin.f32 %v1377, 1.0
        %v1442 = vmin.f32 %v1378, 1.0
        %v1443 = vmin.f32 %v1379, 1.0
        %v1444 = vmin.f32 %v1380, 1.0
        %v1445 = vmin.f32 %v1381, 1.0
        %v1446 = vmin.f32 %v1382, 1.0
        %v1447 = vmin.f32 %v1383, 1.0
        %v1448 = vmin.f32 %v1384, 1.0
        %v1449 = vmin.f32 %v1385, 1.0
        %v1450 = vmin.f32 %v1386, 1.0
        %v1451 = vmin.f32 %v1387, 1.0
        %v1452 = vmin.f32 %v1388, 1.0
        %v1453 = vmin.f32 %v1389, 1.0
        %v1454 = vmin.f32 %v1390, 1.0
        %v1455 = vmin.f32 %v1391, 1.0
        %v1456 = vmin.f32 %v1392, 1.0
        %v1457 = vmin.f32 %v1393, 1.0
        %v1458 = vmin.f32 %v1394, 1.0
        %v1459 = vmul.f32 %v1395, 0.999999
        %v1460 = vmul.f32 %v1396, 0.999999
        %v1461 = vmul.f32 %v1397, 0.999999
        %v1462 = vmul.f32 %v1398, 0.999999
        %v1463 = vmul.f32 %v1399, 0.999999
        %v1464 = vmul.f32 %v1400, 0.999999
        %v1465 = vmul.f32 %v1401, 0.999999
        %v1466 = vmul.f32 %v1402, 0.999999
        %v1467 = vmul.f32 %v1403, 0.999999
        %v1468 = vmul.f32 %v1404, 0.999999
        %v1469 = vmul.f32 %v1405, 0.999999
        %v1470 = vmul.f32 %v1406, 0.999999
        %v1471 = vmul.f32 %v1407, 0.999999
        %v1472 = vmul.f32 %v1408, 0.999999
        %v1473 = vmul.f32 %v1409, 0.999999
        %v1474 = vmul.f32 %v1410, 0.999999
        %v1475 = vmul.f32 %v1411, 0.999999
        %v1476 = vmul.f32 %v1412, 0.999999
        %v1477 = vmul.f32 %v1413, 0.999999
        %v1478 = vmul.f32 %v1414, 0.999999
        %v1479 = vmul.f32 %v1415, 0.999999
        %v1480 = vmul.f32 %v1416, 0.999999
        %v1481 = vmul.f32 %v1417, 0.999999
        %v1482 = vmul.f32 %v1418, 0.999999
        %v1483 = vmul.f32 %v1419, 0.999999
        %v1484 = vmul.f32 %v1420, 0.999999
        %v1485 = vmul.f32 %v1421, 0.999999
        %v1486 = vmul.f32 %v1422, 0.999999
        %v1487 = vmul.f32 %v1423, 0.999999
        %v1488 = vmul.f32 %v1424, 0.999999
        %v1489 = vmul.f32 %v1425, 0.999999
        %v1490 = vmul.f32 %v1426, 0.999999
        %v1491 = vmul.f32 %v1427, 0.999999
        %v1492 = vmul.f32 %v1428, 0.999999
        %v1493 = vmul.f32 %v1429, 0.999999
        %v1494 = vmul.f32 %v1430, 0.999999
        %v1495 = vmul.f32 %v1431, 0.999999
        %v1496 = vmul.f32 %v1432, 0.999999
        %v1497 = vmul.f32 %v1433, 0.999999
        %v1498 = vmul.f32 %v1434, 0.999999
        %v1499 = vmul.f32 %v1435, 0.999999
        %v1500 = vmul.f32 %v1436, 0.999999
        %v1501 = vmul.f32 %v1437, 0.999999
        %v1502 = vmul.f32 %v1438, 0.999999
        %v1503 = vmul.f32 %v1439, 0.999999
        %v1504 = vmul.f32 %v1440, 0.999999
        %v1505 = vmul.f32 %v1441, 0.999999
        %v1506 = vmul.f32 %v1442, 0.999999
        %v1507 = vmul.f32 %v1443, 0.999999
        %v1508 = vmul.f32 %v1444, 0.999999
        %v1509 = vmul.f32 %v1445, 0.999999
        %v1510 = vmul.f32 %v1446, 0.999999
        %v1511 = vmul.f32 %v1447, 0.999999
        %v1512 = vmul.f32 %v1448, 0.999999
        %v1513 = vmul.f32 %v1449, 0.999999
        %v1514 = vmul.f32 %v1450, 0.999999
        %v1515 = vmul.f32 %v1451, 0.999999
        %v1516 = vmul.f32 %v1452, 0.999999
        %v1517 = vmul.f32 %v1453, 0.999999
        %v1518 = vmul.f32 %v1454, 0.999999
        %v1519 = vmul.f32 %v1455, 0.999999
        %v1520 = vmul.f32 %v1456, 0.999999
        %v1521 = vmul.f32 %v1457, 0.999999
        %v1522 = vmul.f32 %v1458, 0.999999
        %v1523 = vand.u32 2147483647, %v1459
        %v1524 = vand.u32 2147483647, %v1460
        %v1525 = vand.u32 2147483647, %v1461
        %v1526 = vand.u32 2147483647, %v1462
        %v1527 = vand.u32 2147483647, %v1463
        %v1528 = vand.u32 2147483647, %v1464
        %v1529 = vand.u32 2147483647, %v1465
        %v1530 = vand.u32 2147483647, %v1466
        %v1531 = vand.u32 2147483647, %v1467
        %v1532 = vand.u32 2147483647, %v1468
        %v1533 = vand.u32 2147483647, %v1469
        %v1534 = vand.u32 2147483647, %v1470
        %v1535 = vand.u32 2147483647, %v1471
        %v1536 = vand.u32 2147483647, %v1472
        %v1537 = vand.u32 2147483647, %v1473
        %v1538 = vand.u32 2147483647, %v1474
        %v1539 = vand.u32 2147483647, %v1475
        %v1540 = vand.u32 2147483647, %v1476
        %v1541 = vand.u32 2147483647, %v1477
        %v1542 = vand.u32 2147483647, %v1478
        %v1543 = vand.u32 2147483647, %v1479
        %v1544 = vand.u32 2147483647, %v1480
        %v1545 = vand.u32 2147483647, %v1481
        %v1546 = vand.u32 2147483647, %v1482
        %v1547 = vand.u32 2147483647, %v1483
        %v1548 = vand.u32 2147483647, %v1484
        %v1549 = vand.u32 2147483647, %v1485
        %v1550 = vand.u32 2147483647, %v1486
        %v1551 = vand.u32 2147483647, %v1487
        %v1552 = vand.u32 2147483647, %v1488
        %v1553 = vand.u32 2147483647, %v1489
        %v1554 = vand.u32 2147483647, %v1490
        %v1555 = vand.u32 2147483647, %v1491
        %v1556 = vand.u32 2147483647, %v1492
        %v1557 = vand.u32 2147483647, %v1493
        %v1558 = vand.u32 2147483647, %v1494
        %v1559 = vand.u32 2147483647, %v1495
        %v1560 = vand.u32 2147483647, %v1496
        %v1561 = vand.u32 2147483647, %v1497
        %v1562 = vand.u32 2147483647, %v1498
        %v1563 = vand.u32 2147483647, %v1499
        %v1564 = vand.u32 2147483647, %v1500
        %v1565 = vand.u32 2147483647, %v1501
        %v1566 = vand.u32 2147483647, %v1502
        %v1567 = vand.u32 2147483647, %v1503
        %v1568 = vand.u32 2147483647, %v1504
        %v1569 = vand.u32 2147483647, %v1505
        %v1570 = vand.u32 2147483647, %v1506
        %v1571 = vand.u32 2147483647, %v1507
        %v1572 = vand.u32 2147483647, %v1508
        %v1573 = vand.u32 2147483647, %v1509
        %v1574 = vand.u32 2147483647, %v1510
        %v1575 = vand.u32 2147483647, %v1511
        %v1576 = vand.u32 2147483647, %v1512
        %v1577 = vand.u32 2147483647, %v1513
        %v1578 = vand.u32 2147483647, %v1514
        %v1579 = vand.u32 2147483647, %v1515
        %v1580 = vand.u32 2147483647, %v1516
        %v1581 = vand.u32 2147483647, %v1517
        %v1582 = vand.u32 2147483647, %v1518
        %v1583 = vand.u32 2147483647, %v1519
        %v1584 = vand.u32 2147483647, %v1520
        %v1585 = vand.u32 2147483647, %v1521
        %v1586 = vand.u32 2147483647, %v1522
        %v1587 = vmul.f32 %v1523, -0.0012624911
        %v1588 = vmul.f32 %v1524, -0.0012624911
        %v1589 = vmul.f32 %v1525, -0.0012624911
        %v1590 = vmul.f32 %v1526, -0.0012624911
        %v1591 = vmul.f32 %v1527, -0.0012624911
        %v1592 = vmul.f32 %v1528, -0.0012624911
        %v1593 = vmul.f32 %v1529, -0.0012624911
        %v1594 = vmul.f32 %v1530, -0.0012624911
        %v1595 = vmul.f32 %v1531, -0.0012624911
        %v1596 = vmul.f32 %v1532, -0.0012624911
        %v1597 = vmul.f32 %v1533, -0.0012624911
        %v1598 = vmul.f32 %v1534, -0.0012624911
        %v1599 = vmul.f32 %v1535, -0.0012624911
        %v1600 = vmul.f32 %v1536, -0.0012624911
        %v1601 = vmul.f32 %v1537, -0.0012624911
        %v1602 = vmul.f32 %v1538, -0.0012624911
        %v1603 = vmul.f32 %v1539, -0.0012624911
        %v1604 = vmul.f32 %v1540, -0.0012624911
        %v1605 = vmul.f32 %v1541, -0.0012624911
        %v1606 = vmul.f32 %v1542, -0.0012624911
        %v1607 = vmul.f32 %v1543, -0.0012624911
        %v1608 = vmul.f32 %v1544, -0.0012624911
        %v1609 = vmul.f32 %v1545, -0.0012624911
        %v1610 = vmul.f32 %v1546, -0.0012624911
        %v1611 = vmul.f32 %v1547, -0.0012624911
        %v1612 = vmul.f32 %v1548, -0.0012624911
        %v1613 = vmul.f32 %v1549, -0.0012624911
        %v1614 = vmul.f32 %v1550, -0.0012624911
        %v1615 = vmul.f32 %v1551, -0.0012624911
        %v1616 = vmul.f32 %v1552, -0.0012624911
        %v1617 = vmul.f32 %v1553, -0.0012624911
        %v1618 = vmul.f32 %v1554, -0.0012624911
        %v1619 = vmul.f32 %v1555, -0.0012624911
        %v1620 = vmul.f32 %v1556, -0.0012624911
        %v1621 = vmul.f32 %v1557, -0.0012624911
        %v1622 = vmul.f32 %v1558, -0.0012624911
        %v1623 = vmul.f32 %v1559, -0.0012624911
        %v1624 = vmul.f32 %v1560, -0.0012624911
        %v1625 = vmul.f32 %v1561, -0.0012624911
        %v1626 = vmul.f32 %v1562, -0.0012624911
        %v1627 = vmul.f32 %v1563, -0.0012624911
        %v1628 = vmul.f32 %v1564, -0.0012624911
        %v1629 = vmul.f32 %v1565, -0.0012624911
        %v1630 = vmul.f32 %v1566, -0.0012624911
        %v1631 = vmul.f32 %v1567, -0.0012624911
        %v1632 = vmul.f32 %v1568, -0.0012624911
        %v1633 = vmul.f32 %v1569, -0.0012624911
        %v1634 = vmul.f32 %v1570, -0.0012624911
        %v1635 = vmul.f32 %v1571, -0.0012624911
        %v1636 = vmul.f32 %v1572, -0.0012624911
        %v1637 = vmul.f32 %v1573, -0.0012624911
        %v1638 = vmul.f32 %v1574, -0.0012624911
        %v1639 = vmul.f32 %v1575, -0.0012624911
        %v1640 = vmul.f32 %v1576, -0.0012624911
        %v1641 = vmul.f32 %v1577, -0.0012624911
        %v1642 = vmul.f32 %v1578, -0.0012624911
        %v1643 = vmul.f32 %v1579, -0.0012624911
        %v1644 = vmul.f32 %v1580, -0.0012624911
        %v1645 = vmul.f32 %v1581, -0.0012624911
        %v1646 = vmul.f32 %v1582, -0.0012624911
        %v1647 = vmul.f32 %v1583, -0.0012624911
        %v1648 = vmul.f32 %v1584, -0.0012624911
        %v1649 = vmul.f32 %v1585, -0.0012624911
        %v1650 = vmul.f32 %v1586, -0.0012624911
        %v1651 = vadd.f32 %v1587, 0.00667009
        %v1652 = vadd.f32 %v1588, 0.00667009
        %v1653 = vadd.f32 %v1589, 0.00667009
        %v1654 = vadd.f32 %v1590, 0.00667009
        %v1655 = vadd.f32 %v1591, 0.00667009
        %v1656 = vadd.f32 %v1592, 0.00667009
        %v1657 = vadd.f32 %v1593, 0.00667009
        %v1658 = vadd.f32 %v1594, 0.00667009
        %v1659 = vadd.f32 %v1595, 0.00667009
        %v1660 = vadd.f32 %v1596, 0.00667009
        %v1661 = vadd.f32 %v1597, 0.00667009
        %v1662 = vadd.f32 %v1598, 0.00667009
        %v1663 = vadd.f32 %v1599, 0.00667009
        %v1664 = vadd.f32 %v1600, 0.00667009
        %v1665 = vadd.f32 %v1601, 0.00667009
        %v1666 = vadd.f32 %v1602, 0.00667009
        %v1667 = vadd.f32 %v1603, 0.00667009
        %v1668 = vadd.f32 %v1604, 0.00667009
        %v1669 = vadd.f32 %v1605, 0.00667009
        %v1670 = vadd.f32 %v1606, 0.00667009
        %v1671 = vadd.f32 %v1607, 0.00667009
        %v1672 = vadd.f32 %v1608, 0.00667009
        %v1673 = vadd.f32 %v1609, 0.00667009
        %v1674 = vadd.f32 %v1610, 0.00667009
        %v1675 = vadd.f32 %v1611, 0.00667009
        %v1676 = vadd.f32 %v1612, 0.00667009
        %v1677 = vadd.f32 %v1613, 0.00667009
        %v1678 = vadd.f32 %v1614, 0.00667009
        %v1679 = vadd.f32 %v1615, 0.00667009
        %v1680 = vadd.f32 %v1616, 0.00667009
        %v1681 = vadd.f32 %v1617, 0.00667009
        %v1682 = vadd.f32 %v1618, 0.00667009
        %v1683 = vadd.f32 %v1619, 0.00667009
        %v1684 = vadd.f32 %v1620, 0.00667009
        %v1685 = vadd.f32 %v1621, 0.00667009
        %v1686 = vadd.f32 %v1622, 0.00667009
        %v1687 = vadd.f32 %v1623, 0.00667009
        %v1688 = vadd.f32 %v1624, 0.00667009
        %v1689 = vadd.f32 %v1625, 0.00667009
        %v1690 = vadd.f32 %v1626, 0.00667009
        %v1691 = vadd.f32 %v1627, 0.00667009
        %v1692 = vadd.f32 %v1628, 0.00667009
        %v1693 = vadd.f32 %v1629, 0.00667009
        %v1694 = vadd.f32 %v1630, 0.00667009
        %v1695 = vadd.f32 %v1631, 0.00667009
        %v1696 = vadd.f32 %v1632, 0.00667009
        %v1697 = vadd.f32 %v1633, 0.00667009
        %v1698 = vadd.f32 %v1634, 0.00667009
        %v1699 = vadd.f32 %v1635, 0.00667009
        %v1700 = vadd.f32 %v1636, 0.00667009
        %v1701 = vadd.f32 %v1637, 0.00667009
        %v1702 = vadd.f32 %v1638, 0.00667009
        %v1703 = vadd.f32 %v1639, 0.00667009
        %v1704 = vadd.f32 %v1640, 0.00667009
        %v1705 = vadd.f32 %v1641, 0.00667009
        %v1706 = vadd.f32 %v1642, 0.00667009
        %v1707 = vadd.f32 %v1643, 0.00667009
        %v1708 = vadd.f32 %v1644, 0.00667009
        %v1709 = vadd.f32 %v1645, 0.00667009
        %v1710 = vadd.f32 %v1646, 0.00667009
        %v1711 = vadd.f32 %v1647, 0.00667009
        %v1712 = vadd.f32 %v1648, 0.00667009
        %v1713 = vadd.f32 %v1649, 0.00667009
        %v1714 = vadd.f32 %v1650, 0.00667009
        %v1715 = vmul.f32 %v1651, %v1523
        %v1716 = vmul.f32 %v1652, %v1524
        %v1717 = vmul.f32 %v1653, %v1525
        %v1718 = vmul.f32 %v1654, %v1526
        %v1719 = vmul.f32 %v1655, %v1527
        %v1720 = vmul.f32 %v1656, %v1528
        %v1721 = vmul.f32 %v1657, %v1529
        %v1722 = vmul.f32 %v1658, %v1530
        %v1723 = vmul.f32 %v1659, %v1531
        %v1724 = vmul.f32 %v1660, %v1532
        %v1725 = vmul.f32 %v1661, %v1533
        %v1726 = vmul.f32 %v1662, %v1534
        %v1727 = vmul.f32 %v1663, %v1535
        %v1728 = vmul.f32 %v1664, %v1536
        %v1729 = vmul.f32 %v1665, %v1537
        %v1730 = vmul.f32 %v1666, %v1538
        %v1731 = vmul.f32 %v1667, %v1539
        %v1732 = vmul.f32 %v1668, %v1540
        %v1733 = vmul.f32 %v1669, %v1541
        %v1734 = vmul.f32 %v1670, %v1542
        %v1735 = vmul.f32 %v1671, %v1543
        %v1736 = vmul.f32 %v1672, %v1544
        %v1737 = vmul.f32 %v1673, %v1545
        %v1738 = vmul.f32 %v1674, %v1546
        %v1739 = vmul.f32 %v1675, %v1547
        %v1740 = vmul.f32 %v1676, %v1548
        %v1741 = vmul.f32 %v1677, %v1549
        %v1742 = vmul.f32 %v1678, %v1550
        %v1743 = vmul.f32 %v1679, %v1551
        %v1744 = vmul.f32 %v1680, %v1552
        %v1745 = vmul.f32 %v1681, %v1553
        %v1746 = vmul.f32 %v1682, %v1554
        %v1747 = vmul.f32 %v1683, %v1555
        %v1748 = vmul.f32 %v1684, %v1556
        %v1749 = vmul.f32 %v1685, %v1557
        %v1750 = vmul.f32 %v1686, %v1558
        %v1751 = vmul.f32 %v1687, %v1559
        %v1752 = vmul.f32 %v1688, %v1560
        %v1753 = vmul.f32 %v1689, %v1561
        %v1754 = vmul.f32 %v1690, %v1562
        %v1755 = vmul.f32 %v1691, %v1563
        %v1756 = vmul.f32 %v1692, %v1564
        %v1757 = vmul.f32 %v1693, %v1565
        %v1758 = vmul.f32 %v1694, %v1566
        %v1759 = vmul.f32 %v1695, %v1567
        %v1760 = vmul.f32 %v1696, %v1568
        %v1761 = vmul.f32 %v1697, %v1569
        %v1762 = vmul.f32 %v1698, %v1570
        %v1763 = vmul.f32 %v1699, %v1571
        %v1764 = vmul.f32 %v1700, %v1572
        %v1765 = vmul.f32 %v1701, %v1573
        %v1766 = vmul.f32 %v1702, %v1574
        %v1767 = vmul.f32 %v1703, %v1575
        %v1768 = vmul.f32 %v1704, %v1576
        %v1769 = vmul.f32 %v1705, %v1577
        %v1770 = vmul.f32 %v1706, %v1578
        %v1771 = vmul.f32 %v1707, %v1579
        %v1772 = vmul.f32 %v1708, %v1580
        %v1773 = vmul.f32 %v1709, %v1581
        %v1774 = vmul.f32 %v1710, %v1582
        %v1775 = vmul.f32 %v1711, %v1583
        %v1776 = vmul.f32 %v1712, %v1584
        %v1777 = vmul.f32 %v1713, %v1585
        %v1778 = vmul.f32 %v1714, %v1586
        %v1779 = vadd.f32 %v1715, -0.017088126
        %v1780 = vadd.f32 %v1716, -0.017088126
        %v1781 = vadd.f32 %v1717, -0.017088126
        %v1782 = vadd.f32 %v1718, -0.017088126
        %v1783 = vadd.f32 %v1719, -0.017088126
        %v1784 = vadd.f32 %v1720, -0.017088126
        %v1785 = vadd.f32 %v1721, -0.017088126
        %v1786 = vadd.f32 %v1722, -0.017088126
        %v1787 = vadd.f32 %v1723, -0.017088126
        %v1788 = vadd.f32 %v1724, -0.017088126
        %v1789 = vadd.f32 %v1725, -0.017088126
        %v1790 = vadd.f32 %v1726, -0.017088126
        %v1791 = vadd.f32 %v1727, -0.017088126
        %v1792 = vadd.f32 %v1728, -0.017088126
        %v1793 = vadd.f32 %v1729, -0.017088126
        %v1794 = vadd.f32 %v1730, -0.017088126
        %v1795 = vadd.f32 %v1731, -0.017088126
        %v1796 = vadd.f32 %v1732, -0.017088126
        %v1797 = vadd.f32 %v1733, -0.017088126
        %v1798 = vadd.f32 %v1734, -0.017088126
        %v1799 = vadd.f32 %v1735, -0.017088126
        %v1800 = vadd.f32 %v1736, -0.017088126
        %v1801 = vadd.f32 %v1737, -0.017088126
        %v1802 = vadd.f32 %v1738, -0.017088126
        %v1803 = vadd.f32 %v1739, -0.017088126
        %v1804 = vadd.f32 %v1740, -0.017088126
        %v1805 = vadd.f32 %v1741, -0.017088126
        %v1806 = vadd.f32 %v1742, -0.017088126
        %v1807 = vadd.f32 %v1743, -0.017088126
        %v1808 = vadd.f32 %v1744, -0.017088126
        %v1809 = vadd.f32 %v1745, -0.017088126
        %v1810 = vadd.f32 %v1746, -0.017088126
        %v1811 = vadd.f32 %v1747, -0.017088126
        %v1812 = vadd.f32 %v1748, -0.017088126
        %v1813 = vadd.f32 %v1749, -0.017088126
        %v1814 = vadd.f32 %v1750, -0.017088126
        %v1815 = vadd.f32 %v1751, -0.017088126
        %v1816 = vadd.f32 %v1752, -0.017088126
        %v1817 = vadd.f32 %v1753, -0.017088126
        %v1818 = vadd.f32 %v1754, -0.017088126
        %v1819 = vadd.f32 %v1755, -0.017088126
        %v1820 = vadd.f32 %v1756, -0.017088126
        %v1821 = vadd.f32 %v1757, -0.017088126
        %v1822 = vadd.f32 %v1758, -0.017088126
        %v1823 = vadd.f32 %v1759, -0.017088126
        %v1824 = vadd.f32 %v1760, -0.017088126
        %v1825 = vadd.f32 %v1761, -0.017088126
        %v1826 = vadd.f32 %v1762, -0.017088126
        %v1827 = vadd.f32 %v1763, -0.017088126
        %v1828 = vadd.f32 %v1764, -0.017088126
        %v1829 = vadd.f32 %v1765, -0.017088126
        %v1830 = vadd.f32 %v1766, -0.017088126
        %v1831 = vadd.f32 %v1767, -0.017088126
        %v1832 = vadd.f32 %v1768, -0.017088126
        %v1833 = vadd.f32 %v1769, -0.017088126
        %v1834 = vadd.f32 %v1770, -0.017088126
        %v1835 = vadd.f32 %v1771, -0.017088126
        %v1836 = vadd.f32 %v1772, -0.017088126
        %v1837 = vadd.f32 %v1773, -0.017088126
        %v1838 = vadd.f32 %v1774, -0.017088126
        %v1839 = vadd.f32 %v1775, -0.017088126
        %v1840 = vadd.f32 %v1776, -0.017088126
        %v1841 = vadd.f32 %v1777, -0.017088126
        %v1842 = vadd.f32 %v1778, -0.017088126
        %v1843 = vmul.f32 %v1779, %v1523
        %v1844 = vmul.f32 %v1780, %v1524
        %v1845 = vmul.f32 %v1781, %v1525
        %v1846 = vmul.f32 %v1782, %v1526
        %v1847 = vmul.f32 %v1783, %v1527
        %v1848 = vmul.f32 %v1784, %v1528
        %v1849 = vmul.f32 %v1785, %v1529
        %v1850 = vmul.f32 %v1786, %v1530
        %v1851 = vmul.f32 %v1787, %v1531
        %v1852 = vmul.f32 %v1788, %v1532
        %v1853 = vmul.f32 %v1789, %v1533
        %v1854 = vmul.f32 %v1790, %v1534
        %v1855 = vmul.f32 %v1791, %v1535
        %v1856 = vmul.f32 %v1792, %v1536
        %v1857 = vmul.f32 %v1793, %v1537
        %v1858 = vmul.f32 %v1794, %v1538
        %v1859 = vmul.f32 %v1795, %v1539
        %v1860 = vmul.f32 %v1796, %v1540
        %v1861 = vmul.f32 %v1797, %v1541
        %v1862 = vmul.f32 %v1798, %v1542
        %v1863 = vmul.f32 %v1799, %v1543
        %v1864 = vmul.f32 %v1800, %v1544
        %v1865 = vmul.f32 %v1801, %v1545
        %v1866 = vmul.f32 %v1802, %v1546
        %v1867 = vmul.f32 %v1803, %v1547
        %v1868 = vmul.f32 %v1804, %v1548
        %v1869 = vmul.f32 %v1805, %v1549
        %v1870 = vmul.f32 %v1806, %v1550
        %v1871 = vmul.f32 %v1807, %v1551
        %v1872 = vmul.f32 %v1808, %v1552
        %v1873 = vmul.f32 %v1809, %v1553
        %v1874 = vmul.f32 %v1810, %v1554
        %v1875 = vmul.f32 %v1811, %v1555
        %v1876 = vmul.f32 %v1812, %v1556
        %v1877 = vmul.f32 %v1813, %v1557
        %v1878 = vmul.f32 %v1814, %v1558
        %v1879 = vmul.f32 %v1815, %v1559
        %v1880 = vmul.f32 %v1816, %v1560
        %v1881 = vmul.f32 %v1817, %v1561
        %v1882 = vmul.f32 %v1818, %v1562
        %v1883 = vmul.f32 %v1819, %v1563
        %v1884 = vmul.f32 %v1820, %v1564
        %v1885 = vmul.f32 %v1821, %v1565
        %v1886 = vmul.f32 %v1822, %v1566
        %v1887 = vmul.f32 %v1823, %v1567
        %v1888 = vmul.f32 %v1824, %v1568
        %v1889 = vmul.f32 %v1825, %v1569
        %v1890 = vmul.f32 %v1826, %v1570
        %v1891 = vmul.f32 %v1827, %v1571
        %v1892 = vmul.f32 %v1828, %v1572
        %v1893 = vmul.f32 %v1829, %v1573
        %v1894 = vmul.f32 %v1830, %v1574
        %v1895 = vmul.f32 %v1831, %v1575
        %v1896 = vmul.f32 %v1832, %v1576
        %v1897 = vmul.f32 %v1833, %v1577
        %v1898 = vmul.f32 %v1834, %v1578
        %v1899 = vmul.f32 %v1835, %v1579
        %v1900 = vmul.f32 %v1836, %v1580
        %v1901 = vmul.f32 %v1837, %v1581
        %v1902 = vmul.f32 %v1838, %v1582
        %v1903 = vmul.f32 %v1839, %v1583
        %v1904 = vmul.f32 %v1840, %v1584
        %v1905 = vmul.f32 %v1841, %v1585
        %v1906 = vmul.f32 %v1842, %v1586
        %v1907 = vadd.f32 %v1843, 0.03089188
        %v1908 = vadd.f32 %v1844, 0.03089188
        %v1909 = vadd.f32 %v1845, 0.03089188
        %v1910 = vadd.f32 %v1846, 0.03089188
        %v1911 = vadd.f32 %v1847, 0.03089188
        %v1912 = vadd.f32 %v1848, 0.03089188
        %v1913 = vadd.f32 %v1849, 0.03089188
        %v1914 = vadd.f32 %v1850, 0.03089188
        %v1915 = vadd.f32 %v1851, 0.03089188
        %v1916 = vadd.f32 %v1852, 0.03089188
        %v1917 = vadd.f32 %v1853, 0.03089188
        %v1918 = vadd.f32 %v1854, 0.03089188
        %v1919 = vadd.f32 %v1855, 0.03089188
        %v1920 = vadd.f32 %v1856, 0.03089188
        %v1921 = vadd.f32 %v1857, 0.03089188
        %v1922 = vadd.f32 %v1858, 0.03089188
        %v1923 = vadd.f32 %v1859, 0.03089188
        %v1924 = vadd.f32 %v1860, 0.03089188
        %v1925 = vadd.f32 %v1861, 0.03089188
        %v1926 = vadd.f32 %v1862, 0.03089188
        %v1927 = vadd.f32 %v1863, 0.03089188
        %v1928 = vadd.f32 %v1864, 0.03089188
        %v1929 = vadd.f32 %v1865, 0.03089188
        %v1930 = vadd.f32 %v1866, 0.03089188
        %v1931 = vadd.f32 %v1867, 0.03089188
        %v1932 = vadd.f32 %v1868, 0.03089188
        %v1933 = vadd.f32 %v1869, 0.03089188
        %v1934 = vadd.f32 %v1870, 0.03089188
        %v1935 = vadd.f32 %v1871, 0.03089188
        %v1936 = vadd.f32 %v1872, 0.03089188
        %v1937 = vadd.f32 %v1873, 0.03089188
        %v1938 = vadd.f32 %v1874, 0.03089188
        %v1939 = vadd.f32 %v1875, 0.03089188
        %v1940 = vadd.f32 %v1876, 0.03089188
        %v1941 = vadd.f32 %v1877, 0.03089188
        %v1942 = vadd.f32 %v1878, 0.03089188
        %v1943 = vadd.f32 %v1879, 0.03089188
        %v1944 = vadd.f32 %v1880, 0.03089188
        %v1945 = vadd.f32 %v1881, 0.03089188
        %v1946 = vadd.f32 %v1882, 0.03089188
        %v1947 = vadd.f32 %v1883, 0.03089188
        %v1948 = vadd.f32 %v1884, 0.03089188
        %v1949 = vadd.f32 %v1885, 0.03089188
        %v1950 = vadd.f32 %v1886, 0.03089188
        %v1951 = vadd.f32 %v1887, 0.03089188
        %v1952 = vadd.f32 %v1888, 0.03089188
        %v1953 = vadd.f32 %v1889, 0.03089188
        %v1954 = vadd.f32 %v1890, 0.03089188
        %v1955 = vadd.f32 %v1891, 0.03089188
        %v1956 = vadd.f32 %v1892, 0.03089188
        %v1957 = vadd.f32 %v1893, 0.03089188
        %v1958 = vadd.f32 %v1894, 0.03089188
        %v1959 = vadd.f32 %v1895, 0.03089188
        %v1960 = vadd.f32 %v1896, 0.03089188
        %v1961 = vadd.f32 %v1897, 0.03089188
        %v1962 = vadd.f32 %v1898, 0.03089188
        %v1963 = vadd.f32 %v1899, 0.03089188
        %v1964 = vadd.f32 %v1900, 0.03089188
        %v1965 = vadd.f32 %v1901, 0.03089188
        %v1966 = vadd.f32 %v1902, 0.03089188
        %v1967 = vadd.f32 %v1903, 0.03089188
        %v1968 = vadd.f32 %v1904, 0.03089188
        %v1969 = vadd.f32 %v1905, 0.03089188
        %v1970 = vadd.f32 %v1906, 0.03089188
        %v1971 = vmul.f32 %v1907, %v1523
        %v1972 = vmul.f32 %v1908, %v1524
        %v1973 = vmul.f32 %v1909, %v1525
        %v1974 = vmul.f32 %v1910, %v1526
        %v1975 = vmul.f32 %v1911, %v1527
        %v1976 = vmul.f32 %v1912, %v1528
        %v1977 = vmul.f32 %v1913, %v1529
        %v1978 = vmul.f32 %v1914, %v1530
        %v1979 = vmul.f32 %v1915, %v1531
        %v1980 = vmul.f32 %v1916, %v1532
        %v1981 = vmul.f32 %v1917, %v1533
        %v1982 = vmul.f32 %v1918, %v1534
        %v1983 = vmul.f32 %v1919, %v1535
        %v1984 = vmul.f32 %v1920, %v1536
        %v1985 = vmul.f32 %v1921, %v1537
        %v1986 = vmul.f32 %v1922, %v1538
        %v1987 = vmul.f32 %v1923, %v1539
        %v1988 = vmul.f32 %v1924, %v1540
        %v1989 = vmul.f32 %v1925, %v1541
        %v1990 = vmul.f32 %v1926, %v1542
        %v1991 = vmul.f32 %v1927, %v1543
        %v1992 = vmul.f32 %v1928, %v1544
        %v1993 = vmul.f32 %v1929, %v1545
        %v1994 = vmul.f32 %v1930, %v1546
        %v1995 = vmul.f32 %v1931, %v1547
        %v1996 = vmul.f32 %v1932, %v1548
        %v1997 = vmul.f32 %v1933, %v1549
        %v1998 = vmul.f32 %v1934, %v1550
        %v1999 = vmul.f32 %v1935, %v1551
        %v2000 = vmul.f32 %v1936, %v1552
        %v2001 = vmul.f32 %v1937, %v1553
        %v2002 = vmul.f32 %v1938, %v1554
        %v2003 = vmul.f32 %v1939, %v1555
        %v2004 = vmul.f32 %v1940, %v1556
        %v2005 = vmul.f32 %v1941, %v1557
        %v2006 = vmul.f32 %v1942, %v1558
        %v2007 = vmul.f32 %v1943, %v1559
        %v2008 = vmul.f32 %v1944, %v1560
        %v2009 = vmul.f32 %v1945, %v1561
        %v2010 = vmul.f32 %v1946, %v1562
        %v2011 = vmul.f32 %v1947, %v1563
        %v2012 = vmul.f32 %v1948, %v1564
        %v2013 = vmul.f32 %v1949, %v1565
        %v2014 = vmul.f32 %v1950, %v1566
        %v2015 = vmul.f32 %v1951, %v1567
        %v2016 = vmul.f32 %v1952, %v1568
        %v2017 = vmul.f32 %v1953, %v1569
        %v2018 = vmul.f32 %v1954, %v1570
        %v2019 = vmul.f32 %v1955, %v1571
        %v2020 = vmul.f32 %v1956, %v1572
        %v2021 = vmul.f32 %v1957, %v1573
        %v2022 = vmul.f32 %v1958, %v1574
        %v2023 = vmul.f32 %v1959, %v1575
        %v2024 = vmul.f32 %v1960, %v1576
        %v2025 = vmul.f32 %v1961, %v1577
        %v2026 = vmul.f32 %v1962, %v1578
        %v2027 = vmul.f32 %v1963, %v1579
        %v2028 = vmul.f32 %v1964, %v1580
        %v2029 = vmul.f32 %v1965, %v1581
        %v2030 = vmul.f32 %v1966, %v1582
        %v2031 = vmul.f32 %v1967, %v1583
        %v2032 = vmul.f32 %v1968, %v1584
        %v2033 = vmul.f32 %v1969, %v1585
        %v2034 = vmul.f32 %v1970, %v1586
        %v2035 = vadd.f32 %v1971, -0.050174303
        %v2036 = vadd.f32 %v1972, -0.050174303
        %v2037 = vadd.f32 %v1973, -0.050174303
        %v2038 = vadd.f32 %v1974, -0.050174303
        %v2039 = vadd.f32 %v1975, -0.050174303
        %v2040 = vadd.f32 %v1976, -0.050174303
        %v2041 = vadd.f32 %v1977, -0.050174303
        %v2042 = vadd.f32 %v1978, -0.050174303
        %v2043 = vadd.f32 %v1979, -0.050174303
        %v2044 = vadd.f32 %v1980, -0.050174303
        %v2045 = vadd.f32 %v1981, -0.050174303
        %v2046 = vadd.f32 %v1982, -0.050174303
        %v2047 = vadd.f32 %v1983, -0.050174303
        %v2048 = vadd.f32 %v1984, -0.050174303
        %v2049 = vadd.f32 %v1985, -0.050174303
        %v2050 = vadd.f32 %v1986, -0.050174303
        %v2051 = vadd.f32 %v1987, -0.050174303
        %v2052 = vadd.f32 %v1988, -0.050174303
        %v2053 = vadd.f32 %v1989, -0.050174303
        %v2054 = vadd.f32 %v1990, -0.050174303
        %v2055 = vadd.f32 %v1991, -0.050174303
        %v2056 = vadd.f32 %v1992, -0.050174303
        %v2057 = vadd.f32 %v1993, -0.050174303
        %v2058 = vadd.f32 %v1994, -0.050174303
        %v2059 = vadd.f32 %v1995, -0.050174303
        %v2060 = vadd.f32 %v1996, -0.050174303
        %v2061 = vadd.f32 %v1997, -0.050174303
        %v2062 = vadd.f32 %v1998, -0.050174303
        %v2063 = vadd.f32 %v1999, -0.050174303
        %v2064 = vadd.f32 %v2000, -0.050174303
        %v2065 = vadd.f32 %v2001, -0.050174303
        %v2066 = vadd.f32 %v2002, -0.050174303
        %v2067 = vadd.f32 %v2003, -0.050174303
        %v2068 = vadd.f32 %v2004, -0.050174303
        %v2069 = vadd.f32 %v2005, -0.050174303
        %v2070 = vadd.f32 %v2006, -0.050174303
        %v2071 = vadd.f32 %v2007, -0.050174303
        %v2072 = vadd.f32 %v2008, -0.050174303
        %v2073 = vadd.f32 %v2009, -0.050174303
        %v2074 = vadd.f32 %v2010, -0.050174303
        %v2075 = vadd.f32 %v2011, -0.050174303
        %v2076 = vadd.f32 %v2012, -0.050174303
        %v2077 = vadd.f32 %v2013, -0.050174303
        %v2078 = vadd.f32 %v2014, -0.050174303
        %v2079 = vadd.f32 %v2015, -0.050174303
        %v2080 = vadd.f32 %v2016, -0.050174303
        %v2081 = vadd.f32 %v2017, -0.050174303
        %v2082 = vadd.f32 %v2018, -0.050174303
        %v2083 = vadd.f32 %v2019, -0.050174303
        %v2084 = vadd.f32 %v2020, -0.050174303
        %v2085 = vadd.f32 %v2021, -0.050174303
        %v2086 = vadd.f32 %v2022, -0.050174303
        %v2087 = vadd.f32 %v2023, -0.050174303
        %v2088 = vadd.f32 %v2024, -0.050174303
        %v2089 = vadd.f32 %v2025, -0.050174303
        %v2090 = vadd.f32 %v2026, -0.050174303
        %v2091 = vadd.f32 %v2027, -0.050174303
        %v2092 = vadd.f32 %v2028, -0.050174303
        %v2093 = vadd.f32 %v2029, -0.050174303
        %v2094 = vadd.f32 %v2030, -0.050174303
        %v2095 = vadd.f32 %v2031, -0.050174303
        %v2096 = vadd.f32 %v2032, -0.050174303
        %v2097 = vadd.f32 %v2033, -0.050174303
        %v2098 = vadd.f32 %v2034, -0.050174303
        %v2099 = vmul.f32 %v2035, %v1523
        %v2100 = vmul.f32 %v2036, %v1524
        %v2101 = vmul.f32 %v2037, %v1525
        %v2102 = vmul.f32 %v2038, %v1526
        %v2103 = vmul.f32 %v2039, %v1527
        %v2104 = vmul.f32 %v2040, %v1528
        %v2105 = vmul.f32 %v2041, %v1529
        %v2106 = vmul.f32 %v2042, %v1530
        %v2107 = vmul.f32 %v2043, %v1531
        %v2108 = vmul.f32 %v2044, %v1532
        %v2109 = vmul.f32 %v2045, %v1533
        %v2110 = vmul.f32 %v2046, %v1534
        %v2111 = vmul.f32 %v2047, %v1535
        %v2112 = vmul.f32 %v2048, %v1536
        %v2113 = vmul.f32 %v2049, %v1537
        %v2114 = vmul.f32 %v2050, %v1538
        %v2115 = vmul.f32 %v2051, %v1539
        %v2116 = vmul.f32 %v2052, %v1540
        %v2117 = vmul.f32 %v2053, %v1541
        %v2118 = vmul.f32 %v2054, %v1542
        %v2119 = vmul.f32 %v2055, %v1543
        %v2120 = vmul.f32 %v2056, %v1544
        %v2121 = vmul.f32 %v2057, %v1545
        %v2122 = vmul.f32 %v2058, %v1546
        %v2123 = vmul.f32 %v2059, %v1547
        %v2124 = vmul.f32 %v2060, %v1548
        %v2125 = vmul.f32 %v2061, %v1549
        %v2126 = vmul.f32 %v2062, %v1550
        %v2127 = vmul.f32 %v2063, %v1551
        %v2128 = vmul.f32 %v2064, %v1552
        %v2129 = vmul.f32 %v2065, %v1553
        %v2130 = vmul.f32 %v2066, %v1554
        %v2131 = vmul.f32 %v2067, %v1555
        %v2132 = vmul.f32 %v2068, %v1556
        %v2133 = vmul.f32 %v2069, %v1557
        %v2134 = vmul.f32 %v2070, %v1558
        %v2135 = vmul.f32 %v2071, %v1559
        %v2136 = vmul.f32 %v2072, %v1560
        %v2137 = vmul.f32 %v2073, %v1561
        %v2138 = vmul.f32 %v2074, %v1562
        %v2139 = vmul.f32 %v2075, %v1563
        %v2140 = vmul.f32 %v2076, %v1564
        %v2141 = vmul.f32 %v2077, %v1565
        %v2142 = vmul.f32 %v2078, %v1566
        %v2143 = vmul.f32 %v2079, %v1567
        %v2144 = vmul.f32 %v2080, %v1568
        %v2145 = vmul.f32 %v2081, %v1569
        %v2146 = vmul.f32 %v2082, %v1570
        %v2147 = vmul.f32 %v2083, %v1571
        %v2148 = vmul.f32 %v2084, %v1572
        %v2149 = vmul.f32 %v2085, %v1573
        %v2150 = vmul.f32 %v2086, %v1574
        %v2151 = vmul.f32 %v2087, %v1575
        %v2152 = vmul.f32 %v2088, %v1576
        %v2153 = vmul.f32 %v2089, %v1577
        %v2154 = vmul.f32 %v2090, %v1578
        %v2155 = vmul.f32 %v2091, %v1579
        %v2156 = vmul.f32 %v2092, %v1580
        %v2157 = vmul.f32 %v2093, %v1581
        %v2158 = vmul.f32 %v2094, %v1582
        %v2159 = vmul.f32 %v2095, %v1583
        %v2160 = vmul.f32 %v2096, %v1584
        %v2161 = vmul.f32 %v2097, %v1585
        %v2162 = vmul.f32 %v2098, %v1586
        %v2163 = vadd.f32 %v2099, 0.08897899
        %v2164 = vadd.f32 %v2100, 0.08897899
        %v2165 = vadd.f32 %v2101, 0.08897899
        %v2166 = vadd.f32 %v2102, 0.08897899
        %v2167 = vadd.f32 %v2103, 0.08897899
        %v2168 = vadd.f32 %v2104, 0.08897899
        %v2169 = vadd.f32 %v2105, 0.08897899
        %v2170 = vadd.f32 %v2106, 0.08897899
        %v2171 = vadd.f32 %v2107, 0.08897899
        %v2172 = vadd.f32 %v2108, 0.08897899
        %v2173 = vadd.f32 %v2109, 0.08897899
        %v2174 = vadd.f32 %v2110, 0.08897899
        %v2175 = vadd.f32 %v2111, 0.08897899
        %v2176 = vadd.f32 %v2112, 0.08897899
        %v2177 = vadd.f32 %v2113, 0.08897899
        %v2178 = vadd.f32 %v2114, 0.08897899
        %v2179 = vadd.f32 %v2115, 0.08897899
        %v2180 = vadd.f32 %v2116, 0.08897899
        %v2181 = vadd.f32 %v2117, 0.08897899
        %v2182 = vadd.f32 %v2118, 0.08897899
        %v2183 = vadd.f32 %v2119, 0.08897899
        %v2184 = vadd.f32 %v2120, 0.08897899
        %v2185 = vadd.f32 %v2121, 0.08897899
        %v2186 = vadd.f32 %v2122, 0.08897899
        %v2187 = vadd.f32 %v2123, 0.08897899
        %v2188 = vadd.f32 %v2124, 0.08897899
        %v2189 = vadd.f32 %v2125, 0.08897899
        %v2190 = vadd.f32 %v2126, 0.08897899
        %v2191 = vadd.f32 %v2127, 0.08897899
        %v2192 = vadd.f32 %v2128, 0.08897899
        %v2193 = vadd.f32 %v2129, 0.08897899
        %v2194 = vadd.f32 %v2130, 0.08897899
        %v2195 = vadd.f32 %v2131, 0.08897899
        %v2196 = vadd.f32 %v2132, 0.08897899
        %v2197 = vadd.f32 %v2133, 0.08897899
        %v2198 = vadd.f32 %v2134, 0.08897899
        %v2199 = vadd.f32 %v2135, 0.08897899
        %v2200 = vadd.f32 %v2136, 0.08897899
        %v2201 = vadd.f32 %v2137, 0.08897899
        %v2202 = vadd.f32 %v2138, 0.08897899
        %v2203 = vadd.f32 %v2139, 0.08897899
        %v2204 = vadd.f32 %v2140, 0.08897899
        %v2205 = vadd.f32 %v2141, 0.08897899
        %v2206 = vadd.f32 %v2142, 0.08897899
        %v2207 = vadd.f32 %v2143, 0.08897899
        %v2208 = vadd.f32 %v2144, 0.08897899
        %v2209 = vadd.f32 %v2145, 0.08897899
        %v2210 = vadd.f32 %v2146, 0.08897899
        %v2211 = vadd.f32 %v2147, 0.08897899
        %v2212 = vadd.f32 %v2148, 0.08897899
        %v2213 = vadd.f32 %v2149, 0.08897899
        %v2214 = vadd.f32 %v2150, 0.08897899
        %v2215 = vadd.f32 %v2151, 0.08897899
        %v2216 = vadd.f32 %v2152, 0.08897899
        %v2217 = vadd.f32 %v2153, 0.08897899
        %v2218 = vadd.f32 %v2154, 0.08897899
        %v2219 = vadd.f32 %v2155, 0.08897899
        %v2220 = vadd.f32 %v2156, 0.08897899
        %v2221 = vadd.f32 %v2157, 0.08897899
        %v2222 = vadd.f32 %v2158, 0.08897899
        %v2223 = vadd.f32 %v2159, 0.08897899
        %v2224 = vadd.f32 %v2160, 0.08897899
        %v2225 = vadd.f32 %v2161, 0.08897899
        %v2226 = vadd.f32 %v2162, 0.08897899
        %v2227 = vmul.f32 %v2163, %v1523
        %v2228 = vmul.f32 %v2164, %v1524
        %v2229 = vmul.f32 %v2165, %v1525
        %v2230 = vmul.f32 %v2166, %v1526
        %v2231 = vmul.f32 %v2167, %v1527
        %v2232 = vmul.f32 %v2168, %v1528
        %v2233 = vmul.f32 %v2169, %v1529
        %v2234 = vmul.f32 %v2170, %v1530
        %v2235 = vmul.f32 %v2171, %v1531
        %v2236 = vmul.f32 %v2172, %v1532
        %v2237 = vmul.f32 %v2173, %v1533
        %v2238 = vmul.f32 %v2174, %v1534
        %v2239 = vmul.f32 %v2175, %v1535
        %v2240 = vmul.f32 %v2176, %v1536
        %v2241 = vmul.f32 %v2177, %v1537
        %v2242 = vmul.f32 %v2178, %v1538
        %v2243 = vmul.f32 %v2179, %v1539
        %v2244 = vmul.f32 %v2180, %v1540
        %v2245 = vmul.f32 %v2181, %v1541
        %v2246 = vmul.f32 %v2182, %v1542
        %v2247 = vmul.f32 %v2183, %v1543
        %v2248 = vmul.f32 %v2184, %v1544
        %v2249 = vmul.f32 %v2185, %v1545
        %v2250 = vmul.f32 %v2186, %v1546
        %v2251 = vmul.f32 %v2187, %v1547
        %v2252 = vmul.f32 %v2188, %v1548
        %v2253 = vmul.f32 %v2189, %v1549
        %v2254 = vmul.f32 %v2190, %v1550
        %v2255 = vmul.f32 %v2191, %v1551
        %v2256 = vmul.f32 %v2192, %v1552
        %v2257 = vmul.f32 %v2193, %v1553
        %v2258 = vmul.f32 %v2194, %v1554
        %v2259 = vmul.f32 %v2195, %v1555
        %v2260 = vmul.f32 %v2196, %v1556
        %v2261 = vmul.f32 %v2197, %v1557
        %v2262 = vmul.f32 %v2198, %v1558
        %v2263 = vmul.f32 %v2199, %v1559
        %v2264 = vmul.f32 %v2200, %v1560
        %v2265 = vmul.f32 %v2201, %v1561
        %v2266 = vmul.f32 %v2202, %v1562
        %v2267 = vmul.f32 %v2203, %v1563
        %v2268 = vmul.f32 %v2204, %v1564
        %v2269 = vmul.f32 %v2205, %v1565
        %v2270 = vmul.f32 %v2206, %v1566
        %v2271 = vmul.f32 %v2207, %v1567
        %v2272 = vmul.f32 %v2208, %v1568
        %v2273 = vmul.f32 %v2209, %v1569
        %v2274 = vmul.f32 %v2210, %v1570
        %v2275 = vmul.f32 %v2211, %v1571
        %v2276 = vmul.f32 %v2212, %v1572
        %v2277 = vmul.f32 %v2213, %v1573
        %v2278 = vmul.f32 %v2214, %v1574
        %v2279 = vmul.f32 %v2215, %v1575
        %v2280 = vmul.f32 %v2216, %v1576
        %v2281 = vmul.f32 %v2217, %v1577
        %v2282 = vmul.f32 %v2218, %v1578
        %v2283 = vmul.f32 %v2219, %v1579
        %v2284 = vmul.f32 %v2220, %v1580
        %v2285 = vmul.f32 %v2221, %v1581
        %v2286 = vmul.f32 %v2222, %v1582
        %v2287 = vmul.f32 %v2223, %v1583
        %v2288 = vmul.f32 %v2224, %v1584
        %v2289 = vmul.f32 %v2225, %v1585
        %v2290 = vmul.f32 %v2226, %v1586
        %v2291 = vadd.f32 %v2227, -0.2145988
        %v2292 = vadd.f32 %v2228, -0.2145988
        %v2293 = vadd.f32 %v2229, -0.2145988
        %v2294 = vadd.f32 %v2230, -0.2145988
        %v2295 = vadd.f32 %v2231, -0.2145988
        %v2296 = vadd.f32 %v2232, -0.2145988
        %v2297 = vadd.f32 %v2233, -0.2145988
        %v2298 = vadd.f32 %v2234, -0.2145988
        %v2299 = vadd.f32 %v2235, -0.2145988
        %v2300 = vadd.f32 %v2236, -0.2145988
        %v2301 = vadd.f32 %v2237, -0.2145988
        %v2302 = vadd.f32 %v2238, -0.2145988
        %v2303 = vadd.f32 %v2239, -0.2145988
        %v2304 = vadd.f32 %v2240, -0.2145988
        %v2305 = vadd.f32 %v2241, -0.2145988
        %v2306 = vadd.f32 %v2242, -0.2145988
        %v2307 = vadd.f32 %v2243, -0.2145988
        %v2308 = vadd.f32 %v2244, -0.2145988
        %v2309 = vadd.f32 %v2245, -0.2145988
        %v2310 = vadd.f32 %v2246, -0.2145988
        %v2311 = vadd.f32 %v2247, -0.2145988
        %v2312 = vadd.f32 %v2248, -0.2145988
        %v2313 = vadd.f32 %v2249, -0.2145988
        %v2314 = vadd.f32 %v2250, -0.2145988
        %v2315 = vadd.f32 %v2251, -0.2145988
        %v2316 = vadd.f32 %v2252, -0.2145988
        %v2317 = vadd.f32 %v2253, -0.2145988
        %v2318 = vadd.f32 %v2254, -0.2145988
        %v2319 = vadd.f32 %v2255, -0.2145988
        %v2320 = vadd.f32 %v2256, -0.2145988
        %v2321 = vadd.f32 %v2257, -0.2145988
        %v2322 = vadd.f32 %v2258, -0.2145988
        %v2323 = vadd.f32 %v2259, -0.2145988
        %v2324 = vadd.f32 %v2260, -0.2145988
        %v2325 = vadd.f32 %v2261, -0.2145988
        %v2326 = vadd.f32 %v2262, -0.2145988
        %v2327 = vadd.f32 %v2263, -0.2145988
        %v2328 = vadd.f32 %v2264, -0.2145988
        %v2329 = vadd.f32 %v2265, -0.2145988
        %v2330 = vadd.f32 %v2266, -0.2145988
        %v2331 = vadd.f32 %v2267, -0.2145988
        %v2332 = vadd.f32 %v2268, -0.2145988
        %v2333 = vadd.f32 %v2269, -0.2145988
        %v2334 = vadd.f32 %v2270, -0.2145988
        %v2335 = vadd.f32 %v2271, -0.2145988
        %v2336 = vadd.f32 %v2272, -0.2145988
        %v2337 = vadd.f32 %v2273, -0.2145988
        %v2338 = vadd.f32 %v2274, -0.2145988
        %v2339 = vadd.f32 %v2275, -0.2145988
        %v2340 = vadd.f32 %v2276, -0.2145988
        %v2341 = vadd.f32 %v2277, -0.2145988
        %v2342 = vadd.f32 %v2278, -0.2145988
        %v2343 = vadd.f32 %v2279, -0.2145988
        %v2344 = vadd.f32 %v2280, -0.2145988
        %v2345 = vadd.f32 %v2281, -0.2145988
        %v2346 = vadd.f32 %v2282, -0.2145988
        %v2347 = vadd.f32 %v2283, -0.2145988
        %v2348 = vadd.f32 %v2284, -0.2145988
        %v2349 = vadd.f32 %v2285, -0.2145988
        %v2350 = vadd.f32 %v2286, -0.2145988
        %v2351 = vadd.f32 %v2287, -0.2145988
        %v2352 = vadd.f32 %v2288, -0.2145988
        %v2353 = vadd.f32 %v2289, -0.2145988
        %v2354 = vadd.f32 %v2290, -0.2145988
        %v2355 = vmul.f32 %v2291, %v1523
        %v2356 = vmul.f32 %v2292, %v1524
        %v2357 = vmul.f32 %v2293, %v1525
        %v2358 = vmul.f32 %v2294, %v1526
        %v2359 = vmul.f32 %v2295, %v1527
        %v2360 = vmul.f32 %v2296, %v1528
        %v2361 = vmul.f32 %v2297, %v1529
        %v2362 = vmul.f32 %v2298, %v1530
        %v2363 = vmul.f32 %v2299, %v1531
        %v2364 = vmul.f32 %v2300, %v1532
        %v2365 = vmul.f32 %v2301, %v1533
        %v2366 = vmul.f32 %v2302, %v1534
        %v2367 = vmul.f32 %v2303, %v1535
        %v2368 = vmul.f32 %v2304, %v1536
        %v2369 = vmul.f32 %v2305, %v1537
        %v2370 = vmul.f32 %v2306, %v1538
        %v2371 = vmul.f32 %v2307, %v1539
        %v2372 = vmul.f32 %v2308, %v1540
        %v2373 = vmul.f32 %v2309, %v1541
        %v2374 = vmul.f32 %v2310, %v1542
        %v2375 = vmul.f32 %v2311, %v1543
        %v2376 = vmul.f32 %v2312, %v1544
        %v2377 = vmul.f32 %v2313, %v1545
        %v2378 = vmul.f32 %v2314, %v1546
        %v2379 = vmul.f32 %v2315, %v1547
        %v2380 = vmul.f32 %v2316, %v1548
        %v2381 = vmul.f32 %v2317, %v1549
        %v2382 = vmul.f32 %v2318, %v1550
        %v2383 = vmul.f32 %v2319, %v1551
        %v2384 = vmul.f32 %v2320, %v1552
        %v2385 = vmul.f32 %v2321, %v1553
        %v2386 = vmul.f32 %v2322, %v1554
        %v2387 = vmul.f32 %v2323, %v1555
        %v2388 = vmul.f32 %v2324, %v1556
        %v2389 = vmul.f32 %v2325, %v1557
        %v2390 = vmul.f32 %v2326, %v1558
        %v2391 = vmul.f32 %v2327, %v1559
        %v2392 = vmul.f32 %v2328, %v1560
        %v2393 = vmul.f32 %v2329, %v1561
        %v2394 = vmul.f32 %v2330, %v1562
        %v2395 = vmul.f32 %v2331, %v1563
        %v2396 = vmul.f32 %v2332, %v1564
        %v2397 = vmul.f32 %v2333, %v1565
        %v2398 = vmul.f32 %v2334, %v1566
        %v2399 = vmul.f32 %v2335, %v1567
        %v2400 = vmul.f32 %v2336, %v1568
        %v2401 = vmul.f32 %v2337, %v1569
        %v2402 = vmul.f32 %v2338, %v1570
        %v2403 = vmul.f32 %v2339, %v1571
        %v2404 = vmul.f32 %v2340, %v1572
        %v2405 = vmul.f32 %v2341, %v1573
        %v2406 = vmul.f32 %v2342, %v1574
        %v2407 = vmul.f32 %v2343, %v1575
        %v2408 = vmul.f32 %v2344, %v1576
        %v2409 = vmul.f32 %v2345, %v1577
        %v2410 = vmul.f32 %v2346, %v1578
        %v2411 = vmul.f32 %v2347, %v1579
        %v2412 = vmul.f32 %v2348, %v1580
        %v2413 = vmul.f32 %v2349, %v1581
        %v2414 = vmul.f32 %v2350, %v1582
        %v2415 = vmul.f32 %v2351, %v1583
        %v2416 = vmul.f32 %v2352, %v1584
        %v2417 = vmul.f32 %v2353, %v1585
        %v2418 = vmul.f32 %v2354, %v1586
        %v2419 = vadd.f32 %v2355, 1.5707963
        %v2420 = vadd.f32 %v2356, 1.5707963
        %v2421 = vadd.f32 %v2357, 1.5707963
        %v2422 = vadd.f32 %v2358, 1.5707963
        %v2423 = vadd.f32 %v2359, 1.5707963
        %v2424 = vadd.f32 %v2360, 1.5707963
        %v2425 = vadd.f32 %v2361, 1.5707963
        %v2426 = vadd.f32 %v2362, 1.5707963
        %v2427 = vadd.f32 %v2363, 1.5707963
        %v2428 = vadd.f32 %v2364, 1.5707963
        %v2429 = vadd.f32 %v2365, 1.5707963
        %v2430 = vadd.f32 %v2366, 1.5707963
        %v2431 = vadd.f32 %v2367, 1.5707963
        %v2432 = vadd.f32 %v2368, 1.5707963
        %v2433 = vadd.f32 %v2369, 1.5707963
        %v2434 = vadd.f32 %v2370, 1.5707963
        %v2435 = vadd.f32 %v2371, 1.5707963
        %v2436 = vadd.f32 %v2372, 1.5707963
        %v2437 = vadd.f32 %v2373, 1.5707963
        %v2438 = vadd.f32 %v2374, 1.5707963
        %v2439 = vadd.f32 %v2375, 1.5707963
        %v2440 = vadd.f32 %v2376, 1.5707963
        %v2441 = vadd.f32 %v2377, 1.5707963
        %v2442 = vadd.f32 %v2378, 1.5707963
        %v2443 = vadd.f32 %v2379, 1.5707963
        %v2444 = vadd.f32 %v2380, 1.5707963
        %v2445 = vadd.f32 %v2381, 1.5707963
        %v2446 = vadd.f32 %v2382, 1.5707963
        %v2447 = vadd.f32 %v2383, 1.5707963
        %v2448 = vadd.f32 %v2384, 1.5707963
        %v2449 = vadd.f32 %v2385, 1.5707963
        %v2450 = vadd.f32 %v2386, 1.5707963
        %v2451 = vadd.f32 %v2387, 1.5707963
        %v2452 = vadd.f32 %v2388, 1.5707963
        %v2453 = vadd.f32 %v2389, 1.5707963
        %v2454 = vadd.f32 %v2390, 1.5707963
        %v2455 = vadd.f32 %v2391, 1.5707963
        %v2456 = vadd.f32 %v2392, 1.5707963
        %v2457 = vadd.f32 %v2393, 1.5707963
        %v2458 = vadd.f32 %v2394, 1.5707963
        %v2459 = vadd.f32 %v2395, 1.5707963
        %v2460 = vadd.f32 %v2396, 1.5707963
        %v2461 = vadd.f32 %v2397, 1.5707963
        %v2462 = vadd.f32 %v2398, 1.5707963
        %v2463 = vadd.f32 %v2399, 1.5707963
        %v2464 = vadd.f32 %v2400, 1.5707963
        %v2465 = vadd.f32 %v2401, 1.5707963
        %v2466 = vadd.f32 %v2402, 1.5707963
        %v2467 = vadd.f32 %v2403, 1.5707963
        %v2468 = vadd.f32 %v2404, 1.5707963
        %v2469 = vadd.f32 %v2405, 1.5707963
        %v2470 = vadd.f32 %v2406, 1.5707963
        %v2471 = vadd.f32 %v2407, 1.5707963
        %v2472 = vadd.f32 %v2408, 1.5707963
        %v2473 = vadd.f32 %v2409, 1.5707963
        %v2474 = vadd.f32 %v2410, 1.5707963
        %v2475 = vadd.f32 %v2411, 1.5707963
        %v2476 = vadd.f32 %v2412, 1.5707963
        %v2477 = vadd.f32 %v2413, 1.5707963
        %v2478 = vadd.f32 %v2414, 1.5707963
        %v2479 = vadd.f32 %v2415, 1.5707963
        %v2480 = vadd.f32 %v2416, 1.5707963
        %v2481 = vadd.f32 %v2417, 1.5707963
        %v2482 = vadd.f32 %v2418, 1.5707963
        %v2483 = vsub.f32 1.0, %v1523
        %v2484 = vsub.f32 1.0, %v1524
        %v2485 = vsub.f32 1.0, %v1525
        %v2486 = vsub.f32 1.0, %v1526
        %v2487 = vsub.f32 1.0, %v1527
        %v2488 = vsub.f32 1.0, %v1528
        %v2489 = vsub.f32 1.0, %v1529
        %v2490 = vsub.f32 1.0, %v1530
        %v2491 = vsub.f32 1.0, %v1531
        %v2492 = vsub.f32 1.0, %v1532
        %v2493 = vsub.f32 1.0, %v1533
        %v2494 = vsub.f32 1.0, %v1534
        %v2495 = vsub.f32 1.0, %v1535
        %v2496 = vsub.f32 1.0, %v1536
        %v2497 = vsub.f32 1.0, %v1537
        %v2498 = vsub.f32 1.0, %v1538
        %v2499 = vsub.f32 1.0, %v1539
        %v2500 = vsub.f32 1.0, %v1540
        %v2501 = vsub.f32 1.0, %v1541
        %v2502 = vsub.f32 1.0, %v1542
        %v2503 = vsub.f32 1.0, %v1543
        %v2504 = vsub.f32 1.0, %v1544
        %v2505 = vsub.f32 1.0, %v1545
        %v2506 = vsub.f32 1.0, %v1546
        %v2507 = vsub.f32 1.0, %v1547
        %v2508 = vsub.f32 1.0, %v1548
        %v2509 = vsub.f32 1.0, %v1549
        %v2510 = vsub.f32 1.0, %v1550
        %v2511 = vsub.f32 1.0, %v1551
        %v2512 = vsub.f32 1.0, %v1552
        %v2513 = vsub.f32 1.0, %v1553
        %v2514 = vsub.f32 1.0, %v1554
        %v2515 = vsub.f32 1.0, %v1555
        %v2516 = vsub.f32 1.0, %v1556
        %v2517 = vsub.f32 1.0, %v1557
        %v2518 = vsub.f32 1.0, %v1558
        %v2519 = vsub.f32 1.0, %v1559
        %v2520 = vsub.f32 1.0, %v1560
        %v2521 = vsub.f32 1.0, %v1561
        %v2522 = vsub.f32 1.0, %v1562
        %v2523 = vsub.f32 1.0, %v1563
        %v2524 = vsub.f32 1.0, %v1564
        %v2525 = vsub.f32 1.0, %v1565
        %v2526 = vsub.f32 1.0, %v1566
        %v2527 = vsub.f32 1.0, %v1567
        %v2528 = vsub.f32 1.0, %v1568
        %v2529 = vsub.f32 1.0, %v1569
        %v2530 = vsub.f32 1.0, %v1570
        %v2531 = vsub.f32 1.0, %v1571
        %v2532 = vsub.f32 1.0, %v1572
        %v2533 = vsub.f32 1.0, %v1573
        %v2534 = vsub.f32 1.0, %v1574
        %v2535 = vsub.f32 1.0, %v1575
        %v2536 = vsub.f32 1.0, %v1576
        %v2537 = vsub.f32 1.0, %v1577
        %v2538 = vsub.f32 1.0, %v1578
        %v2539 = vsub.f32 1.0, %v1579
        %v2540 = vsub.f32 1.0, %v1580
        %v2541 = vsub.f32 1.0, %v1581
        %v2542 = vsub.f32 1.0, %v1582
        %v2543 = vsub.f32 1.0, %v1583
        %v2544 = vsub.f32 1.0, %v1584
        %v2545 = vsub.f32 1.0, %v1585
        %v2546 = vsub.f32 1.0, %v1586
        %v2547 = vmax.f32 %v2483, 0.0
        %v2548 = vmax.f32 %v2484, 0.0
        %v2549 = vmax.f32 %v2485, 0.0
        %v2550 = vmax.f32 %v2486, 0.0
        %v2551 = vmax.f32 %v2487, 0.0
        %v2552 = vmax.f32 %v2488, 0.0
        %v2553 = vmax.f32 %v2489, 0.0
        %v2554 = vmax.f32 %v2490, 0.0
        %v2555 = vmax.f32 %v2491, 0.0
        %v2556 = vmax.f32 %v2492, 0.0
        %v2557 = vmax.f32 %v2493, 0.0
        %v2558 = vmax.f32 %v2494, 0.0
        %v2559 = vmax.f32 %v2495, 0.0
        %v2560 = vmax.f32 %v2496, 0.0
        %v2561 = vmax.f32 %v2497, 0.0
        %v2562 = vmax.f32 %v2498, 0.0
        %v2563 = vmax.f32 %v2499, 0.0
        %v2564 = vmax.f32 %v2500, 0.0
        %v2565 = vmax.f32 %v2501, 0.0
        %v2566 = vmax.f32 %v2502, 0.0
        %v2567 = vmax.f32 %v2503, 0.0
        %v2568 = vmax.f32 %v2504, 0.0
        %v2569 = vmax.f32 %v2505, 0.0
        %v2570 = vmax.f32 %v2506, 0.0
        %v2571 = vmax.f32 %v2507, 0.0
        %v2572 = vmax.f32 %v2508, 0.0
        %v2573 = vmax.f32 %v2509, 0.0
        %v2574 = vmax.f32 %v2510, 0.0
        %v2575 = vmax.f32 %v2511, 0.0
        %v2576 = vmax.f32 %v2512, 0.0
        %v2577 = vmax.f32 %v2513, 0.0
        %v2578 = vmax.f32 %v2514, 0.0
        %v2579 = vmax.f32 %v2515, 0.0
        %v2580 = vmax.f32 %v2516, 0.0
        %v2581 = vmax.f32 %v2517, 0.0
        %v2582 = vmax.f32 %v2518, 0.0
        %v2583 = vmax.f32 %v2519, 0.0
        %v2584 = vmax.f32 %v2520, 0.0
        %v2585 = vmax.f32 %v2521, 0.0
        %v2586 = vmax.f32 %v2522, 0.0
        %v2587 = vmax.f32 %v2523, 0.0
        %v2588 = vmax.f32 %v2524, 0.0
        %v2589 = vmax.f32 %v2525, 0.0
        %v2590 = vmax.f32 %v2526, 0.0
        %v2591 = vmax.f32 %v2527, 0.0
        %v2592 = vmax.f32 %v2528, 0.0
        %v2593 = vmax.f32 %v2529, 0.0
        %v2594 = vmax.f32 %v2530, 0.0
        %v2595 = vmax.f32 %v2531, 0.0
        %v2596 = vmax.f32 %v2532, 0.0
        %v2597 = vmax.f32 %v2533, 0.0
        %v2598 = vmax.f32 %v2534, 0.0
        %v2599 = vmax.f32 %v2535, 0.0
        %v2600 = vmax.f32 %v2536, 0.0
        %v2601 = vmax.f32 %v2537, 0.0
        %v2602 = vmax.f32 %v2538, 0.0
        %v2603 = vmax.f32 %v2539, 0.0
        %v2604 = vmax.f32 %v2540, 0.0
        %v2605 = vmax.f32 %v2541, 0.0
        %v2606 = vmax.f32 %v2542, 0.0
        %v2607 = vmax.f32 %v2543, 0.0
        %v2608 = vmax.f32 %v2544, 0.0
        %v2609 = vmax.f32 %v2545, 0.0
        %v2610 = vmax.f32 %v2546, 0.0
        %v2611 = vrsqrt.pop %v2547
        %v2612 = vmul.f32 %v2547, %v2611
        %vm2613 = vcmp.eq.f32.partialorder %v2547, inf
        %v2614 = vsel %vm2613, %v2547, %v2612
        %vm2615 = vcmp.eq.f32.partialorder %v2547, 0.0
        %v2616 = vand.u32 %v2547, 2147483648
        %v2617 = vsel %vm2615, %v2616, %v2614
        %v2618 = vrsqrt.pop %v2548
        %v2619 = vmul.f32 %v2548, %v2618
        %vm2620 = vcmp.eq.f32.partialorder %v2548, inf
        %v2621 = vsel %vm2620, %v2548, %v2619
        %vm2622 = vcmp.eq.f32.partialorder %v2548, 0.0
        %v2623 = vand.u32 %v2548, 2147483648
        %v2624 = vsel %vm2622, %v2623, %v2621
        %v2625 = vrsqrt.pop %v2549
        %v2626 = vmul.f32 %v2549, %v2625
        %vm2627 = vcmp.eq.f32.partialorder %v2549, inf
        %v2628 = vsel %vm2627, %v2549, %v2626
        %vm2629 = vcmp.eq.f32.partialorder %v2549, 0.0
        %v2630 = vand.u32 %v2549, 2147483648
        %v2631 = vsel %vm2629, %v2630, %v2628
        %v2632 = vrsqrt.pop %v2550
        %v2633 = vmul.f32 %v2550, %v2632
        %vm2634 = vcmp.eq.f32.partialorder %v2550, inf
        %v2635 = vsel %vm2634, %v2550, %v2633
        %vm2636 = vcmp.eq.f32.partialorder %v2550, 0.0
        %v2637 = vand.u32 %v2550, 2147483648
        %v2638 = vsel %vm2636, %v2637, %v2635
        %v2639 = vrsqrt.pop %v2551
        %v2640 = vmul.f32 %v2551, %v2639
        %vm2641 = vcmp.eq.f32.partialorder %v2551, inf
        %v2642 = vsel %vm2641, %v2551, %v2640
        %vm2643 = vcmp.eq.f32.partialorder %v2551, 0.0
        %v2644 = vand.u32 %v2551, 2147483648
        %v2645 = vsel %vm2643, %v2644, %v2642
        %v2646 = vrsqrt.pop %v2552
        %v2647 = vmul.f32 %v2552, %v2646
        %vm2648 = vcmp.eq.f32.partialorder %v2552, inf
        %v2649 = vsel %vm2648, %v2552, %v2647
        %vm2650 = vcmp.eq.f32.partialorder %v2552, 0.0
        %v2651 = vand.u32 %v2552, 2147483648
        %v2652 = vsel %vm2650, %v2651, %v2649
        %v2653 = vrsqrt.pop %v2553
        %v2654 = vmul.f32 %v2553, %v2653
        %vm2655 = vcmp.eq.f32.partialorder %v2553, inf
        %v2656 = vsel %vm2655, %v2553, %v2654
        %vm2657 = vcmp.eq.f32.partialorder %v2553, 0.0
        %v2658 = vand.u32 %v2553, 2147483648
        %v2659 = vsel %vm2657, %v2658, %v2656
        %v2660 = vrsqrt.pop %v2554
        %v2661 = vmul.f32 %v2554, %v2660
        %vm2662 = vcmp.eq.f32.partialorder %v2554, inf
        %v2663 = vsel %vm2662, %v2554, %v2661
        %vm2664 = vcmp.eq.f32.partialorder %v2554, 0.0
        %v2665 = vand.u32 %v2554, 2147483648
        %v2666 = vsel %vm2664, %v2665, %v2663
        %v2667 = vrsqrt.pop %v2555
        %v2668 = vmul.f32 %v2555, %v2667
        %vm2669 = vcmp.eq.f32.partialorder %v2555, inf
        %v2670 = vsel %vm2669, %v2555, %v2668
        %vm2671 = vcmp.eq.f32.partialorder %v2555, 0.0
        %v2672 = vand.u32 %v2555, 2147483648
        %v2673 = vsel %vm2671, %v2672, %v2670
        %v2674 = vrsqrt.pop %v2556
        %v2675 = vmul.f32 %v2556, %v2674
        %vm2676 = vcmp.eq.f32.partialorder %v2556, inf
        %v2677 = vsel %vm2676, %v2556, %v2675
        %vm2678 = vcmp.eq.f32.partialorder %v2556, 0.0
        %v2679 = vand.u32 %v2556, 2147483648
        %v2680 = vsel %vm2678, %v2679, %v2677
        %v2681 = vrsqrt.pop %v2557
        %v2682 = vmul.f32 %v2557, %v2681
        %vm2683 = vcmp.eq.f32.partialorder %v2557, inf
        %v2684 = vsel %vm2683, %v2557, %v2682
        %vm2685 = vcmp.eq.f32.partialorder %v2557, 0.0
        %v2686 = vand.u32 %v2557, 2147483648
        %v2687 = vsel %vm2685, %v2686, %v2684
        %v2688 = vrsqrt.pop %v2558
        %v2689 = vmul.f32 %v2558, %v2688
        %vm2690 = vcmp.eq.f32.partialorder %v2558, inf
        %v2691 = vsel %vm2690, %v2558, %v2689
        %vm2692 = vcmp.eq.f32.partialorder %v2558, 0.0
        %v2693 = vand.u32 %v2558, 2147483648
        %v2694 = vsel %vm2692, %v2693, %v2691
        %v2695 = vrsqrt.pop %v2559
        %v2696 = vmul.f32 %v2559, %v2695
        %vm2697 = vcmp.eq.f32.partialorder %v2559, inf
        %v2698 = vsel %vm2697, %v2559, %v2696
        %vm2699 = vcmp.eq.f32.partialorder %v2559, 0.0
        %v2700 = vand.u32 %v2559, 2147483648
        %v2701 = vsel %vm2699, %v2700, %v2698
        %v2702 = vrsqrt.pop %v2560
        %v2703 = vmul.f32 %v2560, %v2702
        %vm2704 = vcmp.eq.f32.partialorder %v2560, inf
        %v2705 = vsel %vm2704, %v2560, %v2703
        %vm2706 = vcmp.eq.f32.partialorder %v2560, 0.0
        %v2707 = vand.u32 %v2560, 2147483648
        %v2708 = vsel %vm2706, %v2707, %v2705
        %v2709 = vrsqrt.pop %v2561
        %v2710 = vmul.f32 %v2561, %v2709
        %vm2711 = vcmp.eq.f32.partialorder %v2561, inf
        %v2712 = vsel %vm2711, %v2561, %v2710
        %vm2713 = vcmp.eq.f32.partialorder %v2561, 0.0
        %v2714 = vand.u32 %v2561, 2147483648
        %v2715 = vsel %vm2713, %v2714, %v2712
        %v2716 = vrsqrt.pop %v2562
        %v2717 = vmul.f32 %v2562, %v2716
        %vm2718 = vcmp.eq.f32.partialorder %v2562, inf
        %v2719 = vsel %vm2718, %v2562, %v2717
        %vm2720 = vcmp.eq.f32.partialorder %v2562, 0.0
        %v2721 = vand.u32 %v2562, 2147483648
        %v2722 = vsel %vm2720, %v2721, %v2719
        %v2723 = vrsqrt.pop %v2563
        %v2724 = vmul.f32 %v2563, %v2723
        %vm2725 = vcmp.eq.f32.partialorder %v2563, inf
        %v2726 = vsel %vm2725, %v2563, %v2724
        %vm2727 = vcmp.eq.f32.partialorder %v2563, 0.0
        %v2728 = vand.u32 %v2563, 2147483648
        %v2729 = vsel %vm2727, %v2728, %v2726
        %v2730 = vrsqrt.pop %v2564
        %v2731 = vmul.f32 %v2564, %v2730
        %vm2732 = vcmp.eq.f32.partialorder %v2564, inf
        %v2733 = vsel %vm2732, %v2564, %v2731
        %vm2734 = vcmp.eq.f32.partialorder %v2564, 0.0
        %v2735 = vand.u32 %v2564, 2147483648
        %v2736 = vsel %vm2734, %v2735, %v2733
        %v2737 = vrsqrt.pop %v2565
        %v2738 = vmul.f32 %v2565, %v2737
        %vm2739 = vcmp.eq.f32.partialorder %v2565, inf
        %v2740 = vsel %vm2739, %v2565, %v2738
        %vm2741 = vcmp.eq.f32.partialorder %v2565, 0.0
        %v2742 = vand.u32 %v2565, 2147483648
        %v2743 = vsel %vm2741, %v2742, %v2740
        %v2744 = vrsqrt.pop %v2566
        %v2745 = vmul.f32 %v2566, %v2744
        %vm2746 = vcmp.eq.f32.partialorder %v2566, inf
        %v2747 = vsel %vm2746, %v2566, %v2745
        %vm2748 = vcmp.eq.f32.partialorder %v2566, 0.0
        %v2749 = vand.u32 %v2566, 2147483648
        %v2750 = vsel %vm2748, %v2749, %v2747
        %v2751 = vrsqrt.pop %v2567
        %v2752 = vmul.f32 %v2567, %v2751
        %vm2753 = vcmp.eq.f32.partialorder %v2567, inf
        %v2754 = vsel %vm2753, %v2567, %v2752
        %vm2755 = vcmp.eq.f32.partialorder %v2567, 0.0
        %v2756 = vand.u32 %v2567, 2147483648
        %v2757 = vsel %vm2755, %v2756, %v2754
        %v2758 = vrsqrt.pop %v2568
        %v2759 = vmul.f32 %v2568, %v2758
        %vm2760 = vcmp.eq.f32.partialorder %v2568, inf
        %v2761 = vsel %vm2760, %v2568, %v2759
        %vm2762 = vcmp.eq.f32.partialorder %v2568, 0.0
        %v2763 = vand.u32 %v2568, 2147483648
        %v2764 = vsel %vm2762, %v2763, %v2761
        %v2765 = vrsqrt.pop %v2569
        %v2766 = vmul.f32 %v2569, %v2765
        %vm2767 = vcmp.eq.f32.partialorder %v2569, inf
        %v2768 = vsel %vm2767, %v2569, %v2766
        %vm2769 = vcmp.eq.f32.partialorder %v2569, 0.0
        %v2770 = vand.u32 %v2569, 2147483648
        %v2771 = vsel %vm2769, %v2770, %v2768
        %v2772 = vrsqrt.pop %v2570
        %v2773 = vmul.f32 %v2570, %v2772
        %vm2774 = vcmp.eq.f32.partialorder %v2570, inf
        %v2775 = vsel %vm2774, %v2570, %v2773
        %vm2776 = vcmp.eq.f32.partialorder %v2570, 0.0
        %v2777 = vand.u32 %v2570, 2147483648
        %v2778 = vsel %vm2776, %v2777, %v2775
        %v2779 = vrsqrt.pop %v2571
        %v2780 = vmul.f32 %v2571, %v2779
        %vm2781 = vcmp.eq.f32.partialorder %v2571, inf
        %v2782 = vsel %vm2781, %v2571, %v2780
        %vm2783 = vcmp.eq.f32.partialorder %v2571, 0.0
        %v2784 = vand.u32 %v2571, 2147483648
        %v2785 = vsel %vm2783, %v2784, %v2782
        %v2786 = vrsqrt.pop %v2572
        %v2787 = vmul.f32 %v2572, %v2786
        %vm2788 = vcmp.eq.f32.partialorder %v2572, inf
        %v2789 = vsel %vm2788, %v2572, %v2787
        %vm2790 = vcmp.eq.f32.partialorder %v2572, 0.0
        %v2791 = vand.u32 %v2572, 2147483648
        %v2792 = vsel %vm2790, %v2791, %v2789
        %v2793 = vrsqrt.pop %v2573
        %v2794 = vmul.f32 %v2573, %v2793
        %vm2795 = vcmp.eq.f32.partialorder %v2573, inf
        %v2796 = vsel %vm2795, %v2573, %v2794
        %vm2797 = vcmp.eq.f32.partialorder %v2573, 0.0
        %v2798 = vand.u32 %v2573, 2147483648
        %v2799 = vsel %vm2797, %v2798, %v2796
        %v2800 = vrsqrt.pop %v2574
        %v2801 = vmul.f32 %v2574, %v2800
        %vm2802 = vcmp.eq.f32.partialorder %v2574, inf
        %v2803 = vsel %vm2802, %v2574, %v2801
        %vm2804 = vcmp.eq.f32.partialorder %v2574, 0.0
        %v2805 = vand.u32 %v2574, 2147483648
        %v2806 = vsel %vm2804, %v2805, %v2803
        %v2807 = vrsqrt.pop %v2575
        %v2808 = vmul.f32 %v2575, %v2807
        %vm2809 = vcmp.eq.f32.partialorder %v2575, inf
        %v2810 = vsel %vm2809, %v2575, %v2808
        %vm2811 = vcmp.eq.f32.partialorder %v2575, 0.0
        %v2812 = vand.u32 %v2575, 2147483648
        %v2813 = vsel %vm2811, %v2812, %v2810
        %v2814 = vrsqrt.pop %v2576
        %v2815 = vmul.f32 %v2576, %v2814
        %vm2816 = vcmp.eq.f32.partialorder %v2576, inf
        %v2817 = vsel %vm2816, %v2576, %v2815
        %vm2818 = vcmp.eq.f32.partialorder %v2576, 0.0
        %v2819 = vand.u32 %v2576, 2147483648
        %v2820 = vsel %vm2818, %v2819, %v2817
        %v2821 = vrsqrt.pop %v2577
        %v2822 = vmul.f32 %v2577, %v2821
        %vm2823 = vcmp.eq.f32.partialorder %v2577, inf
        %v2824 = vsel %vm2823, %v2577, %v2822
        %vm2825 = vcmp.eq.f32.partialorder %v2577, 0.0
        %v2826 = vand.u32 %v2577, 2147483648
        %v2827 = vsel %vm2825, %v2826, %v2824
        %v2828 = vrsqrt.pop %v2578
        %v2829 = vmul.f32 %v2578, %v2828
        %vm2830 = vcmp.eq.f32.partialorder %v2578, inf
        %v2831 = vsel %vm2830, %v2578, %v2829
        %vm2832 = vcmp.eq.f32.partialorder %v2578, 0.0
        %v2833 = vand.u32 %v2578, 2147483648
        %v2834 = vsel %vm2832, %v2833, %v2831
        %v2835 = vrsqrt.pop %v2579
        %v2836 = vmul.f32 %v2579, %v2835
        %vm2837 = vcmp.eq.f32.partialorder %v2579, inf
        %v2838 = vsel %vm2837, %v2579, %v2836
        %vm2839 = vcmp.eq.f32.partialorder %v2579, 0.0
        %v2840 = vand.u32 %v2579, 2147483648
        %v2841 = vsel %vm2839, %v2840, %v2838
        %v2842 = vrsqrt.pop %v2580
        %v2843 = vmul.f32 %v2580, %v2842
        %vm2844 = vcmp.eq.f32.partialorder %v2580, inf
        %v2845 = vsel %vm2844, %v2580, %v2843
        %vm2846 = vcmp.eq.f32.partialorder %v2580, 0.0
        %v2847 = vand.u32 %v2580, 2147483648
        %v2848 = vsel %vm2846, %v2847, %v2845
        %v2849 = vrsqrt.pop %v2581
        %v2850 = vmul.f32 %v2581, %v2849
        %vm2851 = vcmp.eq.f32.partialorder %v2581, inf
        %v2852 = vsel %vm2851, %v2581, %v2850
        %vm2853 = vcmp.eq.f32.partialorder %v2581, 0.0
        %v2854 = vand.u32 %v2581, 2147483648
        %v2855 = vsel %vm2853, %v2854, %v2852
        %v2856 = vrsqrt.pop %v2582
        %v2857 = vmul.f32 %v2582, %v2856
        %vm2858 = vcmp.eq.f32.partialorder %v2582, inf
        %v2859 = vsel %vm2858, %v2582, %v2857
        %vm2860 = vcmp.eq.f32.partialorder %v2582, 0.0
        %v2861 = vand.u32 %v2582, 2147483648
        %v2862 = vsel %vm2860, %v2861, %v2859
        %v2863 = vrsqrt.pop %v2583
        %v2864 = vmul.f32 %v2583, %v2863
        %vm2865 = vcmp.eq.f32.partialorder %v2583, inf
        %v2866 = vsel %vm2865, %v2583, %v2864
        %vm2867 = vcmp.eq.f32.partialorder %v2583, 0.0
        %v2868 = vand.u32 %v2583, 2147483648
        %v2869 = vsel %vm2867, %v2868, %v2866
        %v2870 = vrsqrt.pop %v2584
        %v2871 = vmul.f32 %v2584, %v2870
        %vm2872 = vcmp.eq.f32.partialorder %v2584, inf
        %v2873 = vsel %vm2872, %v2584, %v2871
        %vm2874 = vcmp.eq.f32.partialorder %v2584, 0.0
        %v2875 = vand.u32 %v2584, 2147483648
        %v2876 = vsel %vm2874, %v2875, %v2873
        %v2877 = vrsqrt.pop %v2585
        %v2878 = vmul.f32 %v2585, %v2877
        %vm2879 = vcmp.eq.f32.partialorder %v2585, inf
        %v2880 = vsel %vm2879, %v2585, %v2878
        %vm2881 = vcmp.eq.f32.partialorder %v2585, 0.0
        %v2882 = vand.u32 %v2585, 2147483648
        %v2883 = vsel %vm2881, %v2882, %v2880
        %v2884 = vrsqrt.pop %v2586
        %v2885 = vmul.f32 %v2586, %v2884
        %vm2886 = vcmp.eq.f32.partialorder %v2586, inf
        %v2887 = vsel %vm2886, %v2586, %v2885
        %vm2888 = vcmp.eq.f32.partialorder %v2586, 0.0
        %v2889 = vand.u32 %v2586, 2147483648
        %v2890 = vsel %vm2888, %v2889, %v2887
        %v2891 = vrsqrt.pop %v2587
        %v2892 = vmul.f32 %v2587, %v2891
        %vm2893 = vcmp.eq.f32.partialorder %v2587, inf
        %v2894 = vsel %vm2893, %v2587, %v2892
        %vm2895 = vcmp.eq.f32.partialorder %v2587, 0.0
        %v2896 = vand.u32 %v2587, 2147483648
        %v2897 = vsel %vm2895, %v2896, %v2894
        %v2898 = vrsqrt.pop %v2588
        %v2899 = vmul.f32 %v2588, %v2898
        %vm2900 = vcmp.eq.f32.partialorder %v2588, inf
        %v2901 = vsel %vm2900, %v2588, %v2899
        %vm2902 = vcmp.eq.f32.partialorder %v2588, 0.0
        %v2903 = vand.u32 %v2588, 2147483648
        %v2904 = vsel %vm2902, %v2903, %v2901
        %v2905 = vrsqrt.pop %v2589
        %v2906 = vmul.f32 %v2589, %v2905
        %vm2907 = vcmp.eq.f32.partialorder %v2589, inf
        %v2908 = vsel %vm2907, %v2589, %v2906
        %vm2909 = vcmp.eq.f32.partialorder %v2589, 0.0
        %v2910 = vand.u32 %v2589, 2147483648
        %v2911 = vsel %vm2909, %v2910, %v2908
        %v2912 = vrsqrt.pop %v2590
        %v2913 = vmul.f32 %v2590, %v2912
        %vm2914 = vcmp.eq.f32.partialorder %v2590, inf
        %v2915 = vsel %vm2914, %v2590, %v2913
        %vm2916 = vcmp.eq.f32.partialorder %v2590, 0.0
        %v2917 = vand.u32 %v2590, 2147483648
        %v2918 = vsel %vm2916, %v2917, %v2915
        %v2919 = vrsqrt.pop %v2591
        %v2920 = vmul.f32 %v2591, %v2919
        %vm2921 = vcmp.eq.f32.partialorder %v2591, inf
        %v2922 = vsel %vm2921, %v2591, %v2920
        %vm2923 = vcmp.eq.f32.partialorder %v2591, 0.0
        %v2924 = vand.u32 %v2591, 2147483648
        %v2925 = vsel %vm2923, %v2924, %v2922
        %v2926 = vrsqrt.pop %v2592
        %v2927 = vmul.f32 %v2592, %v2926
        %vm2928 = vcmp.eq.f32.partialorder %v2592, inf
        %v2929 = vsel %vm2928, %v2592, %v2927
        %vm2930 = vcmp.eq.f32.partialorder %v2592, 0.0
        %v2931 = vand.u32 %v2592, 2147483648
        %v2932 = vsel %vm2930, %v2931, %v2929
        %v2933 = vrsqrt.pop %v2593
        %v2934 = vmul.f32 %v2593, %v2933
        %vm2935 = vcmp.eq.f32.partialorder %v2593, inf
        %v2936 = vsel %vm2935, %v2593, %v2934
        %vm2937 = vcmp.eq.f32.partialorder %v2593, 0.0
        %v2938 = vand.u32 %v2593, 2147483648
        %v2939 = vsel %vm2937, %v2938, %v2936
        %v2940 = vrsqrt.pop %v2594
        %v2941 = vmul.f32 %v2594, %v2940
        %vm2942 = vcmp.eq.f32.partialorder %v2594, inf
        %v2943 = vsel %vm2942, %v2594, %v2941
        %vm2944 = vcmp.eq.f32.partialorder %v2594, 0.0
        %v2945 = vand.u32 %v2594, 2147483648
        %v2946 = vsel %vm2944, %v2945, %v2943
        %v2947 = vrsqrt.pop %v2595
        %v2948 = vmul.f32 %v2595, %v2947
        %vm2949 = vcmp.eq.f32.partialorder %v2595, inf
        %v2950 = vsel %vm2949, %v2595, %v2948
        %vm2951 = vcmp.eq.f32.partialorder %v2595, 0.0
        %v2952 = vand.u32 %v2595, 2147483648
        %v2953 = vsel %vm2951, %v2952, %v2950
        %v2954 = vrsqrt.pop %v2596
        %v2955 = vmul.f32 %v2596, %v2954
        %vm2956 = vcmp.eq.f32.partialorder %v2596, inf
        %v2957 = vsel %vm2956, %v2596, %v2955
        %vm2958 = vcmp.eq.f32.partialorder %v2596, 0.0
        %v2959 = vand.u32 %v2596, 2147483648
        %v2960 = vsel %vm2958, %v2959, %v2957
        %v2961 = vrsqrt.pop %v2597
        %v2962 = vmul.f32 %v2597, %v2961
        %vm2963 = vcmp.eq.f32.partialorder %v2597, inf
        %v2964 = vsel %vm2963, %v2597, %v2962
        %vm2965 = vcmp.eq.f32.partialorder %v2597, 0.0
        %v2966 = vand.u32 %v2597, 2147483648
        %v2967 = vsel %vm2965, %v2966, %v2964
        %v2968 = vrsqrt.pop %v2598
        %v2969 = vmul.f32 %v2598, %v2968
        %vm2970 = vcmp.eq.f32.partialorder %v2598, inf
        %v2971 = vsel %vm2970, %v2598, %v2969
        %vm2972 = vcmp.eq.f32.partialorder %v2598, 0.0
        %v2973 = vand.u32 %v2598, 2147483648
        %v2974 = vsel %vm2972, %v2973, %v2971
        %v2975 = vrsqrt.pop %v2599
        %v2976 = vmul.f32 %v2599, %v2975
        %vm2977 = vcmp.eq.f32.partialorder %v2599, inf
        %v2978 = vsel %vm2977, %v2599, %v2976
        %vm2979 = vcmp.eq.f32.partialorder %v2599, 0.0
        %v2980 = vand.u32 %v2599, 2147483648
        %v2981 = vsel %vm2979, %v2980, %v2978
        %v2982 = vrsqrt.pop %v2600
        %v2983 = vmul.f32 %v2600, %v2982
        %vm2984 = vcmp.eq.f32.partialorder %v2600, inf
        %v2985 = vsel %vm2984, %v2600, %v2983
        %vm2986 = vcmp.eq.f32.partialorder %v2600, 0.0
        %v2987 = vand.u32 %v2600, 2147483648
        %v2988 = vsel %vm2986, %v2987, %v2985
        %v2989 = vrsqrt.pop %v2601
        %v2990 = vmul.f32 %v2601, %v2989
        %vm2991 = vcmp.eq.f32.partialorder %v2601, inf
        %v2992 = vsel %vm2991, %v2601, %v2990
        %vm2993 = vcmp.eq.f32.partialorder %v2601, 0.0
        %v2994 = vand.u32 %v2601, 2147483648
        %v2995 = vsel %vm2993, %v2994, %v2992
        %v2996 = vrsqrt.pop %v2602
        %v2997 = vmul.f32 %v2602, %v2996
        %vm2998 = vcmp.eq.f32.partialorder %v2602, inf
        %v2999 = vsel %vm2998, %v2602, %v2997
        %vm3000 = vcmp.eq.f32.partialorder %v2602, 0.0
        %v3001 = vand.u32 %v2602, 2147483648
        %v3002 = vsel %vm3000, %v3001, %v2999
        %v3003 = vrsqrt.pop %v2603
        %v3004 = vmul.f32 %v2603, %v3003
        %vm3005 = vcmp.eq.f32.partialorder %v2603, inf
        %v3006 = vsel %vm3005, %v2603, %v3004
        %vm3007 = vcmp.eq.f32.partialorder %v2603, 0.0
        %v3008 = vand.u32 %v2603, 2147483648
        %v3009 = vsel %vm3007, %v3008, %v3006
        %v3010 = vrsqrt.pop %v2604
        %v3011 = vmul.f32 %v2604, %v3010
        %vm3012 = vcmp.eq.f32.partialorder %v2604, inf
        %v3013 = vsel %vm3012, %v2604, %v3011
        %vm3014 = vcmp.eq.f32.partialorder %v2604, 0.0
        %v3015 = vand.u32 %v2604, 2147483648
        %v3016 = vsel %vm3014, %v3015, %v3013
        %v3017 = vrsqrt.pop %v2605
        %v3018 = vmul.f32 %v2605, %v3017
        %vm3019 = vcmp.eq.f32.partialorder %v2605, inf
        %v3020 = vsel %vm3019, %v2605, %v3018
        %vm3021 = vcmp.eq.f32.partialorder %v2605, 0.0
        %v3022 = vand.u32 %v2605, 2147483648
        %v3023 = vsel %vm3021, %v3022, %v3020
        %v3024 = vrsqrt.pop %v2606
        %v3025 = vmul.f32 %v2606, %v3024
        %vm3026 = vcmp.eq.f32.partialorder %v2606, inf
        %v3027 = vsel %vm3026, %v2606, %v3025
        %vm3028 = vcmp.eq.f32.partialorder %v2606, 0.0
        %v3029 = vand.u32 %v2606, 2147483648
        %v3030 = vsel %vm3028, %v3029, %v3027
        %v3031 = vrsqrt.pop %v2607
        %v3032 = vmul.f32 %v2607, %v3031
        %vm3033 = vcmp.eq.f32.partialorder %v2607, inf
        %v3034 = vsel %vm3033, %v2607, %v3032
        %vm3035 = vcmp.eq.f32.partialorder %v2607, 0.0
        %v3036 = vand.u32 %v2607, 2147483648
        %v3037 = vsel %vm3035, %v3036, %v3034
        %v3038 = vrsqrt.pop %v2608
        %v3039 = vmul.f32 %v2608, %v3038
        %vm3040 = vcmp.eq.f32.partialorder %v2608, inf
        %v3041 = vsel %vm3040, %v2608, %v3039
        %vm3042 = vcmp.eq.f32.partialorder %v2608, 0.0
        %v3043 = vand.u32 %v2608, 2147483648
        %v3044 = vsel %vm3042, %v3043, %v3041
        %v3045 = vrsqrt.pop %v2609
        %v3046 = vmul.f32 %v2609, %v3045
        %vm3047 = vcmp.eq.f32.partialorder %v2609, inf
        %v3048 = vsel %vm3047, %v2609, %v3046
        %vm3049 = vcmp.eq.f32.partialorder %v2609, 0.0
        %v3050 = vand.u32 %v2609, 2147483648
        %v3051 = vsel %vm3049, %v3050, %v3048
        %v3052 = vrsqrt.pop %v2610
        %v3053 = vmul.f32 %v2610, %v3052
        %vm3054 = vcmp.eq.f32.partialorder %v2610, inf
        %v3055 = vsel %vm3054, %v2610, %v3053
        %vm3056 = vcmp.eq.f32.partialorder %v2610, 0.0
        %v3057 = vand.u32 %v2610, 2147483648
        %v3058 = vsel %vm3056, %v3057, %v3055
        %v3059 = vmul.f32 %v2617, %v2419
        %v3060 = vmul.f32 %v2624, %v2420
        %v3061 = vmul.f32 %v2631, %v2421
        %v3062 = vmul.f32 %v2638, %v2422
        %v3063 = vmul.f32 %v2645, %v2423
        %v3064 = vmul.f32 %v2652, %v2424
        %v3065 = vmul.f32 %v2659, %v2425
        %v3066 = vmul.f32 %v2666, %v2426
        %v3067 = vmul.f32 %v2673, %v2427
        %v3068 = vmul.f32 %v2680, %v2428
        %v3069 = vmul.f32 %v2687, %v2429
        %v3070 = vmul.f32 %v2694, %v2430
        %v3071 = vmul.f32 %v2701, %v2431
        %v3072 = vmul.f32 %v2708, %v2432
        %v3073 = vmul.f32 %v2715, %v2433
        %v3074 = vmul.f32 %v2722, %v2434
        %v3075 = vmul.f32 %v2729, %v2435
        %v3076 = vmul.f32 %v2736, %v2436
        %v3077 = vmul.f32 %v2743, %v2437
        %v3078 = vmul.f32 %v2750, %v2438
        %v3079 = vmul.f32 %v2757, %v2439
        %v3080 = vmul.f32 %v2764, %v2440
        %v3081 = vmul.f32 %v2771, %v2441
        %v3082 = vmul.f32 %v2778, %v2442
        %v3083 = vmul.f32 %v2785, %v2443
        %v3084 = vmul.f32 %v2792, %v2444
        %v3085 = vmul.f32 %v2799, %v2445
        %v3086 = vmul.f32 %v2806, %v2446
        %v3087 = vmul.f32 %v2813, %v2447
        %v3088 = vmul.f32 %v2820, %v2448
        %v3089 = vmul.f32 %v2827, %v2449
        %v3090 = vmul.f32 %v2834, %v2450
        %v3091 = vmul.f32 %v2841, %v2451
        %v3092 = vmul.f32 %v2848, %v2452
        %v3093 = vmul.f32 %v2855, %v2453
        %v3094 = vmul.f32 %v2862, %v2454
        %v3095 = vmul.f32 %v2869, %v2455
        %v3096 = vmul.f32 %v2876, %v2456
        %v3097 = vmul.f32 %v2883, %v2457
        %v3098 = vmul.f32 %v2890, %v2458
        %v3099 = vmul.f32 %v2897, %v2459
        %v3100 = vmul.f32 %v2904, %v2460
        %v3101 = vmul.f32 %v2911, %v2461
        %v3102 = vmul.f32 %v2918, %v2462
        %v3103 = vmul.f32 %v2925, %v2463
        %v3104 = vmul.f32 %v2932, %v2464
        %v3105 = vmul.f32 %v2939, %v2465
        %v3106 = vmul.f32 %v2946, %v2466
        %v3107 = vmul.f32 %v2953, %v2467
        %v3108 = vmul.f32 %v2960, %v2468
        %v3109 = vmul.f32 %v2967, %v2469
        %v3110 = vmul.f32 %v2974, %v2470
        %v3111 = vmul.f32 %v2981, %v2471
        %v3112 = vmul.f32 %v2988, %v2472
        %v3113 = vmul.f32 %v2995, %v2473
        %v3114 = vmul.f32 %v3002, %v2474
        %v3115 = vmul.f32 %v3009, %v2475
        %v3116 = vmul.f32 %v3016, %v2476
        %v3117 = vmul.f32 %v3023, %v2477
        %v3118 = vmul.f32 %v3030, %v2478
        %v3119 = vmul.f32 %v3037, %v2479
        %v3120 = vmul.f32 %v3044, %v2480
        %v3121 = vmul.f32 %v3051, %v2481
        %v3122 = vmul.f32 %v3058, %v2482
        %vm3123 = vcmp.ge.f32.partialorder %v1459, 0.0
        %vm3124 = vcmp.ge.f32.partialorder %v1460, 0.0
        %vm3125 = vcmp.ge.f32.partialorder %v1461, 0.0
        %vm3126 = vcmp.ge.f32.partialorder %v1462, 0.0
        %vm3127 = vcmp.ge.f32.partialorder %v1463, 0.0
        %vm3128 = vcmp.ge.f32.partialorder %v1464, 0.0
        %vm3129 = vcmp.ge.f32.partialorder %v1465, 0.0
        %vm3130 = vcmp.ge.f32.partialorder %v1466, 0.0
        %vm3131 = vcmp.ge.f32.partialorder %v1467, 0.0
        %vm3132 = vcmp.ge.f32.partialorder %v1468, 0.0
        %vm3133 = vcmp.ge.f32.partialorder %v1469, 0.0
        %vm3134 = vcmp.ge.f32.partialorder %v1470, 0.0
        %vm3135 = vcmp.ge.f32.partialorder %v1471, 0.0
        %vm3136 = vcmp.ge.f32.partialorder %v1472, 0.0
        %vm3137 = vcmp.ge.f32.partialorder %v1473, 0.0
        %vm3138 = vcmp.ge.f32.partialorder %v1474, 0.0
        %vm3139 = vcmp.ge.f32.partialorder %v1475, 0.0
        %vm3140 = vcmp.ge.f32.partialorder %v1476, 0.0
        %vm3141 = vcmp.ge.f32.partialorder %v1477, 0.0
        %vm3142 = vcmp.ge.f32.partialorder %v1478, 0.0
        %vm3143 = vcmp.ge.f32.partialorder %v1479, 0.0
        %vm3144 = vcmp.ge.f32.partialorder %v1480, 0.0
        %vm3145 = vcmp.ge.f32.partialorder %v1481, 0.0
        %vm3146 = vcmp.ge.f32.partialorder %v1482, 0.0
        %vm3147 = vcmp.ge.f32.partialorder %v1483, 0.0
        %vm3148 = vcmp.ge.f32.partialorder %v1484, 0.0
        %vm3149 = vcmp.ge.f32.partialorder %v1485, 0.0
        %vm3150 = vcmp.ge.f32.partialorder %v1486, 0.0
        %vm3151 = vcmp.ge.f32.partialorder %v1487, 0.0
        %vm3152 = vcmp.ge.f32.partialorder %v1488, 0.0
        %vm3153 = vcmp.ge.f32.partialorder %v1489, 0.0
        %vm3154 = vcmp.ge.f32.partialorder %v1490, 0.0
        %vm3155 = vcmp.ge.f32.partialorder %v1491, 0.0
        %vm3156 = vcmp.ge.f32.partialorder %v1492, 0.0
        %vm3157 = vcmp.ge.f32.partialorder %v1493, 0.0
        %vm3158 = vcmp.ge.f32.partialorder %v1494, 0.0
        %vm3159 = vcmp.ge.f32.partialorder %v1495, 0.0
        %vm3160 = vcmp.ge.f32.partialorder %v1496, 0.0
        %vm3161 = vcmp.ge.f32.partialorder %v1497, 0.0
        %vm3162 = vcmp.ge.f32.partialorder %v1498, 0.0
        %vm3163 = vcmp.ge.f32.partialorder %v1499, 0.0
        %vm3164 = vcmp.ge.f32.partialorder %v1500, 0.0
        %vm3165 = vcmp.ge.f32.partialorder %v1501, 0.0
        %vm3166 = vcmp.ge.f32.partialorder %v1502, 0.0
        %vm3167 = vcmp.ge.f32.partialorder %v1503, 0.0
        %vm3168 = vcmp.ge.f32.partialorder %v1504, 0.0
        %vm3169 = vcmp.ge.f32.partialorder %v1505, 0.0
        %vm3170 = vcmp.ge.f32.partialorder %v1506, 0.0
        %vm3171 = vcmp.ge.f32.partialorder %v1507, 0.0
        %vm3172 = vcmp.ge.f32.partialorder %v1508, 0.0
        %vm3173 = vcmp.ge.f32.partialorder %v1509, 0.0
        %vm3174 = vcmp.ge.f32.partialorder %v1510, 0.0
        %vm3175 = vcmp.ge.f32.partialorder %v1511, 0.0
        %vm3176 = vcmp.ge.f32.partialorder %v1512, 0.0
        %vm3177 = vcmp.ge.f32.partialorder %v1513, 0.0
        %vm3178 = vcmp.ge.f32.partialorder %v1514, 0.0
        %vm3179 = vcmp.ge.f32.partialorder %v1515, 0.0
        %vm3180 = vcmp.ge.f32.partialorder %v1516, 0.0
        %vm3181 = vcmp.ge.f32.partialorder %v1517, 0.0
        %vm3182 = vcmp.ge.f32.partialorder %v1518, 0.0
        %vm3183 = vcmp.ge.f32.partialorder %v1519, 0.0
        %vm3184 = vcmp.ge.f32.partialorder %v1520, 0.0
        %vm3185 = vcmp.ge.f32.partialorder %v1521, 0.0
        %vm3186 = vcmp.ge.f32.partialorder %v1522, 0.0
        %v3187 = vsub.f32 3.1415927, %v3059
        %v3188 = vsub.f32 3.1415927, %v3060
        %v3189 = vsub.f32 3.1415927, %v3061
        %v3190 = vsub.f32 3.1415927, %v3062
        %v3191 = vsub.f32 3.1415927, %v3063
        %v3192 = vsub.f32 3.1415927, %v3064
        %v3193 = vsub.f32 3.1415927, %v3065
        %v3194 = vsub.f32 3.1415927, %v3066
        %v3195 = vsub.f32 3.1415927, %v3067
        %v3196 = vsub.f32 3.1415927, %v3068
        %v3197 = vsub.f32 3.1415927, %v3069
        %v3198 = vsub.f32 3.1415927, %v3070
        %v3199 = vsub.f32 3.1415927, %v3071
        %v3200 = vsub.f32 3.1415927, %v3072
        %v3201 = vsub.f32 3.1415927, %v3073
        %v3202 = vsub.f32 3.1415927, %v3074
        %v3203 = vsub.f32 3.1415927, %v3075
        %v3204 = vsub.f32 3.1415927, %v3076
        %v3205 = vsub.f32 3.1415927, %v3077
        %v3206 = vsub.f32 3.1415927, %v3078
        %v3207 = vsub.f32 3.1415927, %v3079
        %v3208 = vsub.f32 3.1415927, %v3080
        %v3209 = vsub.f32 3.1415927, %v3081
        %v3210 = vsub.f32 3.1415927, %v3082
        %v3211 = vsub.f32 3.1415927, %v3083
        %v3212 = vsub.f32 3.1415927, %v3084
        %v3213 = vsub.f32 3.1415927, %v3085
        %v3214 = vsub.f32 3.1415927, %v3086
        %v3215 = vsub.f32 3.1415927, %v3087
        %v3216 = vsub.f32 3.1415927, %v3088
        %v3217 = vsub.f32 3.1415927, %v3089
        %v3218 = vsub.f32 3.1415927, %v3090
        %v3219 = vsub.f32 3.1415927, %v3091
        %v3220 = vsub.f32 3.1415927, %v3092
        %v3221 = vsub.f32 3.1415927, %v3093
        %v3222 = vsub.f32 3.1415927, %v3094
        %v3223 = vsub.f32 3.1415927, %v3095
        %v3224 = vsub.f32 3.1415927, %v3096
        %v3225 = vsub.f32 3.1415927, %v3097
        %v3226 = vsub.f32 3.1415927, %v3098
        %v3227 = vsub.f32 3.1415927, %v3099
        %v3228 = vsub.f32 3.1415927, %v3100
        %v3229 = vsub.f32 3.1415927, %v3101
        %v3230 = vsub.f32 3.1415927, %v3102
        %v3231 = vsub.f32 3.1415927, %v3103
        %v3232 = vsub.f32 3.1415927, %v3104
        %v3233 = vsub.f32 3.1415927, %v3105
        %v3234 = vsub.f32 3.1415927, %v3106
        %v3235 = vsub.f32 3.1415927, %v3107
        %v3236 = vsub.f32 3.1415927, %v3108
        %v3237 = vsub.f32 3.1415927, %v3109
        %v3238 = vsub.f32 3.1415927, %v3110
        %v3239 = vsub.f32 3.1415927, %v3111
        %v3240 = vsub.f32 3.1415927, %v3112
        %v3241 = vsub.f32 3.1415927, %v3113
        %v3242 = vsub.f32 3.1415927, %v3114
        %v3243 = vsub.f32 3.1415927, %v3115
        %v3244 = vsub.f32 3.1415927, %v3116
        %v3245 = vsub.f32 3.1415927, %v3117
        %v3246 = vsub.f32 3.1415927, %v3118
        %v3247 = vsub.f32 3.1415927, %v3119
        %v3248 = vsub.f32 3.1415927, %v3120
        %v3249 = vsub.f32 3.1415927, %v3121
        %v3250 = vsub.f32 3.1415927, %v3122
        %v3251 = vsel %vm3123, %v3059, %v3187
        %v3252 = vsel %vm3124, %v3060, %v3188
        %v3253 = vsel %vm3125, %v3061, %v3189
        %v3254 = vsel %vm3126, %v3062, %v3190
        %v3255 = vsel %vm3127, %v3063, %v3191
        %v3256 = vsel %vm3128, %v3064, %v3192
        %v3257 = vsel %vm3129, %v3065, %v3193
        %v3258 = vsel %vm3130, %v3066, %v3194
        %v3259 = vsel %vm3131, %v3067, %v3195
        %v3260 = vsel %vm3132, %v3068, %v3196
        %v3261 = vsel %vm3133, %v3069, %v3197
        %v3262 = vsel %vm3134, %v3070, %v3198
        %v3263 = vsel %vm3135, %v3071, %v3199
        %v3264 = vsel %vm3136, %v3072, %v3200
        %v3265 = vsel %vm3137, %v3073, %v3201
        %v3266 = vsel %vm3138, %v3074, %v3202
        %v3267 = vsel %vm3139, %v3075, %v3203
        %v3268 = vsel %vm3140, %v3076, %v3204
        %v3269 = vsel %vm3141, %v3077, %v3205
        %v3270 = vsel %vm3142, %v3078, %v3206
        %v3271 = vsel %vm3143, %v3079, %v3207
        %v3272 = vsel %vm3144, %v3080, %v3208
        %v3273 = vsel %vm3145, %v3081, %v3209
        %v3274 = vsel %vm3146, %v3082, %v3210
        %v3275 = vsel %vm3147, %v3083, %v3211
        %v3276 = vsel %vm3148, %v3084, %v3212
        %v3277 = vsel %vm3149, %v3085, %v3213
        %v3278 = vsel %vm3150, %v3086, %v3214
        %v3279 = vsel %vm3151, %v3087, %v3215
        %v3280 = vsel %vm3152, %v3088, %v3216
        %v3281 = vsel %vm3153, %v3089, %v3217
        %v3282 = vsel %vm3154, %v3090, %v3218
        %v3283 = vsel %vm3155, %v3091, %v3219
        %v3284 = vsel %vm3156, %v3092, %v3220
        %v3285 = vsel %vm3157, %v3093, %v3221
        %v3286 = vsel %vm3158, %v3094, %v3222
        %v3287 = vsel %vm3159, %v3095, %v3223
        %v3288 = vsel %vm3160, %v3096, %v3224
        %v3289 = vsel %vm3161, %v3097, %v3225
        %v3290 = vsel %vm3162, %v3098, %v3226
        %v3291 = vsel %vm3163, %v3099, %v3227
        %v3292 = vsel %vm3164, %v3100, %v3228
        %v3293 = vsel %vm3165, %v3101, %v3229
        %v3294 = vsel %vm3166, %v3102, %v3230
        %v3295 = vsel %vm3167, %v3103, %v3231
        %v3296 = vsel %vm3168, %v3104, %v3232
        %v3297 = vsel %vm3169, %v3105, %v3233
        %v3298 = vsel %vm3170, %v3106, %v3234
        %v3299 = vsel %vm3171, %v3107, %v3235
        %v3300 = vsel %vm3172, %v3108, %v3236
        %v3301 = vsel %vm3173, %v3109, %v3237
        %v3302 = vsel %vm3174, %v3110, %v3238
        %v3303 = vsel %vm3175, %v3111, %v3239
        %v3304 = vsel %vm3176, %v3112, %v3240
        %v3305 = vsel %vm3177, %v3113, %v3241
        %v3306 = vsel %vm3178, %v3114, %v3242
        %v3307 = vsel %vm3179, %v3115, %v3243
        %v3308 = vsel %vm3180, %v3116, %v3244
        %v3309 = vsel %vm3181, %v3117, %v3245
        %v3310 = vsel %vm3182, %v3118, %v3246
        %v3311 = vsel %vm3183, %v3119, %v3247
        %v3312 = vsel %vm3184, %v3120, %v3248
        %v3313 = vsel %vm3185, %v3121, %v3249
        %v3314 = vsel %vm3186, %v3122, %v3250
        %3315 = vst [vmem:[%s163] sm:$0xff] %v3251
        %3316 = vst [vmem:[%s163 + $0x8] sm:$0xff] %v3252
        %3317 = vst [vmem:[%s163 + $0x10] sm:$0xff] %v3253
        %3318 = vst [vmem:[%s163 + $0x18] sm:$0xff] %v3254
        %3319 = vst [vmem:[%s163 + $0x20] sm:$0xff] %v3255
        %3320 = vst [vmem:[%s163 + $0x28] sm:$0xff] %v3256
        %3321 = vst [vmem:[%s163 + $0x30] sm:$0xff] %v3257
        %3322 = vst [vmem:[%s163 + $0x38] sm:$0xff] %v3258
        %3323 = vst [vmem:[%s163 + $0x40] sm:$0xff] %v3259
        %3324 = vst [vmem:[%s163 + $0x48] sm:$0xff] %v3260
        %3325 = vst [vmem:[%s163 + $0x50] sm:$0xff] %v3261
        %3326 = vst [vmem:[%s163 + $0x58] sm:$0xff] %v3262
        %3327 = vst [vmem:[%s163 + $0x60] sm:$0xff] %v3263
        %3328 = vst [vmem:[%s163 + $0x68] sm:$0xff] %v3264
        %3329 = vst [vmem:[%s163 + $0x70] sm:$0xff] %v3265
        %3330 = vst [vmem:[%s163 + $0x78] sm:$0xff] %v3266
        %3331 = vst [vmem:[%s163 + $0x80] sm:$0xff] %v3267
        %3332 = vst [vmem:[%s163 + $0x88] sm:$0xff] %v3268
        %3333 = vst [vmem:[%s163 + $0x90] sm:$0xff] %v3269
        %3334 = vst [vmem:[%s163 + $0x98] sm:$0xff] %v3270
        %3335 = vst [vmem:[%s163 + $0xa0] sm:$0xff] %v3271
        %3336 = vst [vmem:[%s163 + $0xa8] sm:$0xff] %v3272
        %3337 = vst [vmem:[%s163 + $0xb0] sm:$0xff] %v3273
        %3338 = vst [vmem:[%s163 + $0xb8] sm:$0xff] %v3274
        %3339 = vst [vmem:[%s163 + $0xc0] sm:$0xff] %v3275
        %3340 = vst [vmem:[%s163 + $0xc8] sm:$0xff] %v3276
        %3341 = vst [vmem:[%s163 + $0xd0] sm:$0xff] %v3277
        %3342 = vst [vmem:[%s163 + $0xd8] sm:$0xff] %v3278
        %3343 = vst [vmem:[%s163 + $0xe0] sm:$0xff] %v3279
        %3344 = vst [vmem:[%s163 + $0xe8] sm:$0xff] %v3280
        %3345 = vst [vmem:[%s163 + $0xf0] sm:$0xff] %v3281
        %3346 = vst [vmem:[%s163 + $0xf8] sm:$0xff] %v3282
        %3347 = vst [vmem:[%s163 + $0x100] sm:$0xff] %v3283
        %3348 = vst [vmem:[%s163 + $0x108] sm:$0xff] %v3284
        %3349 = vst [vmem:[%s163 + $0x110] sm:$0xff] %v3285
        %3350 = vst [vmem:[%s163 + $0x118] sm:$0xff] %v3286
        %3351 = vst [vmem:[%s163 + $0x120] sm:$0xff] %v3287
        %3352 = vst [vmem:[%s163 + $0x128] sm:$0xff] %v3288
        %3353 = vst [vmem:[%s163 + $0x130] sm:$0xff] %v3289
        %3354 = vst [vmem:[%s163 + $0x138] sm:$0xff] %v3290
        %3355 = vst [vmem:[%s163 + $0x140] sm:$0xff] %v3291
        %3356 = vst [vmem:[%s163 + $0x148] sm:$0xff] %v3292
        %3357 = vst [vmem:[%s163 + $0x150] sm:$0xff] %v3293
        %3358 = vst [vmem:[%s163 + $0x158] sm:$0xff] %v3294
        %3359 = vst [vmem:[%s163 + $0x160] sm:$0xff] %v3295
        %3360 = vst [vmem:[%s163 + $0x168] sm:$0xff] %v3296
        %3361 = vst [vmem:[%s163 + $0x170] sm:$0xff] %v3297
        %3362 = vst [vmem:[%s163 + $0x178] sm:$0xff] %v3298
        %3363 = vst [vmem:[%s163 + $0x180] sm:$0xff] %v3299
        %3364 = vst [vmem:[%s163 + $0x188] sm:$0xff] %v3300
        %3365 = vst [vmem:[%s163 + $0x190] sm:$0xff] %v3301
        %3366 = vst [vmem:[%s163 + $0x198] sm:$0xff] %v3302
        %3367 = vst [vmem:[%s163 + $0x1a0] sm:$0xff] %v3303
        %3368 = vst [vmem:[%s163 + $0x1a8] sm:$0xff] %v3304
        %3369 = vst [vmem:[%s163 + $0x1b0] sm:$0xff] %v3305
        %3370 = vst [vmem:[%s163 + $0x1b8] sm:$0xff] %v3306
        %3371 = vst [vmem:[%s163 + $0x1c0] sm:$0xff] %v3307
        %3372 = vst [vmem:[%s163 + $0x1c8] sm:$0xff] %v3308
        %3373 = vst [vmem:[%s163 + $0x1d0] sm:$0xff] %v3309
        %3374 = vst [vmem:[%s163 + $0x1d8] sm:$0xff] %v3310
        %3375 = vst [vmem:[%s163 + $0x1e0] sm:$0xff] %v3311
        %3376 = vst [vmem:[%s163 + $0x1e8] sm:$0xff] %v3312
        %3377 = vst [vmem:[%s163 + $0x1f0] sm:$0xff] %v3313
        %3378 = vst [vmem:[%s163 + $0x1f8] sm:$0xff] %v3314
        %s3379 = sand.u32 %s87, 1
        %s3380 = sand.u32 %s87, 1
        %s3381 = smul.addr %s3380, 512
        %s3382 = scalar_lea.vmem [#allocation2], %s3381
        // Predicated region
        $region29: #{net_forward.1} parent=27 // pred_check
          %p3383 = pneg %p97
        $region30: #{net_forward.1} parent=27 // pred_check_branch
          %3385 = sbr.rel (%p3383) target = $region32
        $region31: #{net_forward.1} parent=27 // pred_region
          %s3386 = smul.u32 32, %s17
          %s3387 = smul.u32 2, %s18
          %s3388 = smul.addr %s3386, 4
          %s3389 = sadd.s32 %s3387, %s3388
          %s3390 = smul.addr %s3389, 8
          %s3391 = scalar_lea.vmem %s2, %s3390
          // Predicated region
          $region33: #{net_forward.1} parent=31 // pred_check
            _
          $region34: #{net_forward.1} parent=31 // pred_check_branch
            %3393 = sbr.rel (0) target = $region36
          $region35: #{net_forward.1} parent=31 // pred_region
            // Predicated region
            $region37: #{net_forward.1} parent=35 // pred_check
              _
            $region38: #{net_forward.1} parent=35 // pred_check_branch
              %3395 = sbr.rel (0) target = $region40
            $region39: #{net_forward.1} parent=35 // pred_region
              loop: start=0, step=1, limit=1
              $region41: #{net_forward.1} parent=39 // loop_pre_header
                _
              $region42: #{net_forward.1} parent=39 // loop_header
                %s3397 = sphi 0, %s3401
                %p3398 = scmp.ge.s32.totalorder %s3397, 1
                %s3402 = sphi %s3382, %s3382
                %s3403 = sphi %s3391, %s3391
              $region43: #{net_forward.1} parent=39 // loop_header_branch
                %3400 = sbr.rel (%p3398) target = $region47
              $region44: #{net_forward.1} parent=39 // loop_body
                %v3404 = vld [vmem:[%s3402] sm:$0xff]
                %3405 = vst [vmem:[%s3403] sm:$0xff] %v3404
                %v3406 = vld [vmem:[%s3402 + $0x8] sm:$0xff]
                %3407 = vst [vmem:[%s3403 + $0x8] sm:$0xff] %v3406
                %v3408 = vld [vmem:[%s3402 + $0x10] sm:$0xff]
                %3409 = vst [vmem:[%s3403 + $0x20] sm:$0xff] %v3408
                %v3410 = vld [vmem:[%s3402 + $0x18] sm:$0xff]
                %3411 = vst [vmem:[%s3403 + $0x28] sm:$0xff] %v3410
                %v3412 = vld [vmem:[%s3402 + $0x20] sm:$0xff]
                %3413 = vst [vmem:[%s3403 + $0x40] sm:$0xff] %v3412
                %v3414 = vld [vmem:[%s3402 + $0x28] sm:$0xff]
                %3415 = vst [vmem:[%s3403 + $0x48] sm:$0xff] %v3414
                %v3416 = vld [vmem:[%s3402 + $0x30] sm:$0xff]
                %3417 = vst [vmem:[%s3403 + $0x60] sm:$0xff] %v3416
                %v3418 = vld [vmem:[%s3402 + $0x38] sm:$0xff]
                %3419 = vst [vmem:[%s3403 + $0x68] sm:$0xff] %v3418
                %v3420 = vld [vmem:[%s3402 + $0x40] sm:$0xff]
                %3421 = vst [vmem:[%s3403 + $0x80] sm:$0xff] %v3420
                %v3422 = vld [vmem:[%s3402 + $0x48] sm:$0xff]
                %3423 = vst [vmem:[%s3403 + $0x88] sm:$0xff] %v3422
                %v3424 = vld [vmem:[%s3402 + $0x50] sm:$0xff]
                %3425 = vst [vmem:[%s3403 + $0xa0] sm:$0xff] %v3424
                %v3426 = vld [vmem:[%s3402 + $0x58] sm:$0xff]
                %3427 = vst [vmem:[%s3403 + $0xa8] sm:$0xff] %v3426
                %v3428 = vld [vmem:[%s3402 + $0x60] sm:$0xff]
                %3429 = vst [vmem:[%s3403 + $0xc0] sm:$0xff] %v3428
                %v3430 = vld [vmem:[%s3402 + $0x68] sm:$0xff]
                %3431 = vst [vmem:[%s3403 + $0xc8] sm:$0xff] %v3430
                %v3432 = vld [vmem:[%s3402 + $0x70] sm:$0xff]
                %3433 = vst [vmem:[%s3403 + $0xe0] sm:$0xff] %v3432
                %v3434 = vld [vmem:[%s3402 + $0x78] sm:$0xff]
                %3435 = vst [vmem:[%s3403 + $0xe8] sm:$0xff] %v3434
                %v3436 = vld [vmem:[%s3402 + $0x80] sm:$0xff]
                %3437 = vst [vmem:[%s3403 + $0x100] sm:$0xff] %v3436
                %v3438 = vld [vmem:[%s3402 + $0x88] sm:$0xff]
                %3439 = vst [vmem:[%s3403 + $0x108] sm:$0xff] %v3438
                %v3440 = vld [vmem:[%s3402 + $0x90] sm:$0xff]
                %3441 = vst [vmem:[%s3403 + $0x120] sm:$0xff] %v3440
                %v3442 = vld [vmem:[%s3402 + $0x98] sm:$0xff]
                %3443 = vst [vmem:[%s3403 + $0x128] sm:$0xff] %v3442
                %v3444 = vld [vmem:[%s3402 + $0xa0] sm:$0xff]
                %3445 = vst [vmem:[%s3403 + $0x140] sm:$0xff] %v3444
                %v3446 = vld [vmem:[%s3402 + $0xa8] sm:$0xff]
                %3447 = vst [vmem:[%s3403 + $0x148] sm:$0xff] %v3446
                %v3448 = vld [vmem:[%s3402 + $0xb0] sm:$0xff]
                %3449 = vst [vmem:[%s3403 + $0x160] sm:$0xff] %v3448
                %v3450 = vld [vmem:[%s3402 + $0xb8] sm:$0xff]
                %3451 = vst [vmem:[%s3403 + $0x168] sm:$0xff] %v3450
                %v3452 = vld [vmem:[%s3402 + $0xc0] sm:$0xff]
                %3453 = vst [vmem:[%s3403 + $0x180] sm:$0xff] %v3452
                %v3454 = vld [vmem:[%s3402 + $0xc8] sm:$0xff]
                %3455 = vst [vmem:[%s3403 + $0x188] sm:$0xff] %v3454
                %v3456 = vld [vmem:[%s3402 + $0xd0] sm:$0xff]
                %3457 = vst [vmem:[%s3403 + $0x1a0] sm:$0xff] %v3456
                %v3458 = vld [vmem:[%s3402 + $0xd8] sm:$0xff]
                %3459 = vst [vmem:[%s3403 + $0x1a8] sm:$0xff] %v3458
                %v3460 = vld [vmem:[%s3402 + $0xe0] sm:$0xff]
                %3461 = vst [vmem:[%s3403 + $0x1c0] sm:$0xff] %v3460
                %v3462 = vld [vmem:[%s3402 + $0xe8] sm:$0xff]
                %3463 = vst [vmem:[%s3403 + $0x1c8] sm:$0xff] %v3462
                %v3464 = vld [vmem:[%s3402 + $0xf0] sm:$0xff]
                %3465 = vst [vmem:[%s3403 + $0x1e0] sm:$0xff] %v3464
                %v3466 = vld [vmem:[%s3402 + $0xf8] sm:$0xff]
                %3467 = vst [vmem:[%s3403 + $0x1e8] sm:$0xff] %v3466
                %v3468 = vld [vmem:[%s3402 + $0x100] sm:$0xff]
                %3469 = vst [vmem:[%s3403 + $0x200] sm:$0xff] %v3468
                %v3470 = vld [vmem:[%s3402 + $0x108] sm:$0xff]
                %3471 = vst [vmem:[%s3403 + $0x208] sm:$0xff] %v3470
                %v3472 = vld [vmem:[%s3402 + $0x110] sm:$0xff]
                %3473 = vst [vmem:[%s3403 + $0x220] sm:$0xff] %v3472
                %v3474 = vld [vmem:[%s3402 + $0x118] sm:$0xff]
                %3475 = vst [vmem:[%s3403 + $0x228] sm:$0xff] %v3474
                %v3476 = vld [vmem:[%s3402 + $0x120] sm:$0xff]
                %3477 = vst [vmem:[%s3403 + $0x240] sm:$0xff] %v3476
                %v3478 = vld [vmem:[%s3402 + $0x128] sm:$0xff]
                %3479 = vst [vmem:[%s3403 + $0x248] sm:$0xff] %v3478
                %v3480 = vld [vmem:[%s3402 + $0x130] sm:$0xff]
                %3481 = vst [vmem:[%s3403 + $0x260] sm:$0xff] %v3480
                %v3482 = vld [vmem:[%s3402 + $0x138] sm:$0xff]
                %3483 = vst [vmem:[%s3403 + $0x268] sm:$0xff] %v3482
                %v3484 = vld [vmem:[%s3402 + $0x140] sm:$0xff]
                %3485 = vst [vmem:[%s3403 + $0x280] sm:$0xff] %v3484
                %v3486 = vld [vmem:[%s3402 + $0x148] sm:$0xff]
                %3487 = vst [vmem:[%s3403 + $0x288] sm:$0xff] %v3486
                %v3488 = vld [vmem:[%s3402 + $0x150] sm:$0xff]
                %3489 = vst [vmem:[%s3403 + $0x2a0] sm:$0xff] %v3488
                %v3490 = vld [vmem:[%s3402 + $0x158] sm:$0xff]
                %3491 = vst [vmem:[%s3403 + $0x2a8] sm:$0xff] %v3490
                %v3492 = vld [vmem:[%s3402 + $0x160] sm:$0xff]
                %3493 = vst [vmem:[%s3403 + $0x2c0] sm:$0xff] %v3492
                %v3494 = vld [vmem:[%s3402 + $0x168] sm:$0xff]
                %3495 = vst [vmem:[%s3403 + $0x2c8] sm:$0xff] %v3494
                %v3496 = vld [vmem:[%s3402 + $0x170] sm:$0xff]
                %3497 = vst [vmem:[%s3403 + $0x2e0] sm:$0xff] %v3496
                %v3498 = vld [vmem:[%s3402 + $0x178] sm:$0xff]
                %3499 = vst [vmem:[%s3403 + $0x2e8] sm:$0xff] %v3498
                %v3500 = vld [vmem:[%s3402 + $0x180] sm:$0xff]
                %3501 = vst [vmem:[%s3403 + $0x300] sm:$0xff] %v3500
                %v3502 = vld [vmem:[%s3402 + $0x188] sm:$0xff]
                %3503 = vst [vmem:[%s3403 + $0x308] sm:$0xff] %v3502
                %v3504 = vld [vmem:[%s3402 + $0x190] sm:$0xff]
                %3505 = vst [vmem:[%s3403 + $0x320] sm:$0xff] %v3504
                %v3506 = vld [vmem:[%s3402 + $0x198] sm:$0xff]
                %3507 = vst [vmem:[%s3403 + $0x328] sm:$0xff] %v3506
                %v3508 = vld [vmem:[%s3402 + $0x1a0] sm:$0xff]
                %3509 = vst [vmem:[%s3403 + $0x340] sm:$0xff] %v3508
                %v3510 = vld [vmem:[%s3402 + $0x1a8] sm:$0xff]
                %3511 = vst [vmem:[%s3403 + $0x348] sm:$0xff] %v3510
                %v3512 = vld [vmem:[%s3402 + $0x1b0] sm:$0xff]
                %3513 = vst [vmem:[%s3403 + $0x360] sm:$0xff] %v3512
                %v3514 = vld [vmem:[%s3402 + $0x1b8] sm:$0xff]
                %3515 = vst [vmem:[%s3403 + $0x368] sm:$0xff] %v3514
                %v3516 = vld [vmem:[%s3402 + $0x1c0] sm:$0xff]
                %3517 = vst [vmem:[%s3403 + $0x380] sm:$0xff] %v3516
                %v3518 = vld [vmem:[%s3402 + $0x1c8] sm:$0xff]
                %3519 = vst [vmem:[%s3403 + $0x388] sm:$0xff] %v3518
                %v3520 = vld [vmem:[%s3402 + $0x1d0] sm:$0xff]
                %3521 = vst [vmem:[%s3403 + $0x3a0] sm:$0xff] %v3520
                %v3522 = vld [vmem:[%s3402 + $0x1d8] sm:$0xff]
                %3523 = vst [vmem:[%s3403 + $0x3a8] sm:$0xff] %v3522
                %v3524 = vld [vmem:[%s3402 + $0x1e0] sm:$0xff]
                %3525 = vst [vmem:[%s3403 + $0x3c0] sm:$0xff] %v3524
                %v3526 = vld [vmem:[%s3402 + $0x1e8] sm:$0xff]
                %3527 = vst [vmem:[%s3403 + $0x3c8] sm:$0xff] %v3526
                %v3528 = vld [vmem:[%s3402 + $0x1f0] sm:$0xff]
                %3529 = vst [vmem:[%s3403 + $0x3e0] sm:$0xff] %v3528
                %v3530 = vld [vmem:[%s3402 + $0x1f8] sm:$0xff]
                %3531 = vst [vmem:[%s3403 + $0x3e8] sm:$0xff] %v3530
              $region45: #{net_forward.1} parent=39 // loop_footer
                %s3401 = sadd.s32 1, %s3397
              $region46: #{net_forward.1} parent=39 // loop_footer_branch
                %3396 = sbr.rel target = $region42
              $region47: #{net_forward.1} parent=39 // loop_exit
                _
            $region40: #{net_forward.1} parent=35 // pred_fallthru
              _
            // Predicated region
            $region48: #{net_forward.1} parent=35 // pred_check
              _
            $region49: #{net_forward.1} parent=35 // pred_check_branch
              %3533 = sbr.rel target = $region51
            $region50: #{net_forward.1} parent=35 // pred_region
              _
            $region51: #{net_forward.1} parent=35 // pred_fallthru
              _
          $region36: #{net_forward.1} parent=31 // pred_fallthru
            _
          %3534 = vnop
        $region32: #{net_forward.1} parent=27 // pred_fallthru
          _
      $region28: #{net_forward.1} parent=5 // pred_fallthru
        _
      %p3535 = scmp.le.s32.totalorder 2, %s8
      // Predicated region
      $region52: #{net_forward.1} parent=5 // pred_check
        %p3536 = pneg %p3535
      $region53: #{net_forward.1} parent=5 // pred_check_branch
        %3538 = sbr.rel (%p3536) target = $region55
      $region54: #{net_forward.1} parent=5 // pred_region
        %s3539 = ssub.s32 %s8, 2
        // Predicated region
        $region56: #{net_forward.1} parent=54 // pred_check
          %p3540 = pneg %p103
        $region57: #{net_forward.1} parent=54 // pred_check_branch
          %3542 = sbr.rel (%p3540) target = $region59
        $region58: #{net_forward.1} parent=54 // pred_region
          %s3543 = sand.u32 %s88, 1
          %s3544 = sand.u32 %s88, 1
          %s3545 = smul.addr %s3544, 512
          %s3546 = scalar_lea.vmem [#allocation2], %s3545
        $region59: #{net_forward.1} parent=54 // pred_fallthru
          _
      $region55: #{net_forward.1} parent=5 // pred_fallthru
        _
    $region6: #{net_forward.1} parent=1 // loop_footer
      %s12 = sadd.s32 1, %s8
    $region7: #{net_forward.1} parent=1 // loop_footer_branch
      %7 = sbr.rel target = $region3
    $region8: #{net_forward.1} parent=1 // loop_exit
      _

</llo_original>
